<compile_context>
chip_gen: v5e
topology: v5e:2x2
jax: 0.10.0
libtpu: 0.0.40
codegen_flags: <defaults>
</compile_context>

<pallas_src>
import functools
import math

import jax
import jax.numpy as jnp
from jax.experimental import pallas as pl
from jax.experimental.pallas import tpu as pltpu

_PAD = 128  # lane-aligned flat halo on each side of the padded spatial buffer


# --------------------------------- kernel ---------------------------------- #

def _base_feature_kernel(x_ref, ln1w_ref, ln1b_ref, qkv1_ref, qkv2_ref,
                         scale_ref, proj_ref, ln2w_ref, ln2b_ref, pin_ref,
                         dw_ref, pout_ref, o_ref, pad_ref,
                         *, H, W, heads, head_c, hidden):
    HW = H * W
    C = heads * head_c
    PADDED = HW + 2 * _PAD

    x = x_ref[0]                                                  # (C, HW)

    # column-validity masks for the flattened 3x3 conv (mask row-boundary wrap)
    col = jax.lax.broadcasted_iota(jnp.int32, (1, HW), 1) % W
    left_ok = (col > 0).astype(jnp.float32)          # source col = col-1 valid
    right_ok = (col < W - 1).astype(jnp.float32)     # source col = col+1 valid

    def conv3x3(t, w9_ref):
        """'same' 3x3 conv in channel-major layout. t: (Cin, HW); w9: (9, Cout, Cin)."""
        cin = t.shape[0]
        cout = w9_ref.shape[1]
        z = jnp.zeros((cin, _PAD), jnp.float32)
        pad_ref[0:cin, 0:_PAD] = z                     # left halo (aligned store)
        pad_ref[0:cin, _PAD + HW:PADDED] = z           # right halo (aligned store)
        pad_ref[0:cin, _PAD:_PAD + HW] = t             # payload   (aligned store)
        acc = jnp.zeros((cout, HW), jnp.float32)
        k = 0
        for dy in (-1, 0, 1):
            for dx in (-1, 0, 1):
                s = dy * W + dx
                xs = pad_ref[0:cin, _PAD + s:_PAD + s + HW]
                if dx == -1:
                    xs = xs * left_ok
                elif dx == 1:
                    xs = xs * right_ok
                acc = acc + jnp.dot(w9_ref[k], xs,
                                    preferred_element_type=jnp.float32)
                k += 1
        return acc

    def layernorm(t, w_ref, b_ref):                   # WithBias LN over channels
        mu = jnp.mean(t, axis=0, keepdims=True)
        tc = t - mu
        var = jnp.mean(tc * tc, axis=0, keepdims=True)
        return tc * jax.lax.rsqrt(var + 1e-5) * w_ref[...] + b_ref[...]

    # ---------------------------- attention branch -------------------------- #
    n1 = layernorm(x, ln1w_ref, ln1b_ref)                          # (C, HW)
    t = jnp.dot(qkv1_ref[...], n1, preferred_element_type=jnp.float32)  # (3C, HW)
    qkv = conv3x3(t, qkv2_ref)                                     # (3C, HW)

    scale = scale_ref[...]                                         # (heads, 1)
    proj_w = proj_ref[...]                                         # (C, C)
    attn_out = jnp.zeros((C, HW), jnp.float32)
    for h in range(heads):
        r0 = h * head_c
        qh = qkv[r0:r0 + head_c, :]
        kh = qkv[C + r0:C + r0 + head_c, :]
        vh = qkv[2 * C + r0:2 * C + r0 + head_c, :]
        qn = qh / jnp.maximum(
            jnp.sqrt(jnp.sum(qh * qh, axis=1, keepdims=True)), 1e-12)
        kn = kh / jnp.maximum(
            jnp.sqrt(jnp.sum(kh * kh, axis=1, keepdims=True)), 1e-12)
        logits = jax.lax.dot_general(                              # q @ k^T
            qn, kn, (((1,), (1,)), ((), ())),
            preferred_element_type=jnp.float32)
        logits = logits * scale[h:h + 1, :]
        logits = logits - jnp.max(logits, axis=-1, keepdims=True)
        e = jnp.exp(logits)
        p = e / jnp.sum(e, axis=-1, keepdims=True)
        oh = jnp.dot(p, vh, preferred_element_type=jnp.float32)    # (head_c, HW)
        # fold the 1x1 proj into the per-head accumulation (avoids a concat)
        attn_out = attn_out + jnp.dot(proj_w[:, r0:r0 + head_c], oh,
                                      preferred_element_type=jnp.float32)
    x1 = x + attn_out                                              # residual 1

    # ------------------------------- MLP branch ----------------------------- #
    n2 = layernorm(x1, ln2w_ref, ln2b_ref)
    pin = jnp.dot(pin_ref[...], n2, preferred_element_type=jnp.float32)  # (2h, HW)
    d = conv3x3(pin, dw_ref)                                             # (2h, HW)
    a = d[0:hidden, :]
    b = d[hidden:2 * hidden, :]
    # TODO(synk): PyTorch F.gelu default is the exact erf form; the tanh
    # approximation (max deviation ~3e-4) is used here for TPU-friendly lowering.
    g = 0.5 * a * (1.0 + jnp.tanh(0.7978845608028654
                                  * (a + 0.044715 * a * a * a))) * b
    m = jnp.dot(pout_ref[...], g, preferred_element_type=jnp.float32)    # (C, HW)

    o_ref[0] = (x1 + m).astype(o_ref.dtype)                        # residual 2


# ------------------------------- JAX wrapper -------------------------------- #

def _adjust_num_heads(dim, num_heads):
    if dim % num_heads != 0:
        return dim // math.gcd(dim, num_heads)
    return num_heads


def _grouped_conv_to_dense9(w_oihw, groups):
    """PyTorch grouped-conv weight (O, I/g, 3, 3) -> dense block-diag (9, O, I)."""
    O, ipg, kh, kw = w_oihw.shape
    cin = ipg * groups
    opg = O // groups
    dense = jnp.zeros((kh, kw, O, cin), w_oihw.dtype)
    for g in range(groups):
        blk = jnp.transpose(w_oihw[g * opg:(g + 1) * opg], (2, 3, 0, 1))
        dense = dense.at[:, :, g * opg:(g + 1) * opg,
                         g * ipg:(g + 1) * ipg].set(blk)
    return dense.reshape(kh * kw, O, cin)


def base_feature_extraction(x, params, num_heads):
    """x: (B, C, H, W) f32 -> (B, C, H, W). One fused pallas_call per call."""
    B, C, H, W = x.shape
    HW = H * W
    assert W + 1 <= _PAD
    heads = _adjust_num_heads(C, num_heads)
    head_c = C // heads
    hidden = params["pout"].shape[1]
    h2 = 2 * hidden
    cmax = max(3 * C, h2)
    padded = HW + 2 * _PAD

    qkv1_w = params["qkv1"][:, :, 0, 0]
    proj_w = params["proj"][:, :, 0, 0]
    pin_w = params["pin"][:, :, 0, 0]
    pout_w = params["pout"][:, :, 0, 0]
    qkv2_w9 = jnp.transpose(params["qkv2"], (2, 3, 0, 1)).reshape(9, 3 * C, 3 * C)
    dw_w9 = _grouped_conv_to_dense9(params["dw"], hidden)
    ln1w = params["ln1_w"].reshape(C, 1)
    ln1b = params["ln1_b"].reshape(C, 1)
    ln2w = params["ln2_w"].reshape(C, 1)
    ln2b = params["ln2_b"].reshape(C, 1)
    scale = params["scale"].reshape(heads, 1)

    kernel = functools.partial(_base_feature_kernel, H=H, W=W, heads=heads,
                               head_c=head_c, hidden=hidden)

    out = pl.pallas_call(
        kernel,
        out_shape=jax.ShapeDtypeStruct((B, C, HW), x.dtype),
        grid_spec=pltpu.PrefetchScalarGridSpec(
            num_scalar_prefetch=0,
            grid=(B,),
            in_specs=[
                pl.BlockSpec((1, C, HW), lambda b: (b, 0, 0)),        # x (per image)
                pl.BlockSpec((C, 1), lambda b: (0, 0)),               # ln1 weight
                pl.BlockSpec((C, 1), lambda b: (0, 0)),               # ln1 bias
                pl.BlockSpec((3 * C, C), lambda b: (0, 0)),           # qkv1 (1x1)
                pl.BlockSpec((9, 3 * C, 3 * C), lambda b: (0, 0, 0)),  # qkv2 (3x3)
                pl.BlockSpec((heads, 1), lambda b: (0, 0)),           # per-head scale
                pl.BlockSpec((C, C), lambda b: (0, 0)),               # proj (1x1)
                pl.BlockSpec((C, 1), lambda b: (0, 0)),               # ln2 weight
                pl.BlockSpec((C, 1), lambda b: (0, 0)),               # ln2 bias
                pl.BlockSpec((h2, C), lambda b: (0, 0)),              # project_in
                pl.BlockSpec((9, h2, h2), lambda b: (0, 0, 0)),       # dwconv (dense)
                pl.BlockSpec((C, hidden), lambda b: (0, 0)),          # project_out
            ],
            out_specs=pl.BlockSpec((1, C, HW), lambda b: (b, 0, 0)),
            scratch_shapes=[pltpu.VMEM((cmax, padded), jnp.float32)],
        ),
        compiler_params=pltpu.CompilerParams(
            dimension_semantics=("parallel",)),
    )(x.reshape(B, C, HW), ln1w, ln1b, qkv1_w, qkv2_w9, scale, proj_w,
      ln2w, ln2b, pin_w, dw_w9, pout_w)
    return out.reshape(B, C, H, W)


# ----------------------------- parameter init ------------------------------- #

def init_params(key, dim, heads, ffn_expansion_factor):
    hidden = int(dim * ffn_expansion_factor)
    ks = jax.random.split(key, 11)

    def conv_w(k, o, i, kh, kw):                 # PyTorch default conv init bound
        bound = 1.0 / (i * kh * kw) ** 0.5
        return jax.random.uniform(k, (o, i, kh, kw), jnp.float32, -bound, bound)

    return dict(
        ln1_w=1.0 + 0.1 * jax.random.normal(ks[0], (dim,), jnp.float32),
        ln1_b=0.1 * jax.random.normal(ks[1], (dim,), jnp.float32),
        qkv1=conv_w(ks[2], 3 * dim, dim, 1, 1),
        qkv2=conv_w(ks[3], 3 * dim, 3 * dim, 3, 3),
        scale=1.0 + 0.1 * jax.random.normal(ks[4], (heads,), jnp.float32),
        proj=conv_w(ks[5], dim, dim, 1, 1),
        ln2_w=1.0 + 0.1 * jax.random.normal(ks[6], (dim,), jnp.float32),
        ln2_b=0.1 * jax.random.normal(ks[7], (dim,), jnp.float32),
        pin=conv_w(ks[8], 2 * hidden, dim, 1, 1),
        dw=conv_w(ks[9], 2 * hidden, 2, 3, 3),   # grouped: groups=hidden -> I/g=2
        pout=conv_w(ks[10], dim, hidden, 1, 1),
    )


# ---------------------------- pure-JAX reference ----------------------------- #

def base_feature_extraction_ref(x, params, num_heads):
    B, C, H, W = x.shape
    heads = _adjust_num_heads(C, num_heads)
    head_c = C // heads
    hidden = params["pout"].shape[1]
    HP = jax.lax.Precision.HIGHEST

    def conv(t, w, pad, groups=1):
        return jax.lax.conv_general_dilated(
            t, w, window_strides=(1, 1), padding=((pad, pad), (pad, pad)),
            dimension_numbers=("NCHW", "OIHW", "NCHW"),
            feature_group_count=groups, precision=HP)

    def ln(t, w, b):
        mu = jnp.mean(t, axis=1, keepdims=True)
        var = jnp.mean((t - mu) ** 2, axis=1, keepdims=True)
        return ((t - mu) / jnp.sqrt(var + 1e-5) * w.reshape(1, -1, 1, 1)
                + b.reshape(1, -1, 1, 1))

    # attention branch
    n1 = ln(x, params["ln1_w"], params["ln1_b"])
    qkv = conv(conv(n1, params["qkv1"], 0), params["qkv2"], 1)
    q, k, v = jnp.split(qkv, 3, axis=1)
    q = q.reshape(B, heads, head_c, H * W)
    k = k.reshape(B, heads, head_c, H * W)
    v = v.reshape(B, heads, head_c, H * W)
    q = q / jnp.maximum(jnp.sqrt(jnp.sum(q * q, -1, keepdims=True)), 1e-12)
    k = k / jnp.maximum(jnp.sqrt(jnp.sum(k * k, -1, keepdims=True)), 1e-12)
    attn = jnp.einsum("bhcs,bhds->bhcd", q, k, precision=HP)
    attn = attn * params["scale"].reshape(1, heads, 1, 1)
    attn = jax.nn.softmax(attn, axis=-1)
    out = jnp.einsum("bhcd,bhds->bhcs", attn, v, precision=HP)
    out = conv(out.reshape(B, C, H, W), params["proj"], 0)
    x = x + out

    # MLP branch
    n2 = ln(x, params["ln2_w"], params["ln2_b"])
    t = conv(n2, params["pin"], 0)
    t = conv(t, params["dw"], 1, groups=hidden)
    a, b2 = jnp.split(t, 2, axis=1)
    g = jax.nn.gelu(a, approximate=True) * b2
    return x + conv(g, params["pout"], 0)


# ------------------------------------ main ----------------------------------- #

if __name__ == "__main__":
    key = jax.random.PRNGKey(0)
    B, C, H, W = 2, 4, 16, 16
    num_heads, ffn_expansion_factor = 2, 2     # qkv_bias=False (no conv biases)

    heads = _adjust_num_heads(C, num_heads)
    x = jax.random.normal(jax.random.fold_in(key, 1), (B, C, H, W), jnp.float32)
    params = init_params(jax.random.fold_in(key, 2), C, heads,
                         ffn_expansion_factor)

    out = jax.block_until_ready(base_feature_extraction(x, params, num_heads))
    ref = jax.block_until_ready(base_feature_extraction_ref(x, params, num_heads))

    assert out.shape == (B, C, H, W), out.shape
    max_abs = float(jnp.max(jnp.abs(out - ref)))
    rel = max_abs / (float(jnp.max(jnp.abs(ref))) + 1e-8)
    assert rel < 1e-2, f"mismatch vs reference: max_abs={max_abs} rel={rel}"
    print("KERNEL_OK")
</pallas_src>

<mosaic_0001>
module attributes {stable_mosaic.version = 11 : i64} {
  func.func @_base_feature_kernel(%arg0: i32, %arg1: memref<1x4x256xf32, #tpu.memory_space<vmem>>, %arg2: memref<4x1xf32, #tpu.memory_space<vmem>>, %arg3: memref<4x1xf32, #tpu.memory_space<vmem>>, %arg4: memref<12x4xf32, #tpu.memory_space<vmem>>, %arg5: memref<9x12x12xf32, #tpu.memory_space<vmem>>, %arg6: memref<2x1xf32, #tpu.memory_space<vmem>>, %arg7: memref<4x4xf32, #tpu.memory_space<vmem>>, %arg8: memref<4x1xf32, #tpu.memory_space<vmem>>, %arg9: memref<4x1xf32, #tpu.memory_space<vmem>>, %arg10: memref<16x4xf32, #tpu.memory_space<vmem>>, %arg11: memref<9x16x16xf32, #tpu.memory_space<vmem>>, %arg12: memref<4x8xf32, #tpu.memory_space<vmem>>, %arg13: memref<1x4x256xf32, #tpu.memory_space<vmem>>, %arg14: memref<16x512xf32, #tpu.memory_space<vmem>>) attributes {dimension_semantics = [#tpu.dimension_semantics<parallel>], iteration_bounds = array<i64: 2>, scalar_prefetch = 0 : i64, scratch_operands = 1 : i64, tpu.core_type = #tpu.core_type<tc>, window_params = [{transform_indices = @transform_0, window_bounds = array<i64: 1, 4, 256>}, {pipeline_mode = #tpu.pipeline_mode<synchronous>, transform_indices = @transform_1, window_bounds = array<i64: 4, 1>}, {pipeline_mode = #tpu.pipeline_mode<synchronous>, transform_indices = @transform_2, window_bounds = array<i64: 4, 1>}, {pipeline_mode = #tpu.pipeline_mode<synchronous>, transform_indices = @transform_3, window_bounds = array<i64: 12, 4>}, {pipeline_mode = #tpu.pipeline_mode<synchronous>, transform_indices = @transform_4, window_bounds = array<i64: 9, 12, 12>}, {pipeline_mode = #tpu.pipeline_mode<synchronous>, transform_indices = @transform_5, window_bounds = array<i64: 2, 1>}, {pipeline_mode = #tpu.pipeline_mode<synchronous>, transform_indices = @transform_6, window_bounds = array<i64: 4, 4>}, {pipeline_mode = #tpu.pipeline_mode<synchronous>, transform_indices = @transform_7, window_bounds = array<i64: 4, 1>}, {pipeline_mode = #tpu.pipeline_mode<synchronous>, transform_indices = @transform_8, window_bounds = array<i64: 4, 1>}, {pipeline_mode = #tpu.pipeline_mode<synchronous>, transform_indices = @transform_9, window_bounds = array<i64: 16, 4>}, {pipeline_mode = #tpu.pipeline_mode<synchronous>, transform_indices = @transform_10, window_bounds = array<i64: 9, 16, 16>}, {pipeline_mode = #tpu.pipeline_mode<synchronous>, transform_indices = @transform_11, window_bounds = array<i64: 4, 8>}, {transform_indices = @transform_12, window_bounds = array<i64: 1, 4, 256>}]} {
    %c0 = arith.constant 0 : index
    %c0_0 = arith.constant 0 : index
    %c0_1 = arith.constant 0 : index
    %0 = vector.load %arg1[%c0, %c0_0, %c0_1] : memref<1x4x256xf32, #tpu.memory_space<vmem>>, vector<1x4x256xf32>
    %1 = vector.shape_cast %0 : vector<1x4x256xf32> to vector<4x256xf32>
    %2 = tpu.iota {dimensions = array<i32: 1>} : vector<1x256xi32>
    %c16_i32 = arith.constant 16 : i32
    %c0_i32 = arith.constant 0 : i32
    %3 = arith.cmpi eq, %c16_i32, %c0_i32 : i32
    %c1_i32 = arith.constant 1 : i32
    %4 = arith.select %3, %c1_i32, %c16_i32 : i32
    %5 = vector.broadcast %4 : i32 to vector<1x256xi32>
    %6 = arith.remsi %2, %5 : vector<1x256xi32>
    %c0_i32_2 = arith.constant 0 : i32
    %7 = vector.broadcast %c0_i32_2 : i32 to vector<1x256xi32>
    %8 = arith.cmpi ne, %6, %7 : vector<1x256xi32>
    %c0_i32_3 = arith.constant 0 : i32
    %9 = vector.broadcast %c0_i32_3 : i32 to vector<1x256xi32>
    %10 = arith.cmpi slt, %6, %9 : vector<1x256xi32>
    %c0_i32_4 = arith.constant 0 : i32
    %11 = arith.cmpi slt, %4, %c0_i32_4 : i32
    %12 = vector.broadcast %11 : i1 to vector<1x256xi1>
    %13 = vector.broadcast %12 : vector<1x256xi1> to vector<1x256xi1>
    %14 = arith.xori %10, %13 : vector<1x256xi1>
    %15 = arith.andi %14, %8 : vector<1x256xi1>
    %16 = vector.broadcast %4 : i32 to vector<1x256xi32>
    %17 = arith.addi %6, %16 : vector<1x256xi32>
    %18 = arith.select %15, %17, %6 : vector<1x256xi1>, vector<1x256xi32>
    %c0_i32_5 = arith.constant 0 : i32
    %19 = vector.broadcast %c0_i32_5 : i32 to vector<1x256xi32>
    %20 = arith.cmpi sgt, %18, %19 : vector<1x256xi32>
    %21 = arith.extui %20 : vector<1x256xi1> to vector<1x256xi32>
    %22 = arith.sitofp %21 : vector<1x256xi32> to vector<1x256xf32>
    %c15_i32 = arith.constant 15 : i32
    %23 = vector.broadcast %c15_i32 : i32 to vector<1x256xi32>
    %24 = arith.cmpi slt, %18, %23 : vector<1x256xi32>
    %25 = arith.extui %24 : vector<1x256xi1> to vector<1x256xi32>
    %26 = arith.sitofp %25 : vector<1x256xi32> to vector<1x256xf32>
    %cst = arith.constant dense<0.000000e+00> : vector<256xf32>
    %27 = vector.multi_reduction <add>, %1, %cst [0] : vector<4x256xf32> to vector<256xf32>
    %28 = vector.shape_cast %27 : vector<256xf32> to vector<1x256xf32>
    %cst_6 = arith.constant 4.000000e+00 : f32
    %29 = vector.broadcast %cst_6 : f32 to vector<1x256xf32>
    %30 = arith.divf %28, %29 : vector<1x256xf32>
    %31 = vector.broadcast %30 : vector<1x256xf32> to vector<4x256xf32>
    %32 = arith.subf %1, %31 : vector<4x256xf32>
    %33 = arith.mulf %32, %32 : vector<4x256xf32>
    %cst_7 = arith.constant dense<0.000000e+00> : vector<256xf32>
    %34 = vector.multi_reduction <add>, %33, %cst_7 [0] : vector<4x256xf32> to vector<256xf32>
    %35 = vector.shape_cast %34 : vector<256xf32> to vector<1x256xf32>
    %cst_8 = arith.constant 4.000000e+00 : f32
    %36 = vector.broadcast %cst_8 : f32 to vector<1x256xf32>
    %37 = arith.divf %35, %36 : vector<1x256xf32>
    %cst_9 = arith.constant 9.99999974E-6 : f32
    %38 = vector.broadcast %cst_9 : f32 to vector<1x256xf32>
    %39 = arith.addf %37, %38 : vector<1x256xf32>
    %40 = math.rsqrt %39 : vector<1x256xf32>
    %41 = vector.broadcast %40 : vector<1x256xf32> to vector<4x256xf32>
    %42 = arith.mulf %32, %41 : vector<4x256xf32>
    %c0_10 = arith.constant 0 : index
    %c0_11 = arith.constant 0 : index
    %43 = vector.load %arg2[%c0_10, %c0_11] : memref<4x1xf32, #tpu.memory_space<vmem>>, vector<4x1xf32>
    %44 = vector.broadcast %43 : vector<4x1xf32> to vector<4x256xf32>
    %45 = arith.mulf %42, %44 : vector<4x256xf32>
    %c0_12 = arith.constant 0 : index
    %c0_13 = arith.constant 0 : index
    %46 = vector.load %arg3[%c0_12, %c0_13] : memref<4x1xf32, #tpu.memory_space<vmem>>, vector<4x1xf32>
    %47 = vector.broadcast %46 : vector<4x1xf32> to vector<4x256xf32>
    %48 = arith.addf %45, %47 : vector<4x256xf32>
    %c0_14 = arith.constant 0 : index
    %c0_15 = arith.constant 0 : index
    %49 = vector.load %arg4[%c0_14, %c0_15] : memref<12x4xf32, #tpu.memory_space<vmem>>, vector<12x4xf32>
    %cst_16 = arith.constant dense<0.000000e+00> : vector<12x256xf32>
    %50 = tpu.matmul %49, %48, %cst_16 {dimension_numbers = #tpu.dot_dimension_numbers<[1], [0], [0], [1], [0, 0, 1, 1], [], []>} : vector<12x4xf32>, vector<4x256xf32>, vector<12x256xf32> -> vector<12x256xf32>
    %cst_17 = arith.constant 0.000000e+00 : f32
    %51 = vector.broadcast %cst_17 : f32 to vector<12x128xf32>
    %c0_18 = arith.constant 0 : index
    %c0_19 = arith.constant 0 : index
    %52 = vector.load %arg14[%c0_18, %c0_19] : memref<16x512xf32, #tpu.memory_space<vmem>>, vector<12x128xf32>
    tpu.vector_store %arg14[%c0_18, %c0_19], %51 {strides = array<i32>} : memref<16x512xf32, #tpu.memory_space<vmem>>, vector<12x128xf32>,
    %c0_20 = arith.constant 0 : index
    %c384 = arith.constant 384 : index
    %53 = vector.load %arg14[%c0_20, %c384] : memref<16x512xf32, #tpu.memory_space<vmem>>, vector<12x128xf32>
    tpu.vector_store %arg14[%c0_20, %c384], %51 {strides = array<i32>} : memref<16x512xf32, #tpu.memory_space<vmem>>, vector<12x128xf32>,
    %c0_21 = arith.constant 0 : index
    %c128 = arith.constant 128 : index
    %54 = vector.load %arg14[%c0_21, %c128] : memref<16x512xf32, #tpu.memory_space<vmem>>, vector<12x256xf32>
    tpu.vector_store %arg14[%c0_21, %c128], %50 {strides = array<i32>} : memref<16x512xf32, #tpu.memory_space<vmem>>, vector<12x256xf32>,
    %cst_22 = arith.constant 0.000000e+00 : f32
    %55 = vector.broadcast %cst_22 : f32 to vector<12x256xf32>
    %c0_23 = arith.constant 0 : index
    %c111 = arith.constant 111 : index
    %56 = vector.load %arg14[%c0_23, %c111] : memref<16x512xf32, #tpu.memory_space<vmem>>, vector<12x256xf32>
    %57 = vector.broadcast %22 : vector<1x256xf32> to vector<12x256xf32>
    %58 = arith.mulf %56, %57 : vector<12x256xf32>
    %c0_24 = arith.constant 0 : index
    %c0_25 = arith.constant 0 : index
    %c0_26 = arith.constant 0 : index
    %59 = vector.load %arg5[%c0_24, %c0_25, %c0_26] : memref<9x12x12xf32, #tpu.memory_space<vmem>>, vector<1x12x12xf32>
    %60 = vector.shape_cast %59 : vector<1x12x12xf32> to vector<12x12xf32>
    %cst_27 = arith.constant dense<0.000000e+00> : vector<12x256xf32>
    %61 = tpu.matmul %60, %58, %cst_27 {dimension_numbers = #tpu.dot_dimension_numbers<[1], [0], [0], [1], [0, 0, 1, 1], [], []>} : vector<12x12xf32>, vector<12x256xf32>, vector<12x256xf32> -> vector<12x256xf32>
    %62 = arith.addf %55, %61 : vector<12x256xf32>
    %c0_28 = arith.constant 0 : index
    %c112 = arith.constant 112 : index
    %63 = vector.load %arg14[%c0_28, %c112] : memref<16x512xf32, #tpu.memory_space<vmem>>, vector<12x256xf32>
    %c1 = arith.constant 1 : index
    %c0_29 = arith.constant 0 : index
    %c0_30 = arith.constant 0 : index
    %64 = vector.load %arg5[%c1, %c0_29, %c0_30] : memref<9x12x12xf32, #tpu.memory_space<vmem>>, vector<1x12x12xf32>
    %65 = vector.shape_cast %64 : vector<1x12x12xf32> to vector<12x12xf32>
    %cst_31 = arith.constant dense<0.000000e+00> : vector<12x256xf32>
    %66 = tpu.matmul %65, %63, %cst_31 {dimension_numbers = #tpu.dot_dimension_numbers<[1], [0], [0], [1], [0, 0, 1, 1], [], []>} : vector<12x12xf32>, vector<12x256xf32>, vector<12x256xf32> -> vector<12x256xf32>
    %67 = arith.addf %62, %66 : vector<12x256xf32>
    %c0_32 = arith.constant 0 : index
    %c113 = arith.constant 113 : index
    %68 = vector.load %arg14[%c0_32, %c113] : memref<16x512xf32, #tpu.memory_space<vmem>>, vector<12x256xf32>
    %69 = vector.broadcast %26 : vector<1x256xf32> to vector<12x256xf32>
    %70 = arith.mulf %68, %69 : vector<12x256xf32>
    %c2 = arith.constant 2 : index
    %c0_33 = arith.constant 0 : index
    %c0_34 = arith.constant 0 : index
    %71 = vector.load %arg5[%c2, %c0_33, %c0_34] : memref<9x12x12xf32, #tpu.memory_space<vmem>>, vector<1x12x12xf32>
    %72 = vector.shape_cast %71 : vector<1x12x12xf32> to vector<12x12xf32>
    %cst_35 = arith.constant dense<0.000000e+00> : vector<12x256xf32>
    %73 = tpu.matmul %72, %70, %cst_35 {dimension_numbers = #tpu.dot_dimension_numbers<[1], [0], [0], [1], [0, 0, 1, 1], [], []>} : vector<12x12xf32>, vector<12x256xf32>, vector<12x256xf32> -> vector<12x256xf32>
    %74 = arith.addf %67, %73 : vector<12x256xf32>
    %c0_36 = arith.constant 0 : index
    %c127 = arith.constant 127 : index
    %75 = vector.load %arg14[%c0_36, %c127] : memref<16x512xf32, #tpu.memory_space<vmem>>, vector<12x256xf32>
    %76 = vector.broadcast %22 : vector<1x256xf32> to vector<12x256xf32>
    %77 = arith.mulf %75, %76 : vector<12x256xf32>
    %c3 = arith.constant 3 : index
    %c0_37 = arith.constant 0 : index
    %c0_38 = arith.constant 0 : index
    %78 = vector.load %arg5[%c3, %c0_37, %c0_38] : memref<9x12x12xf32, #tpu.memory_space<vmem>>, vector<1x12x12xf32>
    %79 = vector.shape_cast %78 : vector<1x12x12xf32> to vector<12x12xf32>
    %cst_39 = arith.constant dense<0.000000e+00> : vector<12x256xf32>
    %80 = tpu.matmul %79, %77, %cst_39 {dimension_numbers = #tpu.dot_dimension_numbers<[1], [0], [0], [1], [0, 0, 1, 1], [], []>} : vector<12x12xf32>, vector<12x256xf32>, vector<12x256xf32> -> vector<12x256xf32>
    %81 = arith.addf %74, %80 : vector<12x256xf32>
    %c0_40 = arith.constant 0 : index
    %c128_41 = arith.constant 128 : index
    %82 = vector.load %arg14[%c0_40, %c128_41] : memref<16x512xf32, #tpu.memory_space<vmem>>, vector<12x256xf32>
    %c4 = arith.constant 4 : index
    %c0_42 = arith.constant 0 : index
    %c0_43 = arith.constant 0 : index
    %83 = vector.load %arg5[%c4, %c0_42, %c0_43] : memref<9x12x12xf32, #tpu.memory_space<vmem>>, vector<1x12x12xf32>
    %84 = vector.shape_cast %83 : vector<1x12x12xf32> to vector<12x12xf32>
    %cst_44 = arith.constant dense<0.000000e+00> : vector<12x256xf32>
    %85 = tpu.matmul %84, %82, %cst_44 {dimension_numbers = #tpu.dot_dimension_numbers<[1], [0], [0], [1], [0, 0, 1, 1], [], []>} : vector<12x12xf32>, vector<12x256xf32>, vector<12x256xf32> -> vector<12x256xf32>
    %86 = arith.addf %81, %85 : vector<12x256xf32>
    %c0_45 = arith.constant 0 : index
    %c129 = arith.constant 129 : index
    %87 = vector.load %arg14[%c0_45, %c129] : memref<16x512xf32, #tpu.memory_space<vmem>>, vector<12x256xf32>
    %88 = vector.broadcast %26 : vector<1x256xf32> to vector<12x256xf32>
    %89 = arith.mulf %87, %88 : vector<12x256xf32>
    %c5 = arith.constant 5 : index
    %c0_46 = arith.constant 0 : index
    %c0_47 = arith.constant 0 : index
    %90 = vector.load %arg5[%c5, %c0_46, %c0_47] : memref<9x12x12xf32, #tpu.memory_space<vmem>>, vector<1x12x12xf32>
    %91 = vector.shape_cast %90 : vector<1x12x12xf32> to vector<12x12xf32>
    %cst_48 = arith.constant dense<0.000000e+00> : vector<12x256xf32>
    %92 = tpu.matmul %91, %89, %cst_48 {dimension_numbers = #tpu.dot_dimension_numbers<[1], [0], [0], [1], [0, 0, 1, 1], [], []>} : vector<12x12xf32>, vector<12x256xf32>, vector<12x256xf32> -> vector<12x256xf32>
    %93 = arith.addf %86, %92 : vector<12x256xf32>
    %c0_49 = arith.constant 0 : index
    %c143 = arith.constant 143 : index
    %94 = vector.load %arg14[%c0_49, %c143] : memref<16x512xf32, #tpu.memory_space<vmem>>, vector<12x256xf32>
    %95 = vector.broadcast %22 : vector<1x256xf32> to vector<12x256xf32>
    %96 = arith.mulf %94, %95 : vector<12x256xf32>
    %c6 = arith.constant 6 : index
    %c0_50 = arith.constant 0 : index
    %c0_51 = arith.constant 0 : index
    %97 = vector.load %arg5[%c6, %c0_50, %c0_51] : memref<9x12x12xf32, #tpu.memory_space<vmem>>, vector<1x12x12xf32>
    %98 = vector.shape_cast %97 : vector<1x12x12xf32> to vector<12x12xf32>
    %cst_52 = arith.constant dense<0.000000e+00> : vector<12x256xf32>
    %99 = tpu.matmul %98, %96, %cst_52 {dimension_numbers = #tpu.dot_dimension_numbers<[1], [0], [0], [1], [0, 0, 1, 1], [], []>} : vector<12x12xf32>, vector<12x256xf32>, vector<12x256xf32> -> vector<12x256xf32>
    %100 = arith.addf %93, %99 : vector<12x256xf32>
    %c0_53 = arith.constant 0 : index
    %c144 = arith.constant 144 : index
    %101 = vector.load %arg14[%c0_53, %c144] : memref<16x512xf32, #tpu.memory_space<vmem>>, vector<12x256xf32>
    %c7 = arith.constant 7 : index
    %c0_54 = arith.constant 0 : index
    %c0_55 = arith.constant 0 : index
    %102 = vector.load %arg5[%c7, %c0_54, %c0_55] : memref<9x12x12xf32, #tpu.memory_space<vmem>>, vector<1x12x12xf32>
    %103 = vector.shape_cast %102 : vector<1x12x12xf32> to vector<12x12xf32>
    %cst_56 = arith.constant dense<0.000000e+00> : vector<12x256xf32>
    %104 = tpu.matmul %103, %101, %cst_56 {dimension_numbers = #tpu.dot_dimension_numbers<[1], [0], [0], [1], [0, 0, 1, 1], [], []>} : vector<12x12xf32>, vector<12x256xf32>, vector<12x256xf32> -> vector<12x256xf32>
    %105 = arith.addf %100, %104 : vector<12x256xf32>
    %c0_57 = arith.constant 0 : index
    %c145 = arith.constant 145 : index
    %106 = vector.load %arg14[%c0_57, %c145] : memref<16x512xf32, #tpu.memory_space<vmem>>, vector<12x256xf32>
    %107 = vector.broadcast %26 : vector<1x256xf32> to vector<12x256xf32>
    %108 = arith.mulf %106, %107 : vector<12x256xf32>
    %c8 = arith.constant 8 : index
    %c0_58 = arith.constant 0 : index
    %c0_59 = arith.constant 0 : index
    %109 = vector.load %arg5[%c8, %c0_58, %c0_59] : memref<9x12x12xf32, #tpu.memory_space<vmem>>, vector<1x12x12xf32>
    %110 = vector.shape_cast %109 : vector<1x12x12xf32> to vector<12x12xf32>
    %cst_60 = arith.constant dense<0.000000e+00> : vector<12x256xf32>
    %111 = tpu.matmul %110, %108, %cst_60 {dimension_numbers = #tpu.dot_dimension_numbers<[1], [0], [0], [1], [0, 0, 1, 1], [], []>} : vector<12x12xf32>, vector<12x256xf32>, vector<12x256xf32> -> vector<12x256xf32>
    %112 = arith.addf %105, %111 : vector<12x256xf32>
    %c0_61 = arith.constant 0 : index
    %c0_62 = arith.constant 0 : index
    %113 = vector.load %arg6[%c0_61, %c0_62] : memref<2x1xf32, #tpu.memory_space<vmem>>, vector<2x1xf32>
    %c0_63 = arith.constant 0 : index
    %c0_64 = arith.constant 0 : index
    %114 = vector.load %arg7[%c0_63, %c0_64] : memref<4x4xf32, #tpu.memory_space<vmem>>, vector<4x4xf32>
    %cst_65 = arith.constant 0.000000e+00 : f32
    %115 = vector.broadcast %cst_65 : f32 to vector<4x256xf32>
    %116 = vector.extract_strided_slice %112 {offsets = [0, 0], sizes = [2, 256], strides = [1, 1]} : vector<12x256xf32> to vector<2x256xf32>
    %117 = vector.extract_strided_slice %112 {offsets = [4, 0], sizes = [2, 256], strides = [1, 1]} : vector<12x256xf32> to vector<2x256xf32>
    %118 = vector.extract_strided_slice %112 {offsets = [8, 0], sizes = [2, 256], strides = [1, 1]} : vector<12x256xf32> to vector<2x256xf32>
    %119 = arith.mulf %116, %116 : vector<2x256xf32>
    %cst_66 = arith.constant dense<0.000000e+00> : vector<2xf32>
    %120 = vector.multi_reduction <add>, %119, %cst_66 [1] : vector<2x256xf32> to vector<2xf32>
    %121 = vector.shape_cast %120 : vector<2xf32> to vector<2x1xf32>
    %122 = math.sqrt %121 : vector<2x1xf32>
    %cst_67 = arith.constant 9.99999996E-13 : f32
    %123 = vector.broadcast %cst_67 : f32 to vector<2x1xf32>
    %124 = arith.maximumf %122, %123 : vector<2x1xf32>
    %125 = vector.broadcast %124 : vector<2x1xf32> to vector<2x256xf32>
    %126 = arith.divf %116, %125 : vector<2x256xf32>
    %127 = arith.mulf %117, %117 : vector<2x256xf32>
    %cst_68 = arith.constant dense<0.000000e+00> : vector<2xf32>
    %128 = vector.multi_reduction <add>, %127, %cst_68 [1] : vector<2x256xf32> to vector<2xf32>
    %129 = vector.shape_cast %128 : vector<2xf32> to vector<2x1xf32>
    %130 = math.sqrt %129 : vector<2x1xf32>
    %cst_69 = arith.constant 9.99999996E-13 : f32
    %131 = vector.broadcast %cst_69 : f32 to vector<2x1xf32>
    %132 = arith.maximumf %130, %131 : vector<2x1xf32>
    %133 = vector.broadcast %132 : vector<2x1xf32> to vector<2x256xf32>
    %134 = arith.divf %117, %133 : vector<2x256xf32>
    %cst_70 = arith.constant dense<0.000000e+00> : vector<2x2xf32>
    %135 = tpu.matmul %126, %134, %cst_70 {dimension_numbers = #tpu.dot_dimension_numbers<[1], [1], [0], [0], [0, 0, 1, 0], [], []>} : vector<2x256xf32>, vector<2x256xf32>, vector<2x2xf32> -> vector<2x2xf32>
    %136 = vector.extract_strided_slice %113 {offsets = [0, 0], sizes = [1, 1], strides = [1, 1]} : vector<2x1xf32> to vector<1x1xf32>
    %137 = vector.broadcast %136 : vector<1x1xf32> to vector<2x2xf32>
    %138 = arith.mulf %135, %137 : vector<2x2xf32>
    %cst_71 = arith.constant dense<0xFF800000> : vector<2xf32>
    %139 = vector.multi_reduction <maximumf>, %138, %cst_71 [1] : vector<2x2xf32> to vector<2xf32>
    %140 = vector.shape_cast %139 : vector<2xf32> to vector<2x1xf32>
    %141 = vector.broadcast %140 : vector<2x1xf32> to vector<2x2xf32>
    %142 = arith.subf %138, %141 : vector<2x2xf32>
    %143 = math.exp %142 : vector<2x2xf32>
    %cst_72 = arith.constant dense<0.000000e+00> : vector<2xf32>
    %144 = vector.multi_reduction <add>, %143, %cst_72 [1] : vector<2x2xf32> to vector<2xf32>
    %145 = vector.shape_cast %144 : vector<2xf32> to vector<2x1xf32>
    %146 = vector.broadcast %145 : vector<2x1xf32> to vector<2x2xf32>
    %147 = arith.divf %143, %146 : vector<2x2xf32>
    %cst_73 = arith.constant dense<0.000000e+00> : vector<2x256xf32>
    %148 = tpu.matmul %147, %118, %cst_73 {dimension_numbers = #tpu.dot_dimension_numbers<[1], [0], [0], [1], [0, 0, 1, 1], [], []>} : vector<2x2xf32>, vector<2x256xf32>, vector<2x256xf32> -> vector<2x256xf32>
    %149 = vector.extract_strided_slice %114 {offsets = [0, 0], sizes = [4, 2], strides = [1, 1]} : vector<4x4xf32> to vector<4x2xf32>
    %cst_74 = arith.constant dense<0.000000e+00> : vector<4x256xf32>
    %150 = tpu.matmul %149, %148, %cst_74 {dimension_numbers = #tpu.dot_dimension_numbers<[1], [0], [0], [1], [0, 0, 1, 1], [], []>} : vector<4x2xf32>, vector<2x256xf32>, vector<4x256xf32> -> vector<4x256xf32>
    %151 = arith.addf %115, %150 : vector<4x256xf32>
    %152 = vector.extract_strided_slice %112 {offsets = [2, 0], sizes = [2, 256], strides = [1, 1]} : vector<12x256xf32> to vector<2x256xf32>
    %153 = vector.extract_strided_slice %112 {offsets = [6, 0], sizes = [2, 256], strides = [1, 1]} : vector<12x256xf32> to vector<2x256xf32>
    %154 = vector.extract_strided_slice %112 {offsets = [10, 0], sizes = [2, 256], strides = [1, 1]} : vector<12x256xf32> to vector<2x256xf32>
    %155 = arith.mulf %152, %152 : vector<2x256xf32>
    %cst_75 = arith.constant dense<0.000000e+00> : vector<2xf32>
    %156 = vector.multi_reduction <add>, %155, %cst_75 [1] : vector<2x256xf32> to vector<2xf32>
    %157 = vector.shape_cast %156 : vector<2xf32> to vector<2x1xf32>
    %158 = math.sqrt %157 : vector<2x1xf32>
    %cst_76 = arith.constant 9.99999996E-13 : f32
    %159 = vector.broadcast %cst_76 : f32 to vector<2x1xf32>
    %160 = arith.maximumf %158, %159 : vector<2x1xf32>
    %161 = vector.broadcast %160 : vector<2x1xf32> to vector<2x256xf32>
    %162 = arith.divf %152, %161 : vector<2x256xf32>
    %163 = arith.mulf %153, %153 : vector<2x256xf32>
    %cst_77 = arith.constant dense<0.000000e+00> : vector<2xf32>
    %164 = vector.multi_reduction <add>, %163, %cst_77 [1] : vector<2x256xf32> to vector<2xf32>
    %165 = vector.shape_cast %164 : vector<2xf32> to vector<2x1xf32>
    %166 = math.sqrt %165 : vector<2x1xf32>
    %cst_78 = arith.constant 9.99999996E-13 : f32
    %167 = vector.broadcast %cst_78 : f32 to vector<2x1xf32>
    %168 = arith.maximumf %166, %167 : vector<2x1xf32>
    %169 = vector.broadcast %168 : vector<2x1xf32> to vector<2x256xf32>
    %170 = arith.divf %153, %169 : vector<2x256xf32>
    %cst_79 = arith.constant dense<0.000000e+00> : vector<2x2xf32>
    %171 = tpu.matmul %162, %170, %cst_79 {dimension_numbers = #tpu.dot_dimension_numbers<[1], [1], [0], [0], [0, 0, 1, 0], [], []>} : vector<2x256xf32>, vector<2x256xf32>, vector<2x2xf32> -> vector<2x2xf32>
    %172 = vector.extract_strided_slice %113 {offsets = [1, 0], sizes = [1, 1], strides = [1, 1]} : vector<2x1xf32> to vector<1x1xf32>
    %173 = vector.broadcast %172 : vector<1x1xf32> to vector<2x2xf32>
    %174 = arith.mulf %171, %173 : vector<2x2xf32>
    %cst_80 = arith.constant dense<0xFF800000> : vector<2xf32>
    %175 = vector.multi_reduction <maximumf>, %174, %cst_80 [1] : vector<2x2xf32> to vector<2xf32>
    %176 = vector.shape_cast %175 : vector<2xf32> to vector<2x1xf32>
    %177 = vector.broadcast %176 : vector<2x1xf32> to vector<2x2xf32>
    %178 = arith.subf %174, %177 : vector<2x2xf32>
    %179 = math.exp %178 : vector<2x2xf32>
    %cst_81 = arith.constant dense<0.000000e+00> : vector<2xf32>
    %180 = vector.multi_reduction <add>, %179, %cst_81 [1] : vector<2x2xf32> to vector<2xf32>
    %181 = vector.shape_cast %180 : vector<2xf32> to vector<2x1xf32>
    %182 = vector.broadcast %181 : vector<2x1xf32> to vector<2x2xf32>
    %183 = arith.divf %179, %182 : vector<2x2xf32>
    %cst_82 = arith.constant dense<0.000000e+00> : vector<2x256xf32>
    %184 = tpu.matmul %183, %154, %cst_82 {dimension_numbers = #tpu.dot_dimension_numbers<[1], [0], [0], [1], [0, 0, 1, 1], [], []>} : vector<2x2xf32>, vector<2x256xf32>, vector<2x256xf32> -> vector<2x256xf32>
    %185 = vector.extract_strided_slice %114 {offsets = [0, 2], sizes = [4, 2], strides = [1, 1]} : vector<4x4xf32> to vector<4x2xf32>
    %cst_83 = arith.constant dense<0.000000e+00> : vector<4x256xf32>
    %186 = tpu.matmul %185, %184, %cst_83 {dimension_numbers = #tpu.dot_dimension_numbers<[1], [0], [0], [1], [0, 0, 1, 1], [], []>} : vector<4x2xf32>, vector<2x256xf32>, vector<4x256xf32> -> vector<4x256xf32>
    %187 = arith.addf %151, %186 : vector<4x256xf32>
    %188 = arith.addf %1, %187 : vector<4x256xf32>
    %cst_84 = arith.constant dense<0.000000e+00> : vector<256xf32>
    %189 = vector.multi_reduction <add>, %188, %cst_84 [0] : vector<4x256xf32> to vector<256xf32>
    %190 = vector.shape_cast %189 : vector<256xf32> to vector<1x256xf32>
    %cst_85 = arith.constant 4.000000e+00 : f32
    %191 = vector.broadcast %cst_85 : f32 to vector<1x256xf32>
    %192 = arith.divf %190, %191 : vector<1x256xf32>
    %193 = vector.broadcast %192 : vector<1x256xf32> to vector<4x256xf32>
    %194 = arith.subf %188, %193 : vector<4x256xf32>
    %195 = arith.mulf %194, %194 : vector<4x256xf32>
    %cst_86 = arith.constant dense<0.000000e+00> : vector<256xf32>
    %196 = vector.multi_reduction <add>, %195, %cst_86 [0] : vector<4x256xf32> to vector<256xf32>
    %197 = vector.shape_cast %196 : vector<256xf32> to vector<1x256xf32>
    %cst_87 = arith.constant 4.000000e+00 : f32
    %198 = vector.broadcast %cst_87 : f32 to vector<1x256xf32>
    %199 = arith.divf %197, %198 : vector<1x256xf32>
    %cst_88 = arith.constant 9.99999974E-6 : f32
    %200 = vector.broadcast %cst_88 : f32 to vector<1x256xf32>
    %201 = arith.addf %199, %200 : vector<1x256xf32>
    %202 = math.rsqrt %201 : vector<1x256xf32>
    %203 = vector.broadcast %202 : vector<1x256xf32> to vector<4x256xf32>
    %204 = arith.mulf %194, %203 : vector<4x256xf32>
    %c0_89 = arith.constant 0 : index
    %c0_90 = arith.constant 0 : index
    %205 = vector.load %arg8[%c0_89, %c0_90] : memref<4x1xf32, #tpu.memory_space<vmem>>, vector<4x1xf32>
    %206 = vector.broadcast %205 : vector<4x1xf32> to vector<4x256xf32>
    %207 = arith.mulf %204, %206 : vector<4x256xf32>
    %c0_91 = arith.constant 0 : index
    %c0_92 = arith.constant 0 : index
    %208 = vector.load %arg9[%c0_91, %c0_92] : memref<4x1xf32, #tpu.memory_space<vmem>>, vector<4x1xf32>
    %209 = vector.broadcast %208 : vector<4x1xf32> to vector<4x256xf32>
    %210 = arith.addf %207, %209 : vector<4x256xf32>
    %c0_93 = arith.constant 0 : index
    %c0_94 = arith.constant 0 : index
    %211 = vector.load %arg10[%c0_93, %c0_94] : memref<16x4xf32, #tpu.memory_space<vmem>>, vector<16x4xf32>
    %cst_95 = arith.constant dense<0.000000e+00> : vector<16x256xf32>
    %212 = tpu.matmul %211, %210, %cst_95 {dimension_numbers = #tpu.dot_dimension_numbers<[1], [0], [0], [1], [0, 0, 1, 1], [], []>} : vector<16x4xf32>, vector<4x256xf32>, vector<16x256xf32> -> vector<16x256xf32>
    %cst_96 = arith.constant 0.000000e+00 : f32
    %213 = vector.broadcast %cst_96 : f32 to vector<16x128xf32>
    %c0_97 = arith.constant 0 : index
    %c0_98 = arith.constant 0 : index
    %214 = vector.load %arg14[%c0_97, %c0_98] : memref<16x512xf32, #tpu.memory_space<vmem>>, vector<16x128xf32>
    tpu.vector_store %arg14[%c0_97, %c0_98], %213 {strides = array<i32>} : memref<16x512xf32, #tpu.memory_space<vmem>>, vector<16x128xf32>,
    %c0_99 = arith.constant 0 : index
    %c384_100 = arith.constant 384 : index
    %215 = vector.load %arg14[%c0_99, %c384_100] : memref<16x512xf32, #tpu.memory_space<vmem>>, vector<16x128xf32>
    tpu.vector_store %arg14[%c0_99, %c384_100], %213 {strides = array<i32>} : memref<16x512xf32, #tpu.memory_space<vmem>>, vector<16x128xf32>,
    %c0_101 = arith.constant 0 : index
    %c128_102 = arith.constant 128 : index
    %216 = vector.load %arg14[%c0_101, %c128_102] : memref<16x512xf32, #tpu.memory_space<vmem>>, vector<16x256xf32>
    tpu.vector_store %arg14[%c0_101, %c128_102], %212 {strides = array<i32>} : memref<16x512xf32, #tpu.memory_space<vmem>>, vector<16x256xf32>,
    %cst_103 = arith.constant 0.000000e+00 : f32
    %217 = vector.broadcast %cst_103 : f32 to vector<16x256xf32>
    %c0_104 = arith.constant 0 : index
    %c111_105 = arith.constant 111 : index
    %218 = vector.load %arg14[%c0_104, %c111_105] : memref<16x512xf32, #tpu.memory_space<vmem>>, vector<16x256xf32>
    %219 = vector.broadcast %22 : vector<1x256xf32> to vector<16x256xf32>
    %220 = arith.mulf %218, %219 : vector<16x256xf32>
    %c0_106 = arith.constant 0 : index
    %c0_107 = arith.constant 0 : index
    %c0_108 = arith.constant 0 : index
    %221 = vector.load %arg11[%c0_106, %c0_107, %c0_108] : memref<9x16x16xf32, #tpu.memory_space<vmem>>, vector<1x16x16xf32>
    %222 = vector.shape_cast %221 : vector<1x16x16xf32> to vector<16x16xf32>
    %cst_109 = arith.constant dense<0.000000e+00> : vector<16x256xf32>
    %223 = tpu.matmul %222, %220, %cst_109 {dimension_numbers = #tpu.dot_dimension_numbers<[1], [0], [0], [1], [0, 0, 1, 1], [], []>} : vector<16x16xf32>, vector<16x256xf32>, vector<16x256xf32> -> vector<16x256xf32>
    %224 = arith.addf %217, %223 : vector<16x256xf32>
    %c0_110 = arith.constant 0 : index
    %c112_111 = arith.constant 112 : index
    %225 = vector.load %arg14[%c0_110, %c112_111] : memref<16x512xf32, #tpu.memory_space<vmem>>, vector<16x256xf32>
    %c1_112 = arith.constant 1 : index
    %c0_113 = arith.constant 0 : index
    %c0_114 = arith.constant 0 : index
    %226 = vector.load %arg11[%c1_112, %c0_113, %c0_114] : memref<9x16x16xf32, #tpu.memory_space<vmem>>, vector<1x16x16xf32>
    %227 = vector.shape_cast %226 : vector<1x16x16xf32> to vector<16x16xf32>
    %cst_115 = arith.constant dense<0.000000e+00> : vector<16x256xf32>
    %228 = tpu.matmul %227, %225, %cst_115 {dimension_numbers = #tpu.dot_dimension_numbers<[1], [0], [0], [1], [0, 0, 1, 1], [], []>} : vector<16x16xf32>, vector<16x256xf32>, vector<16x256xf32> -> vector<16x256xf32>
    %229 = arith.addf %224, %228 : vector<16x256xf32>
    %c0_116 = arith.constant 0 : index
    %c113_117 = arith.constant 113 : index
    %230 = vector.load %arg14[%c0_116, %c113_117] : memref<16x512xf32, #tpu.memory_space<vmem>>, vector<16x256xf32>
    %231 = vector.broadcast %26 : vector<1x256xf32> to vector<16x256xf32>
    %232 = arith.mulf %230, %231 : vector<16x256xf32>
    %c2_118 = arith.constant 2 : index
    %c0_119 = arith.constant 0 : index
    %c0_120 = arith.constant 0 : index
    %233 = vector.load %arg11[%c2_118, %c0_119, %c0_120] : memref<9x16x16xf32, #tpu.memory_space<vmem>>, vector<1x16x16xf32>
    %234 = vector.shape_cast %233 : vector<1x16x16xf32> to vector<16x16xf32>
    %cst_121 = arith.constant dense<0.000000e+00> : vector<16x256xf32>
    %235 = tpu.matmul %234, %232, %cst_121 {dimension_numbers = #tpu.dot_dimension_numbers<[1], [0], [0], [1], [0, 0, 1, 1], [], []>} : vector<16x16xf32>, vector<16x256xf32>, vector<16x256xf32> -> vector<16x256xf32>
    %236 = arith.addf %229, %235 : vector<16x256xf32>
    %c0_122 = arith.constant 0 : index
    %c127_123 = arith.constant 127 : index
    %237 = vector.load %arg14[%c0_122, %c127_123] : memref<16x512xf32, #tpu.memory_space<vmem>>, vector<16x256xf32>
    %238 = vector.broadcast %22 : vector<1x256xf32> to vector<16x256xf32>
    %239 = arith.mulf %237, %238 : vector<16x256xf32>
    %c3_124 = arith.constant 3 : index
    %c0_125 = arith.constant 0 : index
    %c0_126 = arith.constant 0 : index
    %240 = vector.load %arg11[%c3_124, %c0_125, %c0_126] : memref<9x16x16xf32, #tpu.memory_space<vmem>>, vector<1x16x16xf32>
    %241 = vector.shape_cast %240 : vector<1x16x16xf32> to vector<16x16xf32>
    %cst_127 = arith.constant dense<0.000000e+00> : vector<16x256xf32>
    %242 = tpu.matmul %241, %239, %cst_127 {dimension_numbers = #tpu.dot_dimension_numbers<[1], [0], [0], [1], [0, 0, 1, 1], [], []>} : vector<16x16xf32>, vector<16x256xf32>, vector<16x256xf32> -> vector<16x256xf32>
    %243 = arith.addf %236, %242 : vector<16x256xf32>
    %c0_128 = arith.constant 0 : index
    %c128_129 = arith.constant 128 : index
    %244 = vector.load %arg14[%c0_128, %c128_129] : memref<16x512xf32, #tpu.memory_space<vmem>>, vector<16x256xf32>
    %c4_130 = arith.constant 4 : index
    %c0_131 = arith.constant 0 : index
    %c0_132 = arith.constant 0 : index
    %245 = vector.load %arg11[%c4_130, %c0_131, %c0_132] : memref<9x16x16xf32, #tpu.memory_space<vmem>>, vector<1x16x16xf32>
    %246 = vector.shape_cast %245 : vector<1x16x16xf32> to vector<16x16xf32>
    %cst_133 = arith.constant dense<0.000000e+00> : vector<16x256xf32>
    %247 = tpu.matmul %246, %244, %cst_133 {dimension_numbers = #tpu.dot_dimension_numbers<[1], [0], [0], [1], [0, 0, 1, 1], [], []>} : vector<16x16xf32>, vector<16x256xf32>, vector<16x256xf32> -> vector<16x256xf32>
    %248 = arith.addf %243, %247 : vector<16x256xf32>
    %c0_134 = arith.constant 0 : index
    %c129_135 = arith.constant 129 : index
    %249 = vector.load %arg14[%c0_134, %c129_135] : memref<16x512xf32, #tpu.memory_space<vmem>>, vector<16x256xf32>
    %250 = vector.broadcast %26 : vector<1x256xf32> to vector<16x256xf32>
    %251 = arith.mulf %249, %250 : vector<16x256xf32>
    %c5_136 = arith.constant 5 : index
    %c0_137 = arith.constant 0 : index
    %c0_138 = arith.constant 0 : index
    %252 = vector.load %arg11[%c5_136, %c0_137, %c0_138] : memref<9x16x16xf32, #tpu.memory_space<vmem>>, vector<1x16x16xf32>
    %253 = vector.shape_cast %252 : vector<1x16x16xf32> to vector<16x16xf32>
    %cst_139 = arith.constant dense<0.000000e+00> : vector<16x256xf32>
    %254 = tpu.matmul %253, %251, %cst_139 {dimension_numbers = #tpu.dot_dimension_numbers<[1], [0], [0], [1], [0, 0, 1, 1], [], []>} : vector<16x16xf32>, vector<16x256xf32>, vector<16x256xf32> -> vector<16x256xf32>
    %255 = arith.addf %248, %254 : vector<16x256xf32>
    %c0_140 = arith.constant 0 : index
    %c143_141 = arith.constant 143 : index
    %256 = vector.load %arg14[%c0_140, %c143_141] : memref<16x512xf32, #tpu.memory_space<vmem>>, vector<16x256xf32>
    %257 = vector.broadcast %22 : vector<1x256xf32> to vector<16x256xf32>
    %258 = arith.mulf %256, %257 : vector<16x256xf32>
    %c6_142 = arith.constant 6 : index
    %c0_143 = arith.constant 0 : index
    %c0_144 = arith.constant 0 : index
    %259 = vector.load %arg11[%c6_142, %c0_143, %c0_144] : memref<9x16x16xf32, #tpu.memory_space<vmem>>, vector<1x16x16xf32>
    %260 = vector.shape_cast %259 : vector<1x16x16xf32> to vector<16x16xf32>
    %cst_145 = arith.constant dense<0.000000e+00> : vector<16x256xf32>
    %261 = tpu.matmul %260, %258, %cst_145 {dimension_numbers = #tpu.dot_dimension_numbers<[1], [0], [0], [1], [0, 0, 1, 1], [], []>} : vector<16x16xf32>, vector<16x256xf32>, vector<16x256xf32> -> vector<16x256xf32>
    %262 = arith.addf %255, %261 : vector<16x256xf32>
    %c0_146 = arith.constant 0 : index
    %c144_147 = arith.constant 144 : index
    %263 = vector.load %arg14[%c0_146, %c144_147] : memref<16x512xf32, #tpu.memory_space<vmem>>, vector<16x256xf32>
    %c7_148 = arith.constant 7 : index
    %c0_149 = arith.constant 0 : index
    %c0_150 = arith.constant 0 : index
    %264 = vector.load %arg11[%c7_148, %c0_149, %c0_150] : memref<9x16x16xf32, #tpu.memory_space<vmem>>, vector<1x16x16xf32>
    %265 = vector.shape_cast %264 : vector<1x16x16xf32> to vector<16x16xf32>
    %cst_151 = arith.constant dense<0.000000e+00> : vector<16x256xf32>
    %266 = tpu.matmul %265, %263, %cst_151 {dimension_numbers = #tpu.dot_dimension_numbers<[1], [0], [0], [1], [0, 0, 1, 1], [], []>} : vector<16x16xf32>, vector<16x256xf32>, vector<16x256xf32> -> vector<16x256xf32>
    %267 = arith.addf %262, %266 : vector<16x256xf32>
    %c0_152 = arith.constant 0 : index
    %c145_153 = arith.constant 145 : index
    %268 = vector.load %arg14[%c0_152, %c145_153] : memref<16x512xf32, #tpu.memory_space<vmem>>, vector<16x256xf32>
    %269 = vector.broadcast %26 : vector<1x256xf32> to vector<16x256xf32>
    %270 = arith.mulf %268, %269 : vector<16x256xf32>
    %c8_154 = arith.constant 8 : index
    %c0_155 = arith.constant 0 : index
    %c0_156 = arith.constant 0 : index
    %271 = vector.load %arg11[%c8_154, %c0_155, %c0_156] : memref<9x16x16xf32, #tpu.memory_space<vmem>>, vector<1x16x16xf32>
    %272 = vector.shape_cast %271 : vector<1x16x16xf32> to vector<16x16xf32>
    %cst_157 = arith.constant dense<0.000000e+00> : vector<16x256xf32>
    %273 = tpu.matmul %272, %270, %cst_157 {dimension_numbers = #tpu.dot_dimension_numbers<[1], [0], [0], [1], [0, 0, 1, 1], [], []>} : vector<16x16xf32>, vector<16x256xf32>, vector<16x256xf32> -> vector<16x256xf32>
    %274 = arith.addf %267, %273 : vector<16x256xf32>
    %275 = vector.extract_strided_slice %274 {offsets = [0, 0], sizes = [8, 256], strides = [1, 1]} : vector<16x256xf32> to vector<8x256xf32>
    %276 = vector.extract_strided_slice %274 {offsets = [8, 0], sizes = [8, 256], strides = [1, 1]} : vector<16x256xf32> to vector<8x256xf32>
    %cst_158 = arith.constant 5.000000e-01 : f32
    %277 = vector.broadcast %cst_158 : f32 to vector<8x256xf32>
    %278 = arith.mulf %277, %275 : vector<8x256xf32>
    %cst_159 = arith.constant 4.471500e-02 : f32
    %279 = vector.broadcast %cst_159 : f32 to vector<8x256xf32>
    %280 = arith.mulf %279, %275 : vector<8x256xf32>
    %281 = arith.mulf %280, %275 : vector<8x256xf32>
    %282 = arith.mulf %281, %275 : vector<8x256xf32>
    %283 = arith.addf %275, %282 : vector<8x256xf32>
    %cst_160 = arith.constant 0.797884583 : f32
    %284 = vector.broadcast %cst_160 : f32 to vector<8x256xf32>
    %285 = arith.mulf %284, %283 : vector<8x256xf32>
    %286 = math.tanh %285 : vector<8x256xf32>
    %cst_161 = arith.constant 1.000000e+00 : f32
    %287 = vector.broadcast %cst_161 : f32 to vector<8x256xf32>
    %288 = arith.addf %287, %286 : vector<8x256xf32>
    %289 = arith.mulf %278, %288 : vector<8x256xf32>
    %290 = arith.mulf %289, %276 : vector<8x256xf32>
    %c0_162 = arith.constant 0 : index
    %c0_163 = arith.constant 0 : index
    %291 = vector.load %arg12[%c0_162, %c0_163] : memref<4x8xf32, #tpu.memory_space<vmem>>, vector<4x8xf32>
    %cst_164 = arith.constant dense<0.000000e+00> : vector<4x256xf32>
    %292 = tpu.matmul %291, %290, %cst_164 {dimension_numbers = #tpu.dot_dimension_numbers<[1], [0], [0], [1], [0, 0, 1, 1], [], []>} : vector<4x8xf32>, vector<8x256xf32>, vector<4x256xf32> -> vector<4x256xf32>
    %293 = arith.addf %188, %292 : vector<4x256xf32>
    %c0_165 = arith.constant 0 : index
    %c0_166 = arith.constant 0 : index
    %c0_167 = arith.constant 0 : index
    %294 = vector.load %arg13[%c0_165, %c0_166, %c0_167] : memref<1x4x256xf32, #tpu.memory_space<vmem>>, vector<1x4x256xf32>
    %295 = vector.shape_cast %294 : vector<1x4x256xf32> to vector<4x256xf32>
    %296 = vector.shape_cast %293 : vector<4x256xf32> to vector<1x4x256xf32>
    tpu.vector_store %arg13[%c0_165, %c0_166, %c0_167], %296 {strides = array<i32>} : memref<1x4x256xf32, #tpu.memory_space<vmem>>, vector<1x4x256xf32>,
    return
  }
  func.func @transform_0(%arg0: i32) -> (i32, i32, i32) {
    %c0_i32 = arith.constant 0 : i32
    %c0_i32_0 = arith.constant 0 : i32
    %c0_i32_1 = arith.constant 0 : i32
    return %arg0, %c0_i32, %c0_i32_0 : i32, i32, i32
  }
  func.func @transform_1(%arg0: i32) -> (i32, i32) {
    %c0_i32 = arith.constant 0 : i32
    %c0_i32_0 = arith.constant 0 : i32
    %c0_i32_1 = arith.constant 0 : i32
    return %c0_i32, %c0_i32_0 : i32, i32
  }
  func.func @transform_2(%arg0: i32) -> (i32, i32) {
    %c0_i32 = arith.constant 0 : i32
    %c0_i32_0 = arith.constant 0 : i32
    %c0_i32_1 = arith.constant 0 : i32
    return %c0_i32, %c0_i32_0 : i32, i32
  }
  func.func @transform_3(%arg0: i32) -> (i32, i32) {
    %c0_i32 = arith.constant 0 : i32
    %c0_i32_0 = arith.constant 0 : i32
    %c0_i32_1 = arith.constant 0 : i32
    return %c0_i32, %c0_i32_0 : i32, i32
  }
  func.func @transform_4(%arg0: i32) -> (i32, i32, i32) {
    %c0_i32 = arith.constant 0 : i32
    %c0_i32_0 = arith.constant 0 : i32
    %c0_i32_1 = arith.constant 0 : i32
    %c0_i32_2 = arith.constant 0 : i32
    return %c0_i32, %c0_i32_0, %c0_i32_1 : i32, i32, i32
  }
  func.func @transform_5(%arg0: i32) -> (i32, i32) {
    %c0_i32 = arith.constant 0 : i32
    %c0_i32_0 = arith.constant 0 : i32
    %c0_i32_1 = arith.constant 0 : i32
    return %c0_i32, %c0_i32_0 : i32, i32
  }
  func.func @transform_6(%arg0: i32) -> (i32, i32) {
    %c0_i32 = arith.constant 0 : i32
    %c0_i32_0 = arith.constant 0 : i32
    %c0_i32_1 = arith.constant 0 : i32
    return %c0_i32, %c0_i32_0 : i32, i32
  }
  func.func @transform_7(%arg0: i32) -> (i32, i32) {
    %c0_i32 = arith.constant 0 : i32
    %c0_i32_0 = arith.constant 0 : i32
    %c0_i32_1 = arith.constant 0 : i32
    return %c0_i32, %c0_i32_0 : i32, i32
  }
  func.func @transform_8(%arg0: i32) -> (i32, i32) {
    %c0_i32 = arith.constant 0 : i32
    %c0_i32_0 = arith.constant 0 : i32
    %c0_i32_1 = arith.constant 0 : i32
    return %c0_i32, %c0_i32_0 : i32, i32
  }
  func.func @transform_9(%arg0: i32) -> (i32, i32) {
    %c0_i32 = arith.constant 0 : i32
    %c0_i32_0 = arith.constant 0 : i32
    %c0_i32_1 = arith.constant 0 : i32
    return %c0_i32, %c0_i32_0 : i32, i32
  }
  func.func @transform_10(%arg0: i32) -> (i32, i32, i32) {
    %c0_i32 = arith.constant 0 : i32
    %c0_i32_0 = arith.constant 0 : i32
    %c0_i32_1 = arith.constant 0 : i32
    %c0_i32_2 = arith.constant 0 : i32
    return %c0_i32, %c0_i32_0, %c0_i32_1 : i32, i32, i32
  }
  func.func @transform_11(%arg0: i32) -> (i32, i32) {
    %c0_i32 = arith.constant 0 : i32
    %c0_i32_0 = arith.constant 0 : i32
    %c0_i32_1 = arith.constant 0 : i32
    return %c0_i32, %c0_i32_0 : i32, i32
  }
  func.func @transform_12(%arg0: i32) -> (i32, i32, i32) {
    %c0_i32 = arith.constant 0 : i32
    %c0_i32_0 = arith.constant 0 : i32
    %c0_i32_1 = arith.constant 0 : i32
    return %arg0, %c0_i32, %c0_i32_0 : i32, i32, i32
  }
}

</mosaic_0001>

<llo_original>
// kernel: tpu_custom_call.1
$region0: #{tpu_custom_call.1}
  #allocation0 [shape = 'u32[]', space=smem, size = 0x4, offset = 0x4, fixed_abs, tag = 'smem constant byte address 0x4 - core index']
  #allocation1 [shape = 'u32[72,128]{1,0:T(1,128)}', space=vmem, size = 0x9000, scoped, tag = 'internal scratch']
  #allocation2 [shape = 'f32[16,512]{1,0:T(8,128)}', space=vmem, size = 0x8000, scoped, tag = 'scratch operand']
  %s0 = inlined_call_operand.vmem [shape: f32[2,4,256], index: 0, kind: input, shape index: {}]
  %s1 = inlined_call_operand.vmem [shape: f32[4,1], index: 1, kind: input, shape index: {}]
  %s2 = inlined_call_operand.vmem [shape: f32[4,1], index: 2, kind: input, shape index: {}]
  %s3 = inlined_call_operand.vmem [shape: f32[12,4], index: 3, kind: input, shape index: {}]
  %s4 = inlined_call_operand.hbm [shape: f32[9,12,12], index: 4, kind: input, shape index: {}]
  %s5 = inlined_call_operand.vmem [shape: f32[2,1], index: 5, kind: input, shape index: {}]
  %s6 = inlined_call_operand.vmem [shape: f32[4,4], index: 6, kind: input, shape index: {}]
  %s7 = inlined_call_operand.vmem [shape: f32[4,1], index: 7, kind: input, shape index: {}]
  %s8 = inlined_call_operand.vmem [shape: f32[4,1], index: 8, kind: input, shape index: {}]
  %s9 = inlined_call_operand.vmem [shape: f32[16,4], index: 9, kind: input, shape index: {}]
  %s10 = inlined_call_operand.hbm [shape: f32[9,16,16], index: 10, kind: input, shape index: {}]
  %s11 = inlined_call_operand.vmem [shape: f32[4,8], index: 11, kind: input, shape index: {}]
  %s12 = inlined_call_operand.hbm [shape: f32[2,4,256], index: 12, kind: output, shape index: {}]
  %s13 = sld [smem:[#allocation0]]
  $region89: #{tpu_custom_call.1} parent=0
    _
  %s15 = ssub.s32 1, %s13
  %s16 = scalar_select 0, %s15, %s13
  $region1: #{tpu_custom_call.1} parent=0
    #allocation3 [shape = 'u8[73728]{0}', space=vmem, size = 0x12000, scoped, tag = 'input window, operand 4, single buffered']
    #allocation4 [shape = 's32[2]{0}', space=sflag, size = 0x8, scoped, tag = 'scoped memory for tpu_custom_call.1']
    #allocation5 [shape = 's32[2]{0}', space=sflag, size = 0x8, scoped, tag = 'scoped memory for tpu_custom_call.1']
    #allocation6 [shape = 'u8[73728]{0}', space=vmem, size = 0x12000, scoped, tag = 'input window, operand 10, single buffered']
    #allocation7 [shape = 's32[1]{0}', space=sflag, size = 0x4, scoped, tag = 'scoped memory for tpu_custom_call.1']
    #allocation8 [shape = 'u8[8192]{0}', space=vmem, size = 0x2000, scoped, tag = 'output window, operand 0']
    %17 = vsyncpa [#allocation4], 0
    %18 = vsyncpa [#allocation7], 0
    %19 = vsyncpa [#allocation5], 0
    %s20 = scalar_lea.sflag [#allocation5], 1
    %21 = vsyncpa %s20, 0
    loop: start=0, step=1, limit=4
    $region2: #{tpu_custom_call.1} parent=1 // loop_pre_header
      _
    $region3: #{tpu_custom_call.1} parent=1 // loop_header
      %s23 = sphi 0, %s27
      %p24 = scmp.ge.s32.totalorder %s23, 4
      %s33 = sphi 0, %s35
      %s36 = sphi 0, %s33
      %s37 = sphi 0, %s36
      %s53 = sphi 0, %s37
      %s57 = sphi 0, %s57
      %s59 = sphi 0, %s57
      %s60 = sphi 0, %s59
      %s74 = sphi 0, %s60
      %s78 = sphi 0, %s78
      %s80 = sphi 0, %s78
      %s81 = sphi 0, %s80
      %s95 = sphi 0, %s81
      %s99 = sphi 0, %s99
      %s101 = sphi 0, %s99
      %s102 = sphi 0, %s101
      %s116 = sphi 0, %s102
      %s120 = sphi 0, %s120
      %s122 = sphi 0, %s120
      %s123 = sphi 0, %s122
      %s137 = sphi 0, %s123
      %s141 = sphi 0, %s141
      %s143 = sphi 0, %s141
      %s144 = sphi 0, %s143
      %s158 = sphi 0, %s144
      %s162 = sphi 0, %s162
      %s164 = sphi 0, %s162
      %s165 = sphi 0, %s164
      %s179 = sphi 0, %s165
      %s183 = sphi 0, %s183
      %s185 = sphi 0, %s183
      %s186 = sphi 0, %s185
      %s200 = sphi 0, %s186
      %s204 = sphi 0, %s204
      %s206 = sphi 0, %s204
      %s207 = sphi 0, %s206
      %s221 = sphi 0, %s207
      %s225 = sphi 0, %s225
      %s227 = sphi 0, %s225
      %s228 = sphi 0, %s227
      %s242 = sphi 0, %s228
      %s246 = sphi 0, %s246
      %s248 = sphi 0, %s246
      %s249 = sphi 0, %s248
      %s263 = sphi 0, %s249
      %s267 = sphi 0, %s267
      %s269 = sphi 0, %s267
      %s270 = sphi 0, %s269
      %s284 = sphi 0, %s270
      %s290 = sphi 0, %s292
      %s293 = sphi 0, %s290
      %s294 = sphi 0, %s293
      %s310 = sphi 0, %s294
    $region4: #{tpu_custom_call.1} parent=1 // loop_header_branch
      %26 = sbr.rel (%p24) target = $region8
    $region5: #{tpu_custom_call.1} parent=1 // loop_body
      %s28 = ssub.s32 %s23, 1
      %s29 = ssub.s32 %s23, 2
      %s30 = sadd.s32 %s23, 1
      %s31 = ssub.s32 %s23, %s30
      %p32 = scmp.eq.s32.totalorder %s31, 0
      %s34 = sadd.s32 %s33, 1
      %s35 = scalar_select %p32, %s33, %s34
      %p38 = pneg %p32
      %p39 = scmp.eq.s32.totalorder %s23, 1
      %p40 = por %p38, %p39
      %p41 = scmp.ne.s32.totalorder %s33, %s36
      %p42 = scmp.eq.s32.totalorder %s23, 0
      %p43 = por %p41, %p42
      %p44 = scmp.ne.s32.totalorder %s33, %s36
      %p45 = scmp.eq.s32.totalorder %s28, 1
      %p46 = por %p44, %p45
      %p47 = scmp.ne.s32.totalorder %s36, %s37
      %p48 = scmp.eq.s32.totalorder %s28, 0
      %p49 = por %p47, %p48
      %p50 = scmp.ne.s32.totalorder %s36, %s37
      %p51 = scmp.eq.s32.totalorder %s29, 1
      %p52 = por %p50, %p51
      %p54 = scmp.ne.s32.totalorder %s37, %s53
      %p55 = scmp.eq.s32.totalorder %s29, 0
      %p56 = por %p54, %p55
      %s58 = sadd.s32 %s57, 1
      %p61 = scmp.eq.s32.totalorder %s23, 1
      %p62 = scmp.ne.s32.totalorder %s57, %s59
      %p63 = scmp.eq.s32.totalorder %s23, 0
      %p64 = por %p62, %p63
      %p65 = scmp.ne.s32.totalorder %s57, %s59
      %p66 = scmp.eq.s32.totalorder %s28, 1
      %p67 = por %p65, %p66
      %p68 = scmp.ne.s32.totalorder %s59, %s60
      %p69 = scmp.eq.s32.totalorder %s28, 0
      %p70 = por %p68, %p69
      %p71 = scmp.ne.s32.totalorder %s59, %s60
      %p72 = scmp.eq.s32.totalorder %s29, 1
      %p73 = por %p71, %p72
      %p75 = scmp.ne.s32.totalorder %s60, %s74
      %p76 = scmp.eq.s32.totalorder %s29, 0
      %p77 = por %p75, %p76
      %s79 = sadd.s32 %s78, 1
      %p82 = scmp.eq.s32.totalorder %s23, 1
      %p83 = scmp.ne.s32.totalorder %s78, %s80
      %p84 = scmp.eq.s32.totalorder %s23, 0
      %p85 = por %p83, %p84
      %p86 = scmp.ne.s32.totalorder %s78, %s80
      %p87 = scmp.eq.s32.totalorder %s28, 1
      %p88 = por %p86, %p87
      %p89 = scmp.ne.s32.totalorder %s80, %s81
      %p90 = scmp.eq.s32.totalorder %s28, 0
      %p91 = por %p89, %p90
      %p92 = scmp.ne.s32.totalorder %s80, %s81
      %p93 = scmp.eq.s32.totalorder %s29, 1
      %p94 = por %p92, %p93
      %p96 = scmp.ne.s32.totalorder %s81, %s95
      %p97 = scmp.eq.s32.totalorder %s29, 0
      %p98 = por %p96, %p97
      %s100 = sadd.s32 %s99, 1
      %p103 = scmp.eq.s32.totalorder %s23, 1
      %p104 = scmp.ne.s32.totalorder %s99, %s101
      %p105 = scmp.eq.s32.totalorder %s23, 0
      %p106 = por %p104, %p105
      %p107 = scmp.ne.s32.totalorder %s99, %s101
      %p108 = scmp.eq.s32.totalorder %s28, 1
      %p109 = por %p107, %p108
      %p110 = scmp.ne.s32.totalorder %s101, %s102
      %p111 = scmp.eq.s32.totalorder %s28, 0
      %p112 = por %p110, %p111
      %p113 = scmp.ne.s32.totalorder %s101, %s102
      %p114 = scmp.eq.s32.totalorder %s29, 1
      %p115 = por %p113, %p114
      %p117 = scmp.ne.s32.totalorder %s102, %s116
      %p118 = scmp.eq.s32.totalorder %s29, 0
      %p119 = por %p117, %p118
      %s121 = sadd.s32 %s120, 1
      %p124 = scmp.eq.s32.totalorder %s23, 1
      %p125 = scmp.ne.s32.totalorder %s120, %s122
      %p126 = scmp.eq.s32.totalorder %s23, 0
      %p127 = por %p125, %p126
      %p128 = scmp.ne.s32.totalorder %s120, %s122
      %p129 = scmp.eq.s32.totalorder %s28, 1
      %p130 = por %p128, %p129
      %p131 = scmp.ne.s32.totalorder %s122, %s123
      %p132 = scmp.eq.s32.totalorder %s28, 0
      %p133 = por %p131, %p132
      %p134 = scmp.ne.s32.totalorder %s122, %s123
      %p135 = scmp.eq.s32.totalorder %s29, 1
      %p136 = por %p134, %p135
      %p138 = scmp.ne.s32.totalorder %s123, %s137
      %p139 = scmp.eq.s32.totalorder %s29, 0
      %p140 = por %p138, %p139
      %s142 = sadd.s32 %s141, 1
      %p145 = scmp.eq.s32.totalorder %s23, 1
      %p146 = scmp.ne.s32.totalorder %s141, %s143
      %p147 = scmp.eq.s32.totalorder %s23, 0
      %p148 = por %p146, %p147
      %p149 = scmp.ne.s32.totalorder %s141, %s143
      %p150 = scmp.eq.s32.totalorder %s28, 1
      %p151 = por %p149, %p150
      %p152 = scmp.ne.s32.totalorder %s143, %s144
      %p153 = scmp.eq.s32.totalorder %s28, 0
      %p154 = por %p152, %p153
      %p155 = scmp.ne.s32.totalorder %s143, %s144
      %p156 = scmp.eq.s32.totalorder %s29, 1
      %p157 = por %p155, %p156
      %p159 = scmp.ne.s32.totalorder %s144, %s158
      %p160 = scmp.eq.s32.totalorder %s29, 0
      %p161 = por %p159, %p160
      %s163 = sadd.s32 %s162, 1
      %p166 = scmp.eq.s32.totalorder %s23, 1
      %p167 = scmp.ne.s32.totalorder %s162, %s164
      %p168 = scmp.eq.s32.totalorder %s23, 0
      %p169 = por %p167, %p168
      %p170 = scmp.ne.s32.totalorder %s162, %s164
      %p171 = scmp.eq.s32.totalorder %s28, 1
      %p172 = por %p170, %p171
      %p173 = scmp.ne.s32.totalorder %s164, %s165
      %p174 = scmp.eq.s32.totalorder %s28, 0
      %p175 = por %p173, %p174
      %p176 = scmp.ne.s32.totalorder %s164, %s165
      %p177 = scmp.eq.s32.totalorder %s29, 1
      %p178 = por %p176, %p177
      %p180 = scmp.ne.s32.totalorder %s165, %s179
      %p181 = scmp.eq.s32.totalorder %s29, 0
      %p182 = por %p180, %p181
      %s184 = sadd.s32 %s183, 1
      %p187 = scmp.eq.s32.totalorder %s23, 1
      %p188 = scmp.ne.s32.totalorder %s183, %s185
      %p189 = scmp.eq.s32.totalorder %s23, 0
      %p190 = por %p188, %p189
      %p191 = scmp.ne.s32.totalorder %s183, %s185
      %p192 = scmp.eq.s32.totalorder %s28, 1
      %p193 = por %p191, %p192
      %p194 = scmp.ne.s32.totalorder %s185, %s186
      %p195 = scmp.eq.s32.totalorder %s28, 0
      %p196 = por %p194, %p195
      %p197 = scmp.ne.s32.totalorder %s185, %s186
      %p198 = scmp.eq.s32.totalorder %s29, 1
      %p199 = por %p197, %p198
      %p201 = scmp.ne.s32.totalorder %s186, %s200
      %p202 = scmp.eq.s32.totalorder %s29, 0
      %p203 = por %p201, %p202
      %s205 = sadd.s32 %s204, 1
      %p208 = scmp.eq.s32.totalorder %s23, 1
      %p209 = scmp.ne.s32.totalorder %s204, %s206
      %p210 = scmp.eq.s32.totalorder %s23, 0
      %p211 = por %p209, %p210
      %p212 = scmp.ne.s32.totalorder %s204, %s206
      %p213 = scmp.eq.s32.totalorder %s28, 1
      %p214 = por %p212, %p213
      %p215 = scmp.ne.s32.totalorder %s206, %s207
      %p216 = scmp.eq.s32.totalorder %s28, 0
      %p217 = por %p215, %p216
      %p218 = scmp.ne.s32.totalorder %s206, %s207
      %p219 = scmp.eq.s32.totalorder %s29, 1
      %p220 = por %p218, %p219
      %p222 = scmp.ne.s32.totalorder %s207, %s221
      %p223 = scmp.eq.s32.totalorder %s29, 0
      %p224 = por %p222, %p223
      %s226 = sadd.s32 %s225, 1
      %p229 = scmp.eq.s32.totalorder %s23, 1
      %p230 = scmp.ne.s32.totalorder %s225, %s227
      %p231 = scmp.eq.s32.totalorder %s23, 0
      %p232 = por %p230, %p231
      %p233 = scmp.ne.s32.totalorder %s225, %s227
      %p234 = scmp.eq.s32.totalorder %s28, 1
      %p235 = por %p233, %p234
      %p236 = scmp.ne.s32.totalorder %s227, %s228
      %p237 = scmp.eq.s32.totalorder %s28, 0
      %p238 = por %p236, %p237
      %p239 = scmp.ne.s32.totalorder %s227, %s228
      %p240 = scmp.eq.s32.totalorder %s29, 1
      %p241 = por %p239, %p240
      %p243 = scmp.ne.s32.totalorder %s228, %s242
      %p244 = scmp.eq.s32.totalorder %s29, 0
      %p245 = por %p243, %p244
      %s247 = sadd.s32 %s246, 1
      %p250 = scmp.eq.s32.totalorder %s23, 1
      %p251 = scmp.ne.s32.totalorder %s246, %s248
      %p252 = scmp.eq.s32.totalorder %s23, 0
      %p253 = por %p251, %p252
      %p254 = scmp.ne.s32.totalorder %s246, %s248
      %p255 = scmp.eq.s32.totalorder %s28, 1
      %p256 = por %p254, %p255
      %p257 = scmp.ne.s32.totalorder %s248, %s249
      %p258 = scmp.eq.s32.totalorder %s28, 0
      %p259 = por %p257, %p258
      %p260 = scmp.ne.s32.totalorder %s248, %s249
      %p261 = scmp.eq.s32.totalorder %s29, 1
      %p262 = por %p260, %p261
      %p264 = scmp.ne.s32.totalorder %s249, %s263
      %p265 = scmp.eq.s32.totalorder %s29, 0
      %p266 = por %p264, %p265
      %s268 = sadd.s32 %s267, 1
      %p271 = scmp.eq.s32.totalorder %s23, 1
      %p272 = scmp.ne.s32.totalorder %s267, %s269
      %p273 = scmp.eq.s32.totalorder %s23, 0
      %p274 = por %p272, %p273
      %p275 = scmp.ne.s32.totalorder %s267, %s269
      %p276 = scmp.eq.s32.totalorder %s28, 1
      %p277 = por %p275, %p276
      %p278 = scmp.ne.s32.totalorder %s269, %s270
      %p279 = scmp.eq.s32.totalorder %s28, 0
      %p280 = por %p278, %p279
      %p281 = scmp.ne.s32.totalorder %s269, %s270
      %p282 = scmp.eq.s32.totalorder %s29, 1
      %p283 = por %p281, %p282
      %p285 = scmp.ne.s32.totalorder %s270, %s284
      %p286 = scmp.eq.s32.totalorder %s29, 0
      %p287 = por %p285, %p286
      %s288 = ssub.s32 %s23, %s30
      %p289 = scmp.eq.s32.totalorder %s288, 0
      %s291 = sadd.s32 %s290, 1
      %s292 = scalar_select %p289, %s290, %s291
      %p295 = pneg %p289
      %p296 = scmp.eq.s32.totalorder %s23, 1
      %p297 = por %p295, %p296
      %p298 = scmp.ne.s32.totalorder %s290, %s293
      %p299 = scmp.eq.s32.totalorder %s23, 0
      %p300 = por %p298, %p299
      %p301 = scmp.ne.s32.totalorder %s290, %s293
      %p302 = scmp.eq.s32.totalorder %s28, 1
      %p303 = por %p301, %p302
      %p304 = scmp.ne.s32.totalorder %s293, %s294
      %p305 = scmp.eq.s32.totalorder %s28, 0
      %p306 = por %p304, %p305
      %p307 = scmp.ne.s32.totalorder %s293, %s294
      %p308 = scmp.eq.s32.totalorder %s29, 1
      %p309 = por %p307, %p308
      %p311 = scmp.ne.s32.totalorder %s294, %s310
      %p312 = scmp.eq.s32.totalorder %s29, 0
      %p313 = por %p311, %p312
      %p314 = scmp.le.s32.totalorder 1, %s23
      %p315 = scmp.lt.s32.totalorder %s23, 3
      %p316 = pnand %p314, %p315
      %p317 = pneg %p316
      // Predicated region
      $region9: #{tpu_custom_call.1} parent=5 // pred_check
        _
      $region10: #{tpu_custom_call.1} parent=5 // pred_check_branch
        %319 = sbr.rel (%p316) target = $region12
      $region11: #{tpu_custom_call.1} parent=5 // pred_region
        %s320 = ssub.s32 %s23, 1
        // Predicated region
        $region13: #{tpu_custom_call.1} parent=11 // pred_check
          %p321 = pneg %p70
        $region14: #{tpu_custom_call.1} parent=11 // pred_check_branch
          %323 = sbr.rel (%p321) target = $region16
        $region15: #{tpu_custom_call.1} parent=11 // pred_region
          _
        $region16: #{tpu_custom_call.1} parent=11 // pred_fallthru
          _
        // Predicated region
        $region17: #{tpu_custom_call.1} parent=11 // pred_check
          %p324 = pneg %p91
        $region18: #{tpu_custom_call.1} parent=11 // pred_check_branch
          %326 = sbr.rel (%p324) target = $region20
        $region19: #{tpu_custom_call.1} parent=11 // pred_region
          _
        $region20: #{tpu_custom_call.1} parent=11 // pred_fallthru
          _
        // Predicated region
        $region21: #{tpu_custom_call.1} parent=11 // pred_check
          %p327 = pneg %p112
        $region22: #{tpu_custom_call.1} parent=11 // pred_check_branch
          %329 = sbr.rel (%p327) target = $region24
        $region23: #{tpu_custom_call.1} parent=11 // pred_region
          _
        $region24: #{tpu_custom_call.1} parent=11 // pred_fallthru
          _
        // Predicated region
        $region25: #{tpu_custom_call.1} parent=11 // pred_check
          %p330 = pneg %p133
        $region26: #{tpu_custom_call.1} parent=11 // pred_check_branch
          %332 = sbr.rel (%p330) target = $region28
        $region27: #{tpu_custom_call.1} parent=11 // pred_region
          %334 = vsyncadd [#allocation4], 0
          %s335 = sshll.u32 %s4, 4
          %s336 = int_to_ptr.hbm [resolvable:$true] %s335
          %s337 = sshll.u32 [#allocation3], 4
          %s338 = int_to_ptr.vmem [resolvable:$true] %s337
          %343 = dma.hbm_to_vmem [thread:$0]  %s336, 2304, %s338, [#allocation4], 128, 128, 8
        $region28: #{tpu_custom_call.1} parent=11 // pred_fallthru
          _
        // Predicated region
        $region29: #{tpu_custom_call.1} parent=11 // pred_check
          %p344 = pneg %p154
        $region30: #{tpu_custom_call.1} parent=11 // pred_check_branch
          %346 = sbr.rel (%p344) target = $region32
        $region31: #{tpu_custom_call.1} parent=11 // pred_region
          _
        $region32: #{tpu_custom_call.1} parent=11 // pred_fallthru
          _
        // Predicated region
        $region33: #{tpu_custom_call.1} parent=11 // pred_check
          %p347 = pneg %p175
        $region34: #{tpu_custom_call.1} parent=11 // pred_check_branch
          %349 = sbr.rel (%p347) target = $region36
        $region35: #{tpu_custom_call.1} parent=11 // pred_region
          _
        $region36: #{tpu_custom_call.1} parent=11 // pred_fallthru
          _
        // Predicated region
        $region37: #{tpu_custom_call.1} parent=11 // pred_check
          %p350 = pneg %p196
        $region38: #{tpu_custom_call.1} parent=11 // pred_check_branch
          %352 = sbr.rel (%p350) target = $region40
        $region39: #{tpu_custom_call.1} parent=11 // pred_region
          _
        $region40: #{tpu_custom_call.1} parent=11 // pred_fallthru
          _
        // Predicated region
        $region41: #{tpu_custom_call.1} parent=11 // pred_check
          %p353 = pneg %p217
        $region42: #{tpu_custom_call.1} parent=11 // pred_check_branch
          %355 = sbr.rel (%p353) target = $region44
        $region43: #{tpu_custom_call.1} parent=11 // pred_region
          _
        $region44: #{tpu_custom_call.1} parent=11 // pred_fallthru
          _
        // Predicated region
        $region45: #{tpu_custom_call.1} parent=11 // pred_check
          %p356 = pneg %p238
        $region46: #{tpu_custom_call.1} parent=11 // pred_check_branch
          %358 = sbr.rel (%p356) target = $region48
        $region47: #{tpu_custom_call.1} parent=11 // pred_region
          _
        $region48: #{tpu_custom_call.1} parent=11 // pred_fallthru
          _
        // Predicated region
        $region49: #{tpu_custom_call.1} parent=11 // pred_check
          %p359 = pneg %p259
        $region50: #{tpu_custom_call.1} parent=11 // pred_check_branch
          %361 = sbr.rel (%p359) target = $region52
        $region51: #{tpu_custom_call.1} parent=11 // pred_region
          %363 = vsyncadd [#allocation7], 0
          %s364 = sshll.u32 %s10, 4
          %s365 = int_to_ptr.hbm [resolvable:$true] %s364
          %s366 = sshll.u32 [#allocation6], 4
          %s367 = int_to_ptr.vmem [resolvable:$true] %s366
          %372 = dma.hbm_to_vmem [thread:$0]  %s365, 2304, %s367, [#allocation7], 128, 128, 8
        $region52: #{tpu_custom_call.1} parent=11 // pred_fallthru
          _
        // Predicated region
        $region53: #{tpu_custom_call.1} parent=11 // pred_check
          %p373 = pneg %p280
        $region54: #{tpu_custom_call.1} parent=11 // pred_check_branch
          %375 = sbr.rel (%p373) target = $region56
        $region55: #{tpu_custom_call.1} parent=11 // pred_region
          _
        $region56: #{tpu_custom_call.1} parent=11 // pred_fallthru
          _
      $region12: #{tpu_custom_call.1} parent=5 // pred_fallthru
        _
      %p376 = scmp.lt.s32.totalorder %s23, 2
      // Predicated region
      $region57: #{tpu_custom_call.1} parent=5 // pred_check
        %p377 = pneg %p376
      $region58: #{tpu_custom_call.1} parent=5 // pred_check_branch
        %379 = sbr.rel (%p377) target = $region60
      $region59: #{tpu_custom_call.1} parent=5 // pred_region
        // Predicated region
        $region61: #{tpu_custom_call.1} parent=59 // pred_check
          %p380 = pneg %p43
        $region62: #{tpu_custom_call.1} parent=59 // pred_check_branch
          %382 = sbr.rel (%p380) target = $region64
        $region63: #{tpu_custom_call.1} parent=59 // pred_region
          %p383 = scmp.lt.s32.totalorder %s23, 1
          %s384 = scalar_select %p383, %s23, 1
          %s385 = smul.addr %s384, 2
          %s386 = smul.addr %s385, 4
          %s387 = scalar_lea.vmem %s0, %s386
        $region64: #{tpu_custom_call.1} parent=59 // pred_fallthru
          _
      $region60: #{tpu_custom_call.1} parent=5 // pred_fallthru
        _
      %p388 = scmp.le.s32.totalorder 1, %s23
      %p389 = scmp.lt.s32.totalorder %s23, 3
      %p390 = pnand %p388, %p389
      %p391 = pneg %p390
      // Predicated region
      $region65: #{tpu_custom_call.1} parent=5 // pred_check
        _
      $region66: #{tpu_custom_call.1} parent=5 // pred_check_branch
        %393 = sbr.rel (%p390) target = $region68
      $region67: #{tpu_custom_call.1} parent=5 // pred_region
        %s394 = ssub.s32 %s23, 1
        // Predicated region
        $region69: #{tpu_custom_call.1} parent=67 // pred_check
          %p395 = pneg %p133
        $region70: #{tpu_custom_call.1} parent=67 // pred_check_branch
          %397 = sbr.rel (%p395) target = $region72
        $region71: #{tpu_custom_call.1} parent=67 // pred_region
          %399 = dma.done [#allocation4], 2304
        $region72: #{tpu_custom_call.1} parent=67 // pred_fallthru
          _
        // Predicated region
        $region73: #{tpu_custom_call.1} parent=67 // pred_check
          %p400 = pneg %p259
        $region74: #{tpu_custom_call.1} parent=67 // pred_check_branch
          %402 = sbr.rel (%p400) target = $region76
        $region75: #{tpu_custom_call.1} parent=67 // pred_region
          %404 = dma.done [#allocation7], 2304
        $region76: #{tpu_custom_call.1} parent=67 // pred_fallthru
          _
        %p405 = scmp.lt.s32.totalorder %s28, 1
        %s406 = scalar_select %p405, %s28, 1
        %s407 = smul.addr %s406, 2
        %s408 = smul.addr %s407, 4
        %s409 = scalar_lea.vmem %s0, %s408
        %p410 = pneg %p49
        %p411 = pneg %p46
        %p412 = pneg %p70
        %p413 = pneg %p67
        %p414 = pneg %p91
        %p415 = pneg %p88
        %p416 = pneg %p112
        %p417 = pneg %p109
        %p418 = pneg %p133
        %p419 = pneg %p130
        %p420 = pneg %p154
        %p421 = pneg %p151
        %p422 = pneg %p175
        %p423 = pneg %p172
        %p424 = pneg %p196
        %p425 = pneg %p193
        %p426 = pneg %p217
        %p427 = pneg %p214
        %p428 = pneg %p238
        %p429 = pneg %p235
        %p430 = pneg %p259
        %p431 = pneg %p256
        %p432 = pneg %p280
        %p433 = pneg %p277
        %p434 = pneg %p306
        %p435 = pneg %p303
        %s436 = sand.u32 %s293, 1
        %s437 = scalar_lea.sflag [#allocation5], %s436
        %s438 = sand.u32 %s293, 1
        %s439 = smul.addr %s438, 8
        %s440 = scalar_lea.vmem [#allocation8], %s439
        %p441 = scmp.lt.s32.totalorder %s28, 1
        %s442 = scalar_select %p441, %s28, 1
        %s443 = smul.addr %s442, 2
        %s444 = smul.addr %s443, 4
        %s445 = scalar_lea.vmem %s0, %s444
        %v446 = vld [vmem:[%s445] sm:$0xff]
        %v447 = vlaneseq
        %v448 = vand.u32 %v447, 127
        %v449 = vadd.s32 %v448, 128
        %vm450 = vcmp.lt.s32.totalorder %v448, 0
        %v451 = vsub.s32 0, %v448
        %v452 = vsel %vm450, %v451, %v448
        %v453 = vshrl.u32 %v452, 4
        %v454 = vand.u32 %v452, 15
        %v455 = vsub.s32 0, %v454
        %v456 = vsel %vm450, %v455, %v454
        %vm457 = vcmp.lt.s32.totalorder %v449, 0
        %v458 = vsub.s32 0, %v449
        %v459 = vsel %vm457, %v458, %v449
        %v460 = vshrl.u32 %v459, 4
        %v461 = vand.u32 %v459, 15
        %v462 = vsub.s32 0, %v461
        %v463 = vsel %vm457, %v462, %v461
        %vm464 = vcmp.ne.s32.totalorder %v456, 0
        %vm465 = vcmp.ne.s32.totalorder %v463, 0
        %vm466 = vcmp.lt.s32.totalorder %v456, 0
        %vm467 = vcmp.lt.s32.totalorder %v463, 0
        %vm468 = vmand %vm466, %vm464
        %vm469 = vmand %vm467, %vm465
        %v470 = vadd.s32 %v456, 16
        %v471 = vadd.s32 %v463, 16
        %v472 = vsel %vm468, %v470, %v456
        %v473 = vsel %vm469, %v471, %v463
        %vm474 = vcmp.gt.s32.totalorder %v472, 0
        %vm475 = vcmp.gt.s32.totalorder %v473, 0
        %v476 = vsel %vm474, 1, 0
        %v477 = vsel %vm475, 1, 0
        %v478 = vcvt.s32.f32 %v476
        %v479 = vcvt.s32.f32 %v477
        %vm480 = vcmp.lt.s32.totalorder %v472, 15
        %vm481 = vcmp.lt.s32.totalorder %v473, 15
        %v482 = vsel %vm480, 1, 0
        %v483 = vsel %vm481, 1, 0
        %v484 = vcvt.s32.f32 %v482
        %v485 = vcvt.s32.f32 %v483
        %487 = vst [vmem:[#allocation1] ss:$2 sm:$0xff] %v446
        %v488 = vld.sshfl [vmem:[#allocation1] sm:$0xff pattern:$0x75316420]
        %v489 = vld.sshfl [vmem:[#allocation1 + $0x8] sm:$0xff pattern:$0x75316420]
        %vm492 = vcmask 1043456
        %v493 = vsel %vm492, %v488, 0.0
        %v494 = vrot.slane %v493, 4
        %v495 = vadd.f32 %v493, %v494
        %v496 = vrot.slane %v495, 2
        %v497 = vadd.f32 %v495, %v496
        %v498 = vrot.slane %v497, 1
        %v499 = vadd.f32 %v497, %v498
        %v500 = vsel %vm492, %v489, 0.0
        %v501 = vrot.slane %v500, 4
        %v502 = vadd.f32 %v500, %v501
        %v503 = vrot.slane %v502, 2
        %v504 = vadd.f32 %v502, %v503
        %v505 = vrot.slane %v504, 1
        %v506 = vadd.f32 %v504, %v505
        %v507 = vrcp.pop 4.0
        %v508 = vmul.f32 4.0, %v507
        %v509 = vsub.f32 1.0, %v508
        %v510 = vmul.f32 %v507, %v509
        %v511 = vadd.f32 %v507, %v510
        %vm512 = vweird.f32 %v507
        %v513 = vsel %vm512, %v507, %v511
        %v514 = vmul.f32 %v499, %v513
        %v515 = vmul.f32 %v506, %v513
        %v518 = vrot.slane %v515, 4
        %v519 = vsel %vm492, %v514, %v518
        %v521 = vsub.f32 %v446, %v519
        %v522 = vmul.f32 %v521, %v521
        %524 = vst [vmem:[#allocation1] ss:$2 sm:$0xff] %v522
        %v525 = vld.sshfl [vmem:[#allocation1] sm:$0xff pattern:$0x75316420]
        %v526 = vld.sshfl [vmem:[#allocation1 + $0x8] sm:$0xff pattern:$0x75316420]
        %v529 = vsel %vm492, %v525, 0.0
        %v530 = vrot.slane %v529, 4
        %v531 = vadd.f32 %v529, %v530
        %v532 = vrot.slane %v531, 2
        %v533 = vadd.f32 %v531, %v532
        %v534 = vrot.slane %v533, 1
        %v535 = vadd.f32 %v533, %v534
        %v536 = vsel %vm492, %v526, 0.0
        %v537 = vrot.slane %v536, 4
        %v538 = vadd.f32 %v536, %v537
        %v539 = vrot.slane %v538, 2
        %v540 = vadd.f32 %v538, %v539
        %v541 = vrot.slane %v540, 1
        %v542 = vadd.f32 %v540, %v541
        %v543 = vmul.f32 %v535, %v513
        %v544 = vmul.f32 %v542, %v513
        %v545 = vadd.f32 %v543, 1e-05
        %v546 = vadd.f32 %v544, 1e-05
        %v547 = vrsqrt.pop %v545
        %v548 = vmul.f32 %v547, %v545
        %v549 = vmul.f32 %v548, %v547
        %v550 = vmul.f32 0.5, %v549
        %v551 = vsub.f32 1.5, %v550
        %v552 = vmul.f32 %v547, %v551
        %vm553 = vweird.f32 %v545
        %vm554 = vweird.f32 %v547
        %vm555 = vmor %vm553, %vm554
        %v556 = vsel %vm555, %v547, %v552
        %v557 = vrsqrt.pop %v546
        %v558 = vmul.f32 %v557, %v546
        %v559 = vmul.f32 %v558, %v557
        %v560 = vmul.f32 0.5, %v559
        %v561 = vsub.f32 1.5, %v560
        %v562 = vmul.f32 %v557, %v561
        %vm563 = vweird.f32 %v546
        %vm564 = vweird.f32 %v557
        %vm565 = vmor %vm563, %vm564
        %v566 = vsel %vm565, %v557, %v562
        %v569 = vrot.slane %v566, 4
        %v570 = vsel %vm492, %v556, %v569
        %v572 = vmul.f32 %v521, %v570
        %v573 = vld [vmem:[%s1] sm:$0xf]
        %575 = vset.pattern.permute.xlu0 0
        %576 = vperm.xlu0 %575, %v573
        %v577 = vpop.permute.xlu0 %576
        %v579 = vunpack.c.l.s4 839922192
        %v580 = vunpack.c.0.s8 %v579
        %v581 = vperm.slane %v577, %v580
        %v583 = vmul.f32 %v572, %v581
        %v584 = vld [vmem:[%s2] sm:$0xf]
        %586 = vset.pattern.permute.xlu0 0
        %587 = vperm.xlu0 %586, %v584
        %v588 = vpop.permute.xlu0 %587
        %v590 = vunpack.c.l.s4 839922192
        %v591 = vunpack.c.0.s8 %v590
        %v592 = vperm.slane %v588, %v591
        %v594 = vadd.f32 %v583, %v592
        %v595 = vld [vmem:[%s3] sm:$0xff]
        %v596 = vld [vmem:[%s3 + $0x8] sm:$0xf]
        %598 = vst [vmem:[#allocation1] ss:$2 sm:$0xff] %v594
        %v599 = vld.sshfl [vmem:[#allocation1] sm:$0xff pattern:$0x75316420]
        %v600 = vld.sshfl [vmem:[#allocation1 + $0x8] sm:$0xff pattern:$0x75316420]
        %vm601 = vcmask 31744
        %v603 = vsel %vm601, %v595, 0
        %v606 = vsel %vm601, %v596, 0
        %v608 = vsel %vm492, %v599, 0
        %v610 = vsel %vm492, %v600, 0
        %612 = vmatpush.msra.mxu0 0.0
        %613 = vmatpush.msra.mxu0 0.0
        %614 = vmatpush.msra.mxu0 0.0
        %615 = vmatpush.msra.mxu0 0.0
        %616 = vmatpush.msra.mxu0 0.0
        %617 = vmatpush.msra.mxu0 0.0
        %618 = vmatpush.msra.mxu0 0.0
        %619 = vmatpush.msra.mxu0 0.0
        %620 = vmatpush.msra.mxu0 0.0
        %621 = vmatpush.msra.mxu0 0.0
        %622 = vmatpush.msra.mxu0 0.0
        %623 = vmatpush.msra.mxu0 0.0
        %624 = vmatpush.msra.mxu0 0.0
        %625 = vmatpush.msra.mxu0 0.0
        %626 = vmatpush.msra.mxu0 0.0
        %627 = vmatpush.msra.mxu0 %v608
        %628 = vmatmul.f32.gmra.mxu0 %v603
        %v629 = vpop.f32.mrf.mxu0
        %v630 = vadd.f32 0.0, %v629
        %631 = vmatmul.f32.gmra.mxu0 %v606
        %v632 = vpop.f32.mrf.mxu0
        %v633 = vadd.f32 0.0, %v632
        %634 = vdwg.mxu0
        %635 = vmatpush.msra.mxu0 0.0
        %636 = vmatpush.msra.mxu0 0.0
        %637 = vmatpush.msra.mxu0 0.0
        %638 = vmatpush.msra.mxu0 0.0
        %639 = vmatpush.msra.mxu0 0.0
        %640 = vmatpush.msra.mxu0 0.0
        %641 = vmatpush.msra.mxu0 0.0
        %642 = vmatpush.msra.mxu0 0.0
        %643 = vmatpush.msra.mxu0 0.0
        %644 = vmatpush.msra.mxu0 0.0
        %645 = vmatpush.msra.mxu0 0.0
        %646 = vmatpush.msra.mxu0 0.0
        %647 = vmatpush.msra.mxu0 0.0
        %648 = vmatpush.msra.mxu0 0.0
        %649 = vmatpush.msra.mxu0 0.0
        %650 = vmatpush.msra.mxu0 %v610
        %651 = vmatmul.f32.gmra.mxu0 %v603
        %v652 = vpop.f32.mrf.mxu0
        %v653 = vadd.f32 0.0, %v652
        %654 = vmatmul.f32.gmra.mxu0 %v606
        %v655 = vpop.f32.mrf.mxu0
        %v656 = vadd.f32 0.0, %v655
        %657 = vdwg.mxu0
        %658 = vst [vmem:[#allocation2] sm:$0xff] 0.0
        %659 = vst [vmem:[#allocation2 + $0x20] sm:$0xf] 0.0
        %660 = vst [vmem:[#allocation2 + $0x18] sm:$0xff] 0.0
        %661 = vst [vmem:[#allocation2 + $0x38] sm:$0xf] 0.0
        %662 = vst [vmem:[#allocation2 + $0x8] sm:$0xff] %v630
        %663 = vst [vmem:[#allocation2 + $0x10] sm:$0xff] %v653
        %664 = vst [vmem:[#allocation2 + $0x28] sm:$0xf] %v633
        %665 = vst [vmem:[#allocation2 + $0x30] sm:$0xf] %v656
        %v666 = vld [vmem:[#allocation2] sm:$0xff]
        %v667 = vld [vmem:[#allocation2 + $0x8] sm:$0xff]
        %v668 = vld [vmem:[#allocation2 + $0x10] sm:$0xff]
        %v669 = vld [vmem:[#allocation2 + $0x20] sm:$0xf]
        %v670 = vld [vmem:[#allocation2 + $0x28] sm:$0xf]
        %v671 = vld [vmem:[#allocation2 + $0x30] sm:$0xf]
        %674 = vrot.lane.b32.xlu0 %v478, 111
        %v675 = vpop.permute.xlu0 %674
        %676 = vrot.lane.b32.xlu0 %v479, 111
        %v677 = vpop.permute.xlu0 %676
        %vm678 = vcmask 908288
        %v679 = vsel %vm678, %v675, %v677
        %v683 = vmul.f32 %v666, %v675
        %v684 = vmul.f32 %v667, %v679
        %v685 = vmul.f32 %v668, %v677
        %v686 = vmul.f32 %v669, %v675
        %v687 = vmul.f32 %v670, %v679
        %v688 = vmul.f32 %v671, %v677
        %v689 = vld [vmem:[#allocation3] sm:$0xff]
        %v690 = vld [vmem:[#allocation3 + $0x8] sm:$0xf]
        %s691 = scalar_lea.vmem [#allocation3], 16
        %v692 = vld [vmem:[%s691] sm:$0xff]
        %v693 = vld [vmem:[%s691 + $0x8] sm:$0xf]
        %700 = vrot.lane.b32.xlu0 %v666, 16
        %v701 = vpop.permute.xlu0 %700
        %702 = vrot.lane.b32.xlu0 %v667, 16
        %v703 = vpop.permute.xlu0 %702
        %704 = vrot.lane.b32.xlu0 %v668, 16
        %v705 = vpop.permute.xlu0 %704
        %706 = vrot.lane.b32.xlu0 %v669, 16
        %v707 = vpop.permute.xlu0 %706
        %708 = vrot.lane.b32.xlu0 %v670, 16
        %v709 = vpop.permute.xlu0 %708
        %710 = vrot.lane.b32.xlu0 %v671, 16
        %v711 = vpop.permute.xlu0 %710
        %vm712 = vcmask 130048
        %v713 = vsel %vm712, %v701, %v703
        %v714 = vsel %vm712, %v703, %v705
        %v715 = vsel %vm712, %v707, %v709
        %v716 = vsel %vm712, %v709, %v711
        %vm719 = vcmask 97280
        %v721 = vsel %vm719, %v692, 0
        %v724 = vsel %vm719, %v693, 0
        %v726 = vsel %vm492, %v715, 0
        %v728 = vsel %vm492, %v716, 0
        %730 = vmatpush.msra.mxu0 0.0
        %731 = vmatpush.msra.mxu0 0.0
        %732 = vmatpush.msra.mxu0 0.0
        %733 = vmatpush.msra.mxu0 0.0
        %734 = vmatpush.msra.mxu0 0.0
        %735 = vmatpush.msra.mxu0 0.0
        %736 = vmatpush.msra.mxu0 0.0
        %737 = vmatpush.msra.mxu0 0.0
        %738 = vmatpush.msra.mxu0 0.0
        %739 = vmatpush.msra.mxu0 0.0
        %740 = vmatpush.msra.mxu0 0.0
        %741 = vmatpush.msra.mxu0 0.0
        %742 = vmatpush.msra.mxu0 0.0
        %743 = vmatpush.msra.mxu0 0.0
        %744 = vmatpush.msra.mxu0 %v726
        %745 = vmatpush.msra.mxu0 %v713
        %746 = vmatmul.f32.gmra.mxu0 %v721
        %v747 = vpop.f32.mrf.mxu0
        %v748 = vadd.f32 0.0, %v747
        %749 = vmatmul.f32.gmra.mxu0 %v724
        %v750 = vpop.f32.mrf.mxu0
        %v751 = vadd.f32 0.0, %v750
        %752 = vdwg.mxu0
        %753 = vmatpush.msra.mxu0 0.0
        %754 = vmatpush.msra.mxu0 0.0
        %755 = vmatpush.msra.mxu0 0.0
        %756 = vmatpush.msra.mxu0 0.0
        %757 = vmatpush.msra.mxu0 0.0
        %758 = vmatpush.msra.mxu0 0.0
        %759 = vmatpush.msra.mxu0 0.0
        %760 = vmatpush.msra.mxu0 0.0
        %761 = vmatpush.msra.mxu0 0.0
        %762 = vmatpush.msra.mxu0 0.0
        %763 = vmatpush.msra.mxu0 0.0
        %764 = vmatpush.msra.mxu0 0.0
        %765 = vmatpush.msra.mxu0 0.0
        %766 = vmatpush.msra.mxu0 0.0
        %767 = vmatpush.msra.mxu0 %v728
        %768 = vmatpush.msra.mxu0 %v714
        %769 = vmatmul.f32.gmra.mxu0 %v721
        %v770 = vpop.f32.mrf.mxu0
        %v771 = vadd.f32 0.0, %v770
        %772 = vmatmul.f32.gmra.mxu0 %v724
        %v773 = vpop.f32.mrf.mxu0
        %v774 = vadd.f32 0.0, %v773
        %775 = vdwg.mxu0
        %782 = vrot.lane.b32.xlu0 %v683, 17
        %v783 = vpop.permute.xlu0 %782
        %784 = vrot.lane.b32.xlu0 %v684, 17
        %v785 = vpop.permute.xlu0 %784
        %786 = vrot.lane.b32.xlu0 %v685, 17
        %v787 = vpop.permute.xlu0 %786
        %788 = vrot.lane.b32.xlu0 %v686, 17
        %v789 = vpop.permute.xlu0 %788
        %790 = vrot.lane.b32.xlu0 %v687, 17
        %v791 = vpop.permute.xlu0 %790
        %792 = vrot.lane.b32.xlu0 %v688, 17
        %v793 = vpop.permute.xlu0 %792
        %vm794 = vcmask 138240
        %v795 = vsel %vm794, %v783, %v785
        %v796 = vsel %vm794, %v785, %v787
        %v797 = vsel %vm794, %v789, %v791
        %v798 = vsel %vm794, %v791, %v793
        %v802 = vsel %vm719, %v689, 0
        %v805 = vsel %vm719, %v690, 0
        %v807 = vsel %vm492, %v797, 0
        %v809 = vsel %vm492, %v798, 0
        %811 = vmatpush.msra.mxu0 0.0
        %812 = vmatpush.msra.mxu0 0.0
        %813 = vmatpush.msra.mxu0 0.0
        %814 = vmatpush.msra.mxu0 0.0
        %815 = vmatpush.msra.mxu0 0.0
        %816 = vmatpush.msra.mxu0 0.0
        %817 = vmatpush.msra.mxu0 0.0
        %818 = vmatpush.msra.mxu0 0.0
        %819 = vmatpush.msra.mxu0 0.0
        %820 = vmatpush.msra.mxu0 0.0
        %821 = vmatpush.msra.mxu0 0.0
        %822 = vmatpush.msra.mxu0 0.0
        %823 = vmatpush.msra.mxu0 0.0
        %824 = vmatpush.msra.mxu0 0.0
        %825 = vmatpush.msra.mxu0 %v807
        %826 = vmatpush.msra.mxu0 %v795
        %827 = vmatmul.f32.gmra.mxu0 %v802
        %v828 = vpop.f32.mrf.mxu0
        %v829 = vadd.f32 %v748, %v828
        %830 = vmatmul.f32.gmra.mxu0 %v805
        %v831 = vpop.f32.mrf.mxu0
        %v832 = vadd.f32 %v751, %v831
        %833 = vdwg.mxu0
        %834 = vmatpush.msra.mxu0 0.0
        %835 = vmatpush.msra.mxu0 0.0
        %836 = vmatpush.msra.mxu0 0.0
        %837 = vmatpush.msra.mxu0 0.0
        %838 = vmatpush.msra.mxu0 0.0
        %839 = vmatpush.msra.mxu0 0.0
        %840 = vmatpush.msra.mxu0 0.0
        %841 = vmatpush.msra.mxu0 0.0
        %842 = vmatpush.msra.mxu0 0.0
        %843 = vmatpush.msra.mxu0 0.0
        %844 = vmatpush.msra.mxu0 0.0
        %845 = vmatpush.msra.mxu0 0.0
        %846 = vmatpush.msra.mxu0 0.0
        %847 = vmatpush.msra.mxu0 0.0
        %848 = vmatpush.msra.mxu0 %v809
        %849 = vmatpush.msra.mxu0 %v796
        %850 = vmatmul.f32.gmra.mxu0 %v802
        %v851 = vpop.f32.mrf.mxu0
        %v852 = vadd.f32 %v771, %v851
        %853 = vmatmul.f32.gmra.mxu0 %v805
        %v854 = vpop.f32.mrf.mxu0
        %v855 = vadd.f32 %v774, %v854
        %856 = vdwg.mxu0
        %859 = vrot.lane.b32.xlu0 %v484, 113
        %v860 = vpop.permute.xlu0 %859
        %861 = vrot.lane.b32.xlu0 %v485, 113
        %v862 = vpop.permute.xlu0 %861
        %vm863 = vcmask 924672
        %v864 = vsel %vm863, %v860, %v862
        %v868 = vmul.f32 %v666, %v860
        %v869 = vmul.f32 %v667, %v864
        %v870 = vmul.f32 %v668, %v862
        %v871 = vmul.f32 %v669, %v860
        %v872 = vmul.f32 %v670, %v864
        %v873 = vmul.f32 %v671, %v862
        %s874 = scalar_lea.vmem [#allocation3], 32
        %v875 = vld [vmem:[%s874] sm:$0xff]
        %v876 = vld [vmem:[%s874 + $0x8] sm:$0xf]
        %883 = vrot.lane.b32.xlu0 %v868, 15
        %v884 = vpop.permute.xlu0 %883
        %885 = vrot.lane.b32.xlu0 %v869, 15
        %v886 = vpop.permute.xlu0 %885
        %887 = vrot.lane.b32.xlu0 %v870, 15
        %v888 = vpop.permute.xlu0 %887
        %889 = vrot.lane.b32.xlu0 %v871, 15
        %v890 = vpop.permute.xlu0 %889
        %891 = vrot.lane.b32.xlu0 %v872, 15
        %v892 = vpop.permute.xlu0 %891
        %893 = vrot.lane.b32.xlu0 %v873, 15
        %v894 = vpop.permute.xlu0 %893
        %vm895 = vcmask 121856
        %v896 = vsel %vm895, %v884, %v886
        %v897 = vsel %vm895, %v886, %v888
        %v898 = vsel %vm895, %v890, %v892
        %v899 = vsel %vm895, %v892, %v894
        %v903 = vsel %vm719, %v875, 0
        %v906 = vsel %vm719, %v876, 0
        %v908 = vsel %vm492, %v898, 0
        %v910 = vsel %vm492, %v899, 0
        %912 = vmatpush.msra.mxu0 0.0
        %913 = vmatpush.msra.mxu0 0.0
        %914 = vmatpush.msra.mxu0 0.0
        %915 = vmatpush.msra.mxu0 0.0
        %916 = vmatpush.msra.mxu0 0.0
        %917 = vmatpush.msra.mxu0 0.0
        %918 = vmatpush.msra.mxu0 0.0
        %919 = vmatpush.msra.mxu0 0.0
        %920 = vmatpush.msra.mxu0 0.0
        %921 = vmatpush.msra.mxu0 0.0
        %922 = vmatpush.msra.mxu0 0.0
        %923 = vmatpush.msra.mxu0 0.0
        %924 = vmatpush.msra.mxu0 0.0
        %925 = vmatpush.msra.mxu0 0.0
        %926 = vmatpush.msra.mxu0 %v908
        %927 = vmatpush.msra.mxu0 %v896
        %928 = vmatmul.f32.gmra.mxu0 %v903
        %v929 = vpop.f32.mrf.mxu0
        %v930 = vadd.f32 0.0, %v929
        %931 = vmatmul.f32.gmra.mxu0 %v906
        %v932 = vpop.f32.mrf.mxu0
        %v933 = vadd.f32 0.0, %v932
        %934 = vdwg.mxu0
        %935 = vmatpush.msra.mxu0 0.0
        %936 = vmatpush.msra.mxu0 0.0
        %937 = vmatpush.msra.mxu0 0.0
        %938 = vmatpush.msra.mxu0 0.0
        %939 = vmatpush.msra.mxu0 0.0
        %940 = vmatpush.msra.mxu0 0.0
        %941 = vmatpush.msra.mxu0 0.0
        %942 = vmatpush.msra.mxu0 0.0
        %943 = vmatpush.msra.mxu0 0.0
        %944 = vmatpush.msra.mxu0 0.0
        %945 = vmatpush.msra.mxu0 0.0
        %946 = vmatpush.msra.mxu0 0.0
        %947 = vmatpush.msra.mxu0 0.0
        %948 = vmatpush.msra.mxu0 0.0
        %949 = vmatpush.msra.mxu0 %v910
        %950 = vmatpush.msra.mxu0 %v897
        %951 = vmatmul.f32.gmra.mxu0 %v903
        %v952 = vpop.f32.mrf.mxu0
        %v953 = vadd.f32 0.0, %v952
        %954 = vmatmul.f32.gmra.mxu0 %v906
        %v955 = vpop.f32.mrf.mxu0
        %v956 = vadd.f32 0.0, %v955
        %957 = vdwg.mxu0
        %v958 = vadd.f32 %v829, %v930
        %v959 = vadd.f32 %v852, %v953
        %v960 = vadd.f32 %v832, %v933
        %v961 = vadd.f32 %v855, %v956
        %962 = vrot.lane.b32.xlu0 %v478, 127
        %v963 = vpop.permute.xlu0 %962
        %964 = vrot.lane.b32.xlu0 %v479, 127
        %v965 = vpop.permute.xlu0 %964
        %vm966 = vcmask 1039360
        %v967 = vsel %vm966, %v963, %v965
        %v971 = vmul.f32 %v666, %v963
        %v972 = vmul.f32 %v667, %v967
        %v973 = vmul.f32 %v668, %v965
        %v974 = vmul.f32 %v669, %v963
        %v975 = vmul.f32 %v670, %v967
        %v976 = vmul.f32 %v671, %v965
        %s977 = scalar_lea.vmem [#allocation3], 48
        %v978 = vld [vmem:[%s977] sm:$0xff]
        %v979 = vld [vmem:[%s977 + $0x8] sm:$0xf]
        %986 = vrot.lane.b32.xlu0 %v971, 1
        %v987 = vpop.permute.xlu0 %986
        %988 = vrot.lane.b32.xlu0 %v972, 1
        %v989 = vpop.permute.xlu0 %988
        %990 = vrot.lane.b32.xlu0 %v973, 1
        %v991 = vpop.permute.xlu0 %990
        %992 = vrot.lane.b32.xlu0 %v974, 1
        %v993 = vpop.permute.xlu0 %992
        %994 = vrot.lane.b32.xlu0 %v975, 1
        %v995 = vpop.permute.xlu0 %994
        %996 = vrot.lane.b32.xlu0 %v976, 1
        %v997 = vpop.permute.xlu0 %996
        %vm998 = vcmask 7168
        %v999 = vsel %vm998, %v987, %v989
        %v1000 = vsel %vm998, %v989, %v991
        %v1001 = vsel %vm998, %v993, %v995
        %v1002 = vsel %vm998, %v995, %v997
        %v1006 = vsel %vm719, %v978, 0
        %v1009 = vsel %vm719, %v979, 0
        %v1011 = vsel %vm492, %v1001, 0
        %v1013 = vsel %vm492, %v1002, 0
        %1015 = vmatpush.msra.mxu0 0.0
        %1016 = vmatpush.msra.mxu0 0.0
        %1017 = vmatpush.msra.mxu0 0.0
        %1018 = vmatpush.msra.mxu0 0.0
        %1019 = vmatpush.msra.mxu0 0.0
        %1020 = vmatpush.msra.mxu0 0.0
        %1021 = vmatpush.msra.mxu0 0.0
        %1022 = vmatpush.msra.mxu0 0.0
        %1023 = vmatpush.msra.mxu0 0.0
        %1024 = vmatpush.msra.mxu0 0.0
        %1025 = vmatpush.msra.mxu0 0.0
        %1026 = vmatpush.msra.mxu0 0.0
        %1027 = vmatpush.msra.mxu0 0.0
        %1028 = vmatpush.msra.mxu0 0.0
        %1029 = vmatpush.msra.mxu0 %v1011
        %1030 = vmatpush.msra.mxu0 %v999
        %1031 = vmatmul.f32.gmra.mxu0 %v1006
        %v1032 = vpop.f32.mrf.mxu0
        %v1033 = vadd.f32 0.0, %v1032
        %1034 = vmatmul.f32.gmra.mxu0 %v1009
        %v1035 = vpop.f32.mrf.mxu0
        %v1036 = vadd.f32 0.0, %v1035
        %1037 = vdwg.mxu0
        %1038 = vmatpush.msra.mxu0 0.0
        %1039 = vmatpush.msra.mxu0 0.0
        %1040 = vmatpush.msra.mxu0 0.0
        %1041 = vmatpush.msra.mxu0 0.0
        %1042 = vmatpush.msra.mxu0 0.0
        %1043 = vmatpush.msra.mxu0 0.0
        %1044 = vmatpush.msra.mxu0 0.0
        %1045 = vmatpush.msra.mxu0 0.0
        %1046 = vmatpush.msra.mxu0 0.0
        %1047 = vmatpush.msra.mxu0 0.0
        %1048 = vmatpush.msra.mxu0 0.0
        %1049 = vmatpush.msra.mxu0 0.0
        %1050 = vmatpush.msra.mxu0 0.0
        %1051 = vmatpush.msra.mxu0 0.0
        %1052 = vmatpush.msra.mxu0 %v1013
        %1053 = vmatpush.msra.mxu0 %v1000
        %1054 = vmatmul.f32.gmra.mxu0 %v1006
        %v1055 = vpop.f32.mrf.mxu0
        %v1056 = vadd.f32 0.0, %v1055
        %1057 = vmatmul.f32.gmra.mxu0 %v1009
        %v1058 = vpop.f32.mrf.mxu0
        %v1059 = vadd.f32 0.0, %v1058
        %1060 = vdwg.mxu0
        %v1061 = vadd.f32 %v958, %v1033
        %v1062 = vadd.f32 %v959, %v1056
        %v1063 = vadd.f32 %v960, %v1036
        %v1064 = vadd.f32 %v961, %v1059
        %s1065 = scalar_lea.vmem [#allocation3], 64
        %v1066 = vld [vmem:[%s1065] sm:$0xff]
        %v1067 = vld [vmem:[%s1065 + $0x8] sm:$0xf]
        %v1069 = vsel %vm719, %v1066, 0
        %v1072 = vsel %vm719, %v1067, 0
        %v1074 = vsel %vm492, %v670, 0
        %v1076 = vsel %vm492, %v671, 0
        %1078 = vmatpush.msra.mxu0 0.0
        %1079 = vmatpush.msra.mxu0 0.0
        %1080 = vmatpush.msra.mxu0 0.0
        %1081 = vmatpush.msra.mxu0 0.0
        %1082 = vmatpush.msra.mxu0 0.0
        %1083 = vmatpush.msra.mxu0 0.0
        %1084 = vmatpush.msra.mxu0 0.0
        %1085 = vmatpush.msra.mxu0 0.0
        %1086 = vmatpush.msra.mxu0 0.0
        %1087 = vmatpush.msra.mxu0 0.0
        %1088 = vmatpush.msra.mxu0 0.0
        %1089 = vmatpush.msra.mxu0 0.0
        %1090 = vmatpush.msra.mxu0 0.0
        %1091 = vmatpush.msra.mxu0 0.0
        %1092 = vmatpush.msra.mxu0 %v1074
        %1093 = vmatpush.msra.mxu0 %v667
        %1094 = vmatmul.f32.gmra.mxu0 %v1069
        %v1095 = vpop.f32.mrf.mxu0
        %v1096 = vadd.f32 0.0, %v1095
        %1097 = vmatmul.f32.gmra.mxu0 %v1072
        %v1098 = vpop.f32.mrf.mxu0
        %v1099 = vadd.f32 0.0, %v1098
        %1100 = vdwg.mxu0
        %1101 = vmatpush.msra.mxu0 0.0
        %1102 = vmatpush.msra.mxu0 0.0
        %1103 = vmatpush.msra.mxu0 0.0
        %1104 = vmatpush.msra.mxu0 0.0
        %1105 = vmatpush.msra.mxu0 0.0
        %1106 = vmatpush.msra.mxu0 0.0
        %1107 = vmatpush.msra.mxu0 0.0
        %1108 = vmatpush.msra.mxu0 0.0
        %1109 = vmatpush.msra.mxu0 0.0
        %1110 = vmatpush.msra.mxu0 0.0
        %1111 = vmatpush.msra.mxu0 0.0
        %1112 = vmatpush.msra.mxu0 0.0
        %1113 = vmatpush.msra.mxu0 0.0
        %1114 = vmatpush.msra.mxu0 0.0
        %1115 = vmatpush.msra.mxu0 %v1076
        %1116 = vmatpush.msra.mxu0 %v668
        %1117 = vmatmul.f32.gmra.mxu0 %v1069
        %v1118 = vpop.f32.mrf.mxu0
        %v1119 = vadd.f32 0.0, %v1118
        %1120 = vmatmul.f32.gmra.mxu0 %v1072
        %v1121 = vpop.f32.mrf.mxu0
        %v1122 = vadd.f32 0.0, %v1121
        %1123 = vdwg.mxu0
        %v1124 = vadd.f32 %v1061, %v1096
        %v1125 = vadd.f32 %v1062, %v1119
        %v1126 = vadd.f32 %v1063, %v1099
        %v1127 = vadd.f32 %v1064, %v1122
        %v1128 = vld [vmem:[#allocation2 + $0x8] sm:$0xff]
        %v1129 = vld [vmem:[#allocation2 + $0x10] sm:$0xff]
        %v1130 = vld [vmem:[#allocation2 + $0x18] sm:$0xff]
        %v1131 = vld [vmem:[#allocation2 + $0x28] sm:$0xf]
        %v1132 = vld [vmem:[#allocation2 + $0x30] sm:$0xf]
        %v1133 = vld [vmem:[#allocation2 + $0x38] sm:$0xf]
        %1134 = vrot.lane.b32.xlu0 %v484, 1
        %v1135 = vpop.permute.xlu0 %1134
        %1136 = vrot.lane.b32.xlu0 %v485, 1
        %v1137 = vpop.permute.xlu0 %1136
        %v1138 = vsel %vm998, %v1135, %v1137
        %v1142 = vmul.f32 %v1128, %v1135
        %v1143 = vmul.f32 %v1129, %v1138
        %v1144 = vmul.f32 %v1130, %v1137
        %v1145 = vmul.f32 %v1131, %v1135
        %v1146 = vmul.f32 %v1132, %v1138
        %v1147 = vmul.f32 %v1133, %v1137
        %s1148 = scalar_lea.vmem [#allocation3], 80
        %v1149 = vld [vmem:[%s1148] sm:$0xff]
        %v1150 = vld [vmem:[%s1148 + $0x8] sm:$0xf]
        %1157 = vrot.lane.b32.xlu0 %v1142, 127
        %v1158 = vpop.permute.xlu0 %1157
        %1159 = vrot.lane.b32.xlu0 %v1143, 127
        %v1160 = vpop.permute.xlu0 %1159
        %1161 = vrot.lane.b32.xlu0 %v1144, 127
        %v1162 = vpop.permute.xlu0 %1161
        %1163 = vrot.lane.b32.xlu0 %v1145, 127
        %v1164 = vpop.permute.xlu0 %1163
        %1165 = vrot.lane.b32.xlu0 %v1146, 127
        %v1166 = vpop.permute.xlu0 %1165
        %1167 = vrot.lane.b32.xlu0 %v1147, 127
        %v1168 = vpop.permute.xlu0 %1167
        %v1169 = vsel %vm966, %v1158, %v1160
        %v1170 = vsel %vm966, %v1160, %v1162
        %v1171 = vsel %vm966, %v1164, %v1166
        %v1172 = vsel %vm966, %v1166, %v1168
        %v1176 = vsel %vm719, %v1149, 0
        %v1179 = vsel %vm719, %v1150, 0
        %v1181 = vsel %vm492, %v1171, 0
        %v1183 = vsel %vm492, %v1172, 0
        %1185 = vmatpush.msra.mxu0 0.0
        %1186 = vmatpush.msra.mxu0 0.0
        %1187 = vmatpush.msra.mxu0 0.0
        %1188 = vmatpush.msra.mxu0 0.0
        %1189 = vmatpush.msra.mxu0 0.0
        %1190 = vmatpush.msra.mxu0 0.0
        %1191 = vmatpush.msra.mxu0 0.0
        %1192 = vmatpush.msra.mxu0 0.0
        %1193 = vmatpush.msra.mxu0 0.0
        %1194 = vmatpush.msra.mxu0 0.0
        %1195 = vmatpush.msra.mxu0 0.0
        %1196 = vmatpush.msra.mxu0 0.0
        %1197 = vmatpush.msra.mxu0 0.0
        %1198 = vmatpush.msra.mxu0 0.0
        %1199 = vmatpush.msra.mxu0 %v1181
        %1200 = vmatpush.msra.mxu0 %v1169
        %1201 = vmatmul.f32.gmra.mxu0 %v1176
        %v1202 = vpop.f32.mrf.mxu0
        %v1203 = vadd.f32 0.0, %v1202
        %1204 = vmatmul.f32.gmra.mxu0 %v1179
        %v1205 = vpop.f32.mrf.mxu0
        %v1206 = vadd.f32 0.0, %v1205
        %1207 = vdwg.mxu0
        %1208 = vmatpush.msra.mxu0 0.0
        %1209 = vmatpush.msra.mxu0 0.0
        %1210 = vmatpush.msra.mxu0 0.0
        %1211 = vmatpush.msra.mxu0 0.0
        %1212 = vmatpush.msra.mxu0 0.0
        %1213 = vmatpush.msra.mxu0 0.0
        %1214 = vmatpush.msra.mxu0 0.0
        %1215 = vmatpush.msra.mxu0 0.0
        %1216 = vmatpush.msra.mxu0 0.0
        %1217 = vmatpush.msra.mxu0 0.0
        %1218 = vmatpush.msra.mxu0 0.0
        %1219 = vmatpush.msra.mxu0 0.0
        %1220 = vmatpush.msra.mxu0 0.0
        %1221 = vmatpush.msra.mxu0 0.0
        %1222 = vmatpush.msra.mxu0 %v1183
        %1223 = vmatpush.msra.mxu0 %v1170
        %1224 = vmatmul.f32.gmra.mxu0 %v1176
        %v1225 = vpop.f32.mrf.mxu0
        %v1226 = vadd.f32 0.0, %v1225
        %1227 = vmatmul.f32.gmra.mxu0 %v1179
        %v1228 = vpop.f32.mrf.mxu0
        %v1229 = vadd.f32 0.0, %v1228
        %1230 = vdwg.mxu0
        %v1231 = vadd.f32 %v1124, %v1203
        %v1232 = vadd.f32 %v1125, %v1226
        %v1233 = vadd.f32 %v1126, %v1206
        %v1234 = vadd.f32 %v1127, %v1229
        %1235 = vrot.lane.b32.xlu0 %v478, 15
        %v1236 = vpop.permute.xlu0 %1235
        %1237 = vrot.lane.b32.xlu0 %v479, 15
        %v1238 = vpop.permute.xlu0 %1237
        %v1239 = vsel %vm895, %v1236, %v1238
        %v1243 = vmul.f32 %v1128, %v1236
        %v1244 = vmul.f32 %v1129, %v1239
        %v1245 = vmul.f32 %v1130, %v1238
        %v1246 = vmul.f32 %v1131, %v1236
        %v1247 = vmul.f32 %v1132, %v1239
        %v1248 = vmul.f32 %v1133, %v1238
        %s1249 = scalar_lea.vmem [#allocation3], 96
        %v1250 = vld [vmem:[%s1249] sm:$0xff]
        %v1251 = vld [vmem:[%s1249 + $0x8] sm:$0xf]
        %1258 = vrot.lane.b32.xlu0 %v1243, 113
        %v1259 = vpop.permute.xlu0 %1258
        %1260 = vrot.lane.b32.xlu0 %v1244, 113
        %v1261 = vpop.permute.xlu0 %1260
        %1262 = vrot.lane.b32.xlu0 %v1245, 113
        %v1263 = vpop.permute.xlu0 %1262
        %1264 = vrot.lane.b32.xlu0 %v1246, 113
        %v1265 = vpop.permute.xlu0 %1264
        %1266 = vrot.lane.b32.xlu0 %v1247, 113
        %v1267 = vpop.permute.xlu0 %1266
        %1268 = vrot.lane.b32.xlu0 %v1248, 113
        %v1269 = vpop.permute.xlu0 %1268
        %v1270 = vsel %vm863, %v1259, %v1261
        %v1271 = vsel %vm863, %v1261, %v1263
        %v1272 = vsel %vm863, %v1265, %v1267
        %v1273 = vsel %vm863, %v1267, %v1269
        %v1277 = vsel %vm719, %v1250, 0
        %v1280 = vsel %vm719, %v1251, 0
        %v1282 = vsel %vm492, %v1272, 0
        %v1284 = vsel %vm492, %v1273, 0
        %1286 = vmatpush.msra.mxu0 0.0
        %1287 = vmatpush.msra.mxu0 0.0
        %1288 = vmatpush.msra.mxu0 0.0
        %1289 = vmatpush.msra.mxu0 0.0
        %1290 = vmatpush.msra.mxu0 0.0
        %1291 = vmatpush.msra.mxu0 0.0
        %1292 = vmatpush.msra.mxu0 0.0
        %1293 = vmatpush.msra.mxu0 0.0
        %1294 = vmatpush.msra.mxu0 0.0
        %1295 = vmatpush.msra.mxu0 0.0
        %1296 = vmatpush.msra.mxu0 0.0
        %1297 = vmatpush.msra.mxu0 0.0
        %1298 = vmatpush.msra.mxu0 0.0
        %1299 = vmatpush.msra.mxu0 0.0
        %1300 = vmatpush.msra.mxu0 %v1282
        %1301 = vmatpush.msra.mxu0 %v1270
        %1302 = vmatmul.f32.gmra.mxu0 %v1277
        %v1303 = vpop.f32.mrf.mxu0
        %v1304 = vadd.f32 0.0, %v1303
        %1305 = vmatmul.f32.gmra.mxu0 %v1280
        %v1306 = vpop.f32.mrf.mxu0
        %v1307 = vadd.f32 0.0, %v1306
        %1308 = vdwg.mxu0
        %1309 = vmatpush.msra.mxu0 0.0
        %1310 = vmatpush.msra.mxu0 0.0
        %1311 = vmatpush.msra.mxu0 0.0
        %1312 = vmatpush.msra.mxu0 0.0
        %1313 = vmatpush.msra.mxu0 0.0
        %1314 = vmatpush.msra.mxu0 0.0
        %1315 = vmatpush.msra.mxu0 0.0
        %1316 = vmatpush.msra.mxu0 0.0
        %1317 = vmatpush.msra.mxu0 0.0
        %1318 = vmatpush.msra.mxu0 0.0
        %1319 = vmatpush.msra.mxu0 0.0
        %1320 = vmatpush.msra.mxu0 0.0
        %1321 = vmatpush.msra.mxu0 0.0
        %1322 = vmatpush.msra.mxu0 0.0
        %1323 = vmatpush.msra.mxu0 %v1284
        %1324 = vmatpush.msra.mxu0 %v1271
        %1325 = vmatmul.f32.gmra.mxu0 %v1277
        %v1326 = vpop.f32.mrf.mxu0
        %v1327 = vadd.f32 0.0, %v1326
        %1328 = vmatmul.f32.gmra.mxu0 %v1280
        %v1329 = vpop.f32.mrf.mxu0
        %v1330 = vadd.f32 0.0, %v1329
        %1331 = vdwg.mxu0
        %v1332 = vadd.f32 %v1231, %v1304
        %v1333 = vadd.f32 %v1232, %v1327
        %v1334 = vadd.f32 %v1233, %v1307
        %v1335 = vadd.f32 %v1234, %v1330
        %s1336 = scalar_lea.vmem [#allocation3], 112
        %v1337 = vld [vmem:[%s1336] sm:$0xff]
        %v1338 = vld [vmem:[%s1336 + $0x8] sm:$0xf]
        %1345 = vrot.lane.b32.xlu0 %v1128, 112
        %v1346 = vpop.permute.xlu0 %1345
        %1347 = vrot.lane.b32.xlu0 %v1129, 112
        %v1348 = vpop.permute.xlu0 %1347
        %1349 = vrot.lane.b32.xlu0 %v1130, 112
        %v1350 = vpop.permute.xlu0 %1349
        %1351 = vrot.lane.b32.xlu0 %v1131, 112
        %v1352 = vpop.permute.xlu0 %1351
        %1353 = vrot.lane.b32.xlu0 %v1132, 112
        %v1354 = vpop.permute.xlu0 %1353
        %1355 = vrot.lane.b32.xlu0 %v1133, 112
        %v1356 = vpop.permute.xlu0 %1355
        %vm1357 = vcmask 916480
        %v1358 = vsel %vm1357, %v1346, %v1348
        %v1359 = vsel %vm1357, %v1348, %v1350
        %v1360 = vsel %vm1357, %v1352, %v1354
        %v1361 = vsel %vm1357, %v1354, %v1356
        %v1365 = vsel %vm719, %v1337, 0
        %v1368 = vsel %vm719, %v1338, 0
        %v1370 = vsel %vm492, %v1360, 0
        %v1372 = vsel %vm492, %v1361, 0
        %1374 = vmatpush.msra.mxu0 0.0
        %1375 = vmatpush.msra.mxu0 0.0
        %1376 = vmatpush.msra.mxu0 0.0
        %1377 = vmatpush.msra.mxu0 0.0
        %1378 = vmatpush.msra.mxu0 0.0
        %1379 = vmatpush.msra.mxu0 0.0
        %1380 = vmatpush.msra.mxu0 0.0
        %1381 = vmatpush.msra.mxu0 0.0
        %1382 = vmatpush.msra.mxu0 0.0
        %1383 = vmatpush.msra.mxu0 0.0
        %1384 = vmatpush.msra.mxu0 0.0
        %1385 = vmatpush.msra.mxu0 0.0
        %1386 = vmatpush.msra.mxu0 0.0
        %1387 = vmatpush.msra.mxu0 0.0
        %1388 = vmatpush.msra.mxu0 %v1370
        %1389 = vmatpush.msra.mxu0 %v1358
        %1390 = vmatmul.f32.gmra.mxu0 %v1365
        %v1391 = vpop.f32.mrf.mxu0
        %v1392 = vadd.f32 0.0, %v1391
        %1393 = vmatmul.f32.gmra.mxu0 %v1368
        %v1394 = vpop.f32.mrf.mxu0
        %v1395 = vadd.f32 0.0, %v1394
        %1396 = vdwg.mxu0
        %1397 = vmatpush.msra.mxu0 0.0
        %1398 = vmatpush.msra.mxu0 0.0
        %1399 = vmatpush.msra.mxu0 0.0
        %1400 = vmatpush.msra.mxu0 0.0
        %1401 = vmatpush.msra.mxu0 0.0
        %1402 = vmatpush.msra.mxu0 0.0
        %1403 = vmatpush.msra.mxu0 0.0
        %1404 = vmatpush.msra.mxu0 0.0
        %1405 = vmatpush.msra.mxu0 0.0
        %1406 = vmatpush.msra.mxu0 0.0
        %1407 = vmatpush.msra.mxu0 0.0
        %1408 = vmatpush.msra.mxu0 0.0
        %1409 = vmatpush.msra.mxu0 0.0
        %1410 = vmatpush.msra.mxu0 0.0
        %1411 = vmatpush.msra.mxu0 %v1372
        %1412 = vmatpush.msra.mxu0 %v1359
        %1413 = vmatmul.f32.gmra.mxu0 %v1365
        %v1414 = vpop.f32.mrf.mxu0
        %v1415 = vadd.f32 0.0, %v1414
        %1416 = vmatmul.f32.gmra.mxu0 %v1368
        %v1417 = vpop.f32.mrf.mxu0
        %v1418 = vadd.f32 0.0, %v1417
        %1419 = vdwg.mxu0
        %v1420 = vadd.f32 %v1332, %v1392
        %v1421 = vadd.f32 %v1333, %v1415
        %v1422 = vadd.f32 %v1334, %v1395
        %v1423 = vadd.f32 %v1335, %v1418
        %1424 = vrot.lane.b32.xlu0 %v484, 17
        %v1425 = vpop.permute.xlu0 %1424
        %1426 = vrot.lane.b32.xlu0 %v485, 17
        %v1427 = vpop.permute.xlu0 %1426
        %v1428 = vsel %vm794, %v1425, %v1427
        %v1432 = vmul.f32 %v1128, %v1425
        %v1433 = vmul.f32 %v1129, %v1428
        %v1434 = vmul.f32 %v1130, %v1427
        %v1435 = vmul.f32 %v1131, %v1425
        %v1436 = vmul.f32 %v1132, %v1428
        %v1437 = vmul.f32 %v1133, %v1427
        %s1438 = scalar_lea.vmem [#allocation3], 128
        %v1439 = vld [vmem:[%s1438] sm:$0xff]
        %v1440 = vld [vmem:[%s1438 + $0x8] sm:$0xf]
        %1447 = vrot.lane.b32.xlu0 %v1432, 111
        %v1448 = vpop.permute.xlu0 %1447
        %1449 = vrot.lane.b32.xlu0 %v1433, 111
        %v1450 = vpop.permute.xlu0 %1449
        %1451 = vrot.lane.b32.xlu0 %v1434, 111
        %v1452 = vpop.permute.xlu0 %1451
        %1453 = vrot.lane.b32.xlu0 %v1435, 111
        %v1454 = vpop.permute.xlu0 %1453
        %1455 = vrot.lane.b32.xlu0 %v1436, 111
        %v1456 = vpop.permute.xlu0 %1455
        %1457 = vrot.lane.b32.xlu0 %v1437, 111
        %v1458 = vpop.permute.xlu0 %1457
        %v1459 = vsel %vm678, %v1448, %v1450
        %v1460 = vsel %vm678, %v1450, %v1452
        %v1461 = vsel %vm678, %v1454, %v1456
        %v1462 = vsel %vm678, %v1456, %v1458
        %v1466 = vsel %vm719, %v1439, 0
        %v1469 = vsel %vm719, %v1440, 0
        %v1471 = vsel %vm492, %v1461, 0
        %v1473 = vsel %vm492, %v1462, 0
        %1475 = vmatpush.msra.mxu0 0.0
        %1476 = vmatpush.msra.mxu0 0.0
        %1477 = vmatpush.msra.mxu0 0.0
        %1478 = vmatpush.msra.mxu0 0.0
        %1479 = vmatpush.msra.mxu0 0.0
        %1480 = vmatpush.msra.mxu0 0.0
        %1481 = vmatpush.msra.mxu0 0.0
        %1482 = vmatpush.msra.mxu0 0.0
        %1483 = vmatpush.msra.mxu0 0.0
        %1484 = vmatpush.msra.mxu0 0.0
        %1485 = vmatpush.msra.mxu0 0.0
        %1486 = vmatpush.msra.mxu0 0.0
        %1487 = vmatpush.msra.mxu0 0.0
        %1488 = vmatpush.msra.mxu0 0.0
        %1489 = vmatpush.msra.mxu0 %v1471
        %1490 = vmatpush.msra.mxu0 %v1459
        %1491 = vmatmul.f32.gmra.mxu0 %v1466
        %v1492 = vpop.f32.mrf.mxu0
        %v1493 = vadd.f32 0.0, %v1492
        %1494 = vmatmul.f32.gmra.mxu0 %v1469
        %v1495 = vpop.f32.mrf.mxu0
        %v1496 = vadd.f32 0.0, %v1495
        %1497 = vdwg.mxu0
        %1498 = vmatpush.msra.mxu0 0.0
        %1499 = vmatpush.msra.mxu0 0.0
        %1500 = vmatpush.msra.mxu0 0.0
        %1501 = vmatpush.msra.mxu0 0.0
        %1502 = vmatpush.msra.mxu0 0.0
        %1503 = vmatpush.msra.mxu0 0.0
        %1504 = vmatpush.msra.mxu0 0.0
        %1505 = vmatpush.msra.mxu0 0.0
        %1506 = vmatpush.msra.mxu0 0.0
        %1507 = vmatpush.msra.mxu0 0.0
        %1508 = vmatpush.msra.mxu0 0.0
        %1509 = vmatpush.msra.mxu0 0.0
        %1510 = vmatpush.msra.mxu0 0.0
        %1511 = vmatpush.msra.mxu0 0.0
        %1512 = vmatpush.msra.mxu0 %v1473
        %1513 = vmatpush.msra.mxu0 %v1460
        %1514 = vmatmul.f32.gmra.mxu0 %v1466
        %v1515 = vpop.f32.mrf.mxu0
        %v1516 = vadd.f32 0.0, %v1515
        %1517 = vmatmul.f32.gmra.mxu0 %v1469
        %v1518 = vpop.f32.mrf.mxu0
        %v1519 = vadd.f32 0.0, %v1518
        %1520 = vdwg.mxu0
        %v1521 = vadd.f32 %v1420, %v1493
        %v1522 = vadd.f32 %v1421, %v1516
        %v1523 = vadd.f32 %v1422, %v1496
        %v1524 = vadd.f32 %v1423, %v1519
        %v1525 = vld [vmem:[%s5] sm:$0x3]
        %v1526 = vld [vmem:[%s6] sm:$0xf]
        %v1527 = vmul.f32 %v1521, %v1521
        %v1528 = vmul.f32 %v1522, %v1522
        %vm1529 = vcmask 1041408
        %v1530 = vsel %vm1529, %v1527, 0.0
        %v1531 = vsel %vm1529, %v1528, 0.0
        %v1532 = vadd.f32 %v1530, %v1531
        %1533 = vadd.xlane.f32.xlu0 %v1532
        %v1534 = vpop.xlane.xlu0 %1533
        %v1535 = vrsqrt.pop %v1534
        %v1536 = vmul.f32 %v1535, %v1534
        %v1537 = vmul.f32 %v1536, %v1535
        %v1538 = vmul.f32 0.5, %v1537
        %v1539 = vsub.f32 1.5, %v1538
        %v1540 = vmul.f32 %v1535, %v1539
        %v1541 = vmul.f32 %v1534, %v1540
        %vm1542 = vcmp.eq.f32.partialorder %v1534, inf
        %v1543 = vsel %vm1542, %v1534, %v1541
        %vm1544 = vcmp.eq.f32.partialorder %v1534, 0.0
        %v1545 = vand.u32 %v1534, 2147483648
        %v1546 = vsel %vm1544, %v1545, %v1543
        %v1547 = vmax.f32 %v1546, 1e-12
        %v1548 = vrcp.pop %v1547
        %v1549 = vmul.f32 %v1547, %v1548
        %v1550 = vsub.f32 1.0, %v1549
        %v1551 = vmul.f32 %v1548, %v1550
        %v1552 = vadd.f32 %v1548, %v1551
        %vm1553 = vweird.f32 %v1547
        %vm1554 = vweird.f32 %v1548
        %vm1555 = vmor %vm1553, %vm1554
        %v1556 = vsel %vm1555, %v1548, %v1552
        %v1557 = vand.u32 2147483647, %v1547
        %vm1558 = vcmp.eq.f32.partialorder %v1557, 8.507059e+37
        %v1559 = vand.u32 %v1547, 2147483648
        %v1560 = vor.u32 1.1754944e-38, %v1559
        %v1561 = vsel %vm1558, %v1560, %v1556
        %v1562 = vmul.f32 %v1521, %v1561
        %v1563 = vmul.f32 %v1522, %v1561
        %vm1564 = vcmask 1045508
        %v1565 = vsel %vm1564, %v1527, 0.0
        %v1566 = vsel %vm1564, %v1528, 0.0
        %v1567 = vadd.f32 %v1565, %v1566
        %1568 = vadd.xlane.f32.xlu0 %v1567
        %v1569 = vpop.xlane.xlu0 %1568
        %v1570 = vrsqrt.pop %v1569
        %v1571 = vmul.f32 %v1570, %v1569
        %v1572 = vmul.f32 %v1571, %v1570
        %v1573 = vmul.f32 0.5, %v1572
        %v1574 = vsub.f32 1.5, %v1573
        %v1575 = vmul.f32 %v1570, %v1574
        %v1576 = vmul.f32 %v1569, %v1575
        %vm1577 = vcmp.eq.f32.partialorder %v1569, inf
        %v1578 = vsel %vm1577, %v1569, %v1576
        %vm1579 = vcmp.eq.f32.partialorder %v1569, 0.0
        %v1580 = vand.u32 %v1569, 2147483648
        %v1581 = vsel %vm1579, %v1580, %v1578
        %v1582 = vmax.f32 %v1581, 1e-12
        %v1583 = vrcp.pop %v1582
        %v1584 = vmul.f32 %v1582, %v1583
        %v1585 = vsub.f32 1.0, %v1584
        %v1586 = vmul.f32 %v1583, %v1585
        %v1587 = vadd.f32 %v1583, %v1586
        %vm1588 = vweird.f32 %v1582
        %vm1589 = vweird.f32 %v1583
        %vm1590 = vmor %vm1588, %vm1589
        %v1591 = vsel %vm1590, %v1583, %v1587
        %v1592 = vand.u32 2147483647, %v1582
        %vm1593 = vcmp.eq.f32.partialorder %v1592, 8.507059e+37
        %v1594 = vand.u32 %v1582, 2147483648
        %v1595 = vor.u32 1.1754944e-38, %v1594
        %v1596 = vsel %vm1593, %v1595, %v1591
        %v1597 = vmul.f32 %v1521, %v1596
        %v1598 = vmul.f32 %v1522, %v1596
        %v1601 = vrot.slane %v1597, 4
        %v1602 = vrot.slane %v1598, 4
        %1605 = vmatpush.xpose.msra.mxu0 0.0
        %1606 = vmatpush.xpose.msra.mxu0 0.0
        %1607 = vmatpush.xpose.msra.mxu0 0.0
        %1608 = vmatpush.xpose.msra.mxu0 0.0
        %1609 = vmatpush.xpose.msra.mxu0 0.0
        %1610 = vmatpush.xpose.msra.mxu0 0.0
        %1611 = vmatpush.xpose.msra.mxu0 0.0
        %1612 = vmatpush.xpose.msra.mxu0 0.0
        %1613 = vmatpush.xpose.msra.mxu0 0.0
        %1614 = vmatpush.xpose.msra.mxu0 0.0
        %1615 = vmatpush.xpose.msra.mxu0 0.0
        %1616 = vmatpush.xpose.msra.mxu0 0.0
        %1617 = vmatpush.xpose.msra.mxu0 0.0
        %1618 = vmatpush.xpose.msra.mxu0 0.0
        %1619 = vmatpush.xpose.msra.mxu0 0.0
        %1620 = vmatpush.xpose.msra.mxu0 %v1601
        %1621 = vmatmul.f32.gmra.mxu0 %v1562
        %v1622 = vpop.f32.mrf.mxu0
        %v1623 = vadd.f32 0.0, %v1622
        %1624 = vdwg.mxu0
        %1625 = vmatpush.xpose.msra.mxu0 0.0
        %1626 = vmatpush.xpose.msra.mxu0 0.0
        %1627 = vmatpush.xpose.msra.mxu0 0.0
        %1628 = vmatpush.xpose.msra.mxu0 0.0
        %1629 = vmatpush.xpose.msra.mxu0 0.0
        %1630 = vmatpush.xpose.msra.mxu0 0.0
        %1631 = vmatpush.xpose.msra.mxu0 0.0
        %1632 = vmatpush.xpose.msra.mxu0 0.0
        %1633 = vmatpush.xpose.msra.mxu0 0.0
        %1634 = vmatpush.xpose.msra.mxu0 0.0
        %1635 = vmatpush.xpose.msra.mxu0 0.0
        %1636 = vmatpush.xpose.msra.mxu0 0.0
        %1637 = vmatpush.xpose.msra.mxu0 0.0
        %1638 = vmatpush.xpose.msra.mxu0 0.0
        %1639 = vmatpush.xpose.msra.mxu0 0.0
        %1640 = vmatpush.xpose.msra.mxu0 %v1602
        %1641 = vmatmul.f32.gmra.mxu0 %v1563
        %v1642 = vpop.f32.mrf.mxu0
        %v1643 = vadd.f32 %v1623, %v1642
        %1644 = vdwg.mxu0
        %s1646 = vtos %v1525
        %v1647 = vstv %s1646
        %v1649 = vmul.f32 %v1643, %v1647
        %vm1650 = vcmask 9216
        %v1651 = vsel %vm1650, %v1649, -inf
        %1652 = vmax.xlane.f32.xlu0 %v1651
        %v1653 = vpop.xlane.xlu0 %1652
        %v1654 = vsub.f32 %v1649, %v1653
        %v1655 = vmul.f32 %v1654, 1.442695
        %v1656 = vpow.pop %v1655
        %v1657 = vsel %vm1650, %v1656, 0.0
        %1658 = vadd.xlane.f32.xlu0 %v1657
        %v1659 = vpop.xlane.xlu0 %1658
        %v1660 = vrcp.pop %v1659
        %v1661 = vmul.f32 %v1659, %v1660
        %v1662 = vsub.f32 1.0, %v1661
        %v1663 = vmul.f32 %v1660, %v1662
        %v1664 = vadd.f32 %v1660, %v1663
        %vm1665 = vweird.f32 %v1659
        %vm1666 = vweird.f32 %v1660
        %vm1667 = vmor %vm1665, %vm1666
        %v1668 = vsel %vm1667, %v1660, %v1664
        %v1669 = vand.u32 2147483647, %v1659
        %vm1670 = vcmp.eq.f32.partialorder %v1669, 8.507059e+37
        %v1671 = vand.u32 %v1659, 2147483648
        %v1672 = vor.u32 1.1754944e-38, %v1671
        %v1673 = vsel %vm1670, %v1672, %v1668
        %v1674 = vmul.f32 %v1656, %v1673
        %vm1675 = vcmask 15360
        %v1677 = vsel %vm1675, %v1674, 0
        %v1680 = vsel %vm1529, %v1523, 0
        %v1683 = vsel %vm1529, %v1524, 0
        %1685 = vmatpush.msra.mxu0 0.0
        %1686 = vmatpush.msra.mxu0 0.0
        %1687 = vmatpush.msra.mxu0 0.0
        %1688 = vmatpush.msra.mxu0 0.0
        %1689 = vmatpush.msra.mxu0 0.0
        %1690 = vmatpush.msra.mxu0 0.0
        %1691 = vmatpush.msra.mxu0 0.0
        %1692 = vmatpush.msra.mxu0 0.0
        %1693 = vmatpush.msra.mxu0 0.0
        %1694 = vmatpush.msra.mxu0 0.0
        %1695 = vmatpush.msra.mxu0 0.0
        %1696 = vmatpush.msra.mxu0 0.0
        %1697 = vmatpush.msra.mxu0 0.0
        %1698 = vmatpush.msra.mxu0 0.0
        %1699 = vmatpush.msra.mxu0 0.0
        %1700 = vmatpush.msra.mxu0 %v1680
        %1701 = vmatmul.f32.gmra.mxu0 %v1677
        %v1702 = vpop.f32.mrf.mxu0
        %v1703 = vadd.f32 0.0, %v1702
        %1704 = vdwg.mxu0
        %1705 = vmatpush.msra.mxu0 0.0
        %1706 = vmatpush.msra.mxu0 0.0
        %1707 = vmatpush.msra.mxu0 0.0
        %1708 = vmatpush.msra.mxu0 0.0
        %1709 = vmatpush.msra.mxu0 0.0
        %1710 = vmatpush.msra.mxu0 0.0
        %1711 = vmatpush.msra.mxu0 0.0
        %1712 = vmatpush.msra.mxu0 0.0
        %1713 = vmatpush.msra.mxu0 0.0
        %1714 = vmatpush.msra.mxu0 0.0
        %1715 = vmatpush.msra.mxu0 0.0
        %1716 = vmatpush.msra.mxu0 0.0
        %1717 = vmatpush.msra.mxu0 0.0
        %1718 = vmatpush.msra.mxu0 0.0
        %1719 = vmatpush.msra.mxu0 0.0
        %1720 = vmatpush.msra.mxu0 %v1683
        %1721 = vmatmul.f32.gmra.mxu0 %v1677
        %v1722 = vpop.f32.mrf.mxu0
        %v1723 = vadd.f32 0.0, %v1722
        %1724 = vdwg.mxu0
        %vm1725 = vcmask 1043458
        %v1726 = vsel %vm1725, %v1527, 0.0
        %v1727 = vsel %vm1725, %v1528, 0.0
        %v1728 = vadd.f32 %v1726, %v1727
        %1729 = vadd.xlane.f32.xlu0 %v1728
        %v1730 = vpop.xlane.xlu0 %1729
        %v1731 = vrsqrt.pop %v1730
        %v1732 = vmul.f32 %v1731, %v1730
        %v1733 = vmul.f32 %v1732, %v1731
        %v1734 = vmul.f32 0.5, %v1733
        %v1735 = vsub.f32 1.5, %v1734
        %v1736 = vmul.f32 %v1731, %v1735
        %v1737 = vmul.f32 %v1730, %v1736
        %vm1738 = vcmp.eq.f32.partialorder %v1730, inf
        %v1739 = vsel %vm1738, %v1730, %v1737
        %vm1740 = vcmp.eq.f32.partialorder %v1730, 0.0
        %v1741 = vand.u32 %v1730, 2147483648
        %v1742 = vsel %vm1740, %v1741, %v1739
        %v1743 = vmax.f32 %v1742, 1e-12
        %v1744 = vrcp.pop %v1743
        %v1745 = vmul.f32 %v1743, %v1744
        %v1746 = vsub.f32 1.0, %v1745
        %v1747 = vmul.f32 %v1744, %v1746
        %v1748 = vadd.f32 %v1744, %v1747
        %vm1749 = vweird.f32 %v1743
        %vm1750 = vweird.f32 %v1744
        %vm1751 = vmor %vm1749, %vm1750
        %v1752 = vsel %vm1751, %v1744, %v1748
        %v1753 = vand.u32 2147483647, %v1743
        %vm1754 = vcmp.eq.f32.partialorder %v1753, 8.507059e+37
        %v1755 = vand.u32 %v1743, 2147483648
        %v1756 = vor.u32 1.1754944e-38, %v1755
        %v1757 = vsel %vm1754, %v1756, %v1752
        %v1758 = vmul.f32 %v1521, %v1757
        %v1759 = vmul.f32 %v1522, %v1757
        %vm1760 = vcmask 1047558
        %v1761 = vsel %vm1760, %v1527, 0.0
        %v1762 = vsel %vm1760, %v1528, 0.0
        %v1763 = vadd.f32 %v1761, %v1762
        %1764 = vadd.xlane.f32.xlu0 %v1763
        %v1765 = vpop.xlane.xlu0 %1764
        %v1766 = vrsqrt.pop %v1765
        %v1767 = vmul.f32 %v1766, %v1765
        %v1768 = vmul.f32 %v1767, %v1766
        %v1769 = vmul.f32 0.5, %v1768
        %v1770 = vsub.f32 1.5, %v1769
        %v1771 = vmul.f32 %v1766, %v1770
        %v1772 = vmul.f32 %v1765, %v1771
        %vm1773 = vcmp.eq.f32.partialorder %v1765, inf
        %v1774 = vsel %vm1773, %v1765, %v1772
        %vm1775 = vcmp.eq.f32.partialorder %v1765, 0.0
        %v1776 = vand.u32 %v1765, 2147483648
        %v1777 = vsel %vm1775, %v1776, %v1774
        %v1778 = vmax.f32 %v1777, 1e-12
        %v1779 = vrcp.pop %v1778
        %v1780 = vmul.f32 %v1778, %v1779
        %v1781 = vsub.f32 1.0, %v1780
        %v1782 = vmul.f32 %v1779, %v1781
        %v1783 = vadd.f32 %v1779, %v1782
        %vm1784 = vweird.f32 %v1778
        %vm1785 = vweird.f32 %v1779
        %vm1786 = vmor %vm1784, %vm1785
        %v1787 = vsel %vm1786, %v1779, %v1783
        %v1788 = vand.u32 2147483647, %v1778
        %vm1789 = vcmp.eq.f32.partialorder %v1788, 8.507059e+37
        %v1790 = vand.u32 %v1778, 2147483648
        %v1791 = vor.u32 1.1754944e-38, %v1790
        %v1792 = vsel %vm1789, %v1791, %v1787
        %v1793 = vmul.f32 %v1521, %v1792
        %v1794 = vmul.f32 %v1522, %v1792
        %v1797 = vrot.slane %v1758, 2
        %v1798 = vrot.slane %v1759, 2
        %v1803 = vrot.slane %v1793, 6
        %v1804 = vrot.slane %v1794, 6
        %1807 = vmatpush.xpose.msra.mxu0 0.0
        %1808 = vmatpush.xpose.msra.mxu0 0.0
        %1809 = vmatpush.xpose.msra.mxu0 0.0
        %1810 = vmatpush.xpose.msra.mxu0 0.0
        %1811 = vmatpush.xpose.msra.mxu0 0.0
        %1812 = vmatpush.xpose.msra.mxu0 0.0
        %1813 = vmatpush.xpose.msra.mxu0 0.0
        %1814 = vmatpush.xpose.msra.mxu0 0.0
        %1815 = vmatpush.xpose.msra.mxu0 0.0
        %1816 = vmatpush.xpose.msra.mxu0 0.0
        %1817 = vmatpush.xpose.msra.mxu0 0.0
        %1818 = vmatpush.xpose.msra.mxu0 0.0
        %1819 = vmatpush.xpose.msra.mxu0 0.0
        %1820 = vmatpush.xpose.msra.mxu0 0.0
        %1821 = vmatpush.xpose.msra.mxu0 0.0
        %1822 = vmatpush.xpose.msra.mxu0 %v1803
        %1823 = vmatmul.f32.gmra.mxu0 %v1797
        %v1824 = vpop.f32.mrf.mxu0
        %v1825 = vadd.f32 0.0, %v1824
        %1826 = vdwg.mxu0
        %1827 = vmatpush.xpose.msra.mxu0 0.0
        %1828 = vmatpush.xpose.msra.mxu0 0.0
        %1829 = vmatpush.xpose.msra.mxu0 0.0
        %1830 = vmatpush.xpose.msra.mxu0 0.0
        %1831 = vmatpush.xpose.msra.mxu0 0.0
        %1832 = vmatpush.xpose.msra.mxu0 0.0
        %1833 = vmatpush.xpose.msra.mxu0 0.0
        %1834 = vmatpush.xpose.msra.mxu0 0.0
        %1835 = vmatpush.xpose.msra.mxu0 0.0
        %1836 = vmatpush.xpose.msra.mxu0 0.0
        %1837 = vmatpush.xpose.msra.mxu0 0.0
        %1838 = vmatpush.xpose.msra.mxu0 0.0
        %1839 = vmatpush.xpose.msra.mxu0 0.0
        %1840 = vmatpush.xpose.msra.mxu0 0.0
        %1841 = vmatpush.xpose.msra.mxu0 0.0
        %1842 = vmatpush.xpose.msra.mxu0 %v1804
        %1843 = vmatmul.f32.gmra.mxu0 %v1798
        %v1844 = vpop.f32.mrf.mxu0
        %v1845 = vadd.f32 %v1825, %v1844
        %1846 = vdwg.mxu0
        %v1847 = vrot.slane %v1525, 1
        %s1848 = vtos %v1847
        %v1849 = vstv %s1848
        %v1851 = vmul.f32 %v1845, %v1849
        %v1852 = vsel %vm1650, %v1851, -inf
        %1853 = vmax.xlane.f32.xlu0 %v1852
        %v1854 = vpop.xlane.xlu0 %1853
        %v1855 = vsub.f32 %v1851, %v1854
        %v1856 = vmul.f32 %v1855, 1.442695
        %v1857 = vpow.pop %v1856
        %v1858 = vsel %vm1650, %v1857, 0.0
        %1859 = vadd.xlane.f32.xlu0 %v1858
        %v1860 = vpop.xlane.xlu0 %1859
        %v1861 = vrcp.pop %v1860
        %v1862 = vmul.f32 %v1860, %v1861
        %v1863 = vsub.f32 1.0, %v1862
        %v1864 = vmul.f32 %v1861, %v1863
        %v1865 = vadd.f32 %v1861, %v1864
        %vm1866 = vweird.f32 %v1860
        %vm1867 = vweird.f32 %v1861
        %vm1868 = vmor %vm1866, %vm1867
        %v1869 = vsel %vm1868, %v1861, %v1865
        %v1870 = vand.u32 2147483647, %v1860
        %vm1871 = vcmp.eq.f32.partialorder %v1870, 8.507059e+37
        %v1872 = vand.u32 %v1860, 2147483648
        %v1873 = vor.u32 1.1754944e-38, %v1872
        %v1874 = vsel %vm1871, %v1873, %v1869
        %v1875 = vmul.f32 %v1857, %v1874
        %v1876 = vrot.slane %v1523, 2
        %v1877 = vrot.slane %v1524, 2
        %v1879 = vsel %vm1675, %v1875, 0
        %v1881 = vsel %vm1529, %v1876, 0
        %v1883 = vsel %vm1529, %v1877, 0
        %1885 = vmatpush.msra.mxu0 0.0
        %1886 = vmatpush.msra.mxu0 0.0
        %1887 = vmatpush.msra.mxu0 0.0
        %1888 = vmatpush.msra.mxu0 0.0
        %1889 = vmatpush.msra.mxu0 0.0
        %1890 = vmatpush.msra.mxu0 0.0
        %1891 = vmatpush.msra.mxu0 0.0
        %1892 = vmatpush.msra.mxu0 0.0
        %1893 = vmatpush.msra.mxu0 0.0
        %1894 = vmatpush.msra.mxu0 0.0
        %1895 = vmatpush.msra.mxu0 0.0
        %1896 = vmatpush.msra.mxu0 0.0
        %1897 = vmatpush.msra.mxu0 0.0
        %1898 = vmatpush.msra.mxu0 0.0
        %1899 = vmatpush.msra.mxu0 0.0
        %1900 = vmatpush.msra.mxu0 %v1881
        %1901 = vmatmul.f32.gmra.mxu0 %v1879
        %v1902 = vpop.f32.mrf.mxu0
        %v1903 = vadd.f32 0.0, %v1902
        %1904 = vdwg.mxu0
        %1905 = vmatpush.msra.mxu0 0.0
        %1906 = vmatpush.msra.mxu0 0.0
        %1907 = vmatpush.msra.mxu0 0.0
        %1908 = vmatpush.msra.mxu0 0.0
        %1909 = vmatpush.msra.mxu0 0.0
        %1910 = vmatpush.msra.mxu0 0.0
        %1911 = vmatpush.msra.mxu0 0.0
        %1912 = vmatpush.msra.mxu0 0.0
        %1913 = vmatpush.msra.mxu0 0.0
        %1914 = vmatpush.msra.mxu0 0.0
        %1915 = vmatpush.msra.mxu0 0.0
        %1916 = vmatpush.msra.mxu0 0.0
        %1917 = vmatpush.msra.mxu0 0.0
        %1918 = vmatpush.msra.mxu0 0.0
        %1919 = vmatpush.msra.mxu0 0.0
        %1920 = vmatpush.msra.mxu0 %v1883
        %1921 = vmatmul.f32.gmra.mxu0 %v1879
        %v1922 = vpop.f32.mrf.mxu0
        %v1923 = vadd.f32 0.0, %v1922
        %1924 = vdwg.mxu0
        %1926 = vrot.lane.b32.xlu0 %v1526, 126
        %v1927 = vpop.permute.xlu0 %1926
        %v1928 = vsel %vm1675, %v1927, 0
        %v1931 = vsel %vm1529, %v1903, 0
        %v1934 = vsel %vm1529, %v1923, 0
        %1936 = vmatpush.msra.mxu0 0.0
        %1937 = vmatpush.msra.mxu0 0.0
        %1938 = vmatpush.msra.mxu0 0.0
        %1939 = vmatpush.msra.mxu0 0.0
        %1940 = vmatpush.msra.mxu0 0.0
        %1941 = vmatpush.msra.mxu0 0.0
        %1942 = vmatpush.msra.mxu0 0.0
        %1943 = vmatpush.msra.mxu0 0.0
        %1944 = vmatpush.msra.mxu0 0.0
        %1945 = vmatpush.msra.mxu0 0.0
        %1946 = vmatpush.msra.mxu0 0.0
        %1947 = vmatpush.msra.mxu0 0.0
        %1948 = vmatpush.msra.mxu0 0.0
        %1949 = vmatpush.msra.mxu0 0.0
        %1950 = vmatpush.msra.mxu0 0.0
        %1951 = vmatpush.msra.mxu0 %v1931
        %1952 = vmatmul.f32.gmra.mxu0 %v1928
        %v1953 = vpop.f32.mrf.mxu0
        %v1954 = vadd.f32 0.0, %v1953
        %1955 = vdwg.mxu0
        %1956 = vmatpush.msra.mxu0 0.0
        %1957 = vmatpush.msra.mxu0 0.0
        %1958 = vmatpush.msra.mxu0 0.0
        %1959 = vmatpush.msra.mxu0 0.0
        %1960 = vmatpush.msra.mxu0 0.0
        %1961 = vmatpush.msra.mxu0 0.0
        %1962 = vmatpush.msra.mxu0 0.0
        %1963 = vmatpush.msra.mxu0 0.0
        %1964 = vmatpush.msra.mxu0 0.0
        %1965 = vmatpush.msra.mxu0 0.0
        %1966 = vmatpush.msra.mxu0 0.0
        %1967 = vmatpush.msra.mxu0 0.0
        %1968 = vmatpush.msra.mxu0 0.0
        %1969 = vmatpush.msra.mxu0 0.0
        %1970 = vmatpush.msra.mxu0 0.0
        %1971 = vmatpush.msra.mxu0 %v1934
        %1972 = vmatmul.f32.gmra.mxu0 %v1928
        %v1973 = vpop.f32.mrf.mxu0
        %v1974 = vadd.f32 0.0, %v1973
        %1975 = vdwg.mxu0
        %v1976 = vsel %vm1675, %v1526, 0
        %v1979 = vsel %vm1529, %v1703, 0
        %v1982 = vsel %vm1529, %v1723, 0
        %1984 = vmatpush.msra.mxu0 0.0
        %1985 = vmatpush.msra.mxu0 0.0
        %1986 = vmatpush.msra.mxu0 0.0
        %1987 = vmatpush.msra.mxu0 0.0
        %1988 = vmatpush.msra.mxu0 0.0
        %1989 = vmatpush.msra.mxu0 0.0
        %1990 = vmatpush.msra.mxu0 0.0
        %1991 = vmatpush.msra.mxu0 0.0
        %1992 = vmatpush.msra.mxu0 0.0
        %1993 = vmatpush.msra.mxu0 0.0
        %1994 = vmatpush.msra.mxu0 0.0
        %1995 = vmatpush.msra.mxu0 0.0
        %1996 = vmatpush.msra.mxu0 0.0
        %1997 = vmatpush.msra.mxu0 0.0
        %1998 = vmatpush.msra.mxu0 0.0
        %1999 = vmatpush.msra.mxu0 %v1979
        %2000 = vmatmul.f32.gmra.mxu0 %v1976
        %v2001 = vpop.f32.mrf.mxu0
        %v2002 = vadd.f32 %v1954, %v2001
        %2003 = vdwg.mxu0
        %2004 = vmatpush.msra.mxu0 0.0
        %2005 = vmatpush.msra.mxu0 0.0
        %2006 = vmatpush.msra.mxu0 0.0
        %2007 = vmatpush.msra.mxu0 0.0
        %2008 = vmatpush.msra.mxu0 0.0
        %2009 = vmatpush.msra.mxu0 0.0
        %2010 = vmatpush.msra.mxu0 0.0
        %2011 = vmatpush.msra.mxu0 0.0
        %2012 = vmatpush.msra.mxu0 0.0
        %2013 = vmatpush.msra.mxu0 0.0
        %2014 = vmatpush.msra.mxu0 0.0
        %2015 = vmatpush.msra.mxu0 0.0
        %2016 = vmatpush.msra.mxu0 0.0
        %2017 = vmatpush.msra.mxu0 0.0
        %2018 = vmatpush.msra.mxu0 0.0
        %2019 = vmatpush.msra.mxu0 %v1982
        %2020 = vmatmul.f32.gmra.mxu0 %v1976
        %v2021 = vpop.f32.mrf.mxu0
        %v2022 = vadd.f32 %v1974, %v2021
        %2023 = vdwg.mxu0
        %v2026 = vrot.slane %v2022, 4
        %v2027 = vsel %vm492, %v2002, %v2026
        %v2029 = vadd.f32 %v446, %v2027
        %2031 = vst [vmem:[#allocation1] ss:$2 sm:$0xff] %v2029
        %v2032 = vld.sshfl [vmem:[#allocation1] sm:$0xff pattern:$0x75316420]
        %v2033 = vld.sshfl [vmem:[#allocation1 + $0x8] sm:$0xff pattern:$0x75316420]
        %v2036 = vsel %vm492, %v2032, 0.0
        %v2037 = vrot.slane %v2036, 4
        %v2038 = vadd.f32 %v2036, %v2037
        %v2039 = vrot.slane %v2038, 2
        %v2040 = vadd.f32 %v2038, %v2039
        %v2041 = vrot.slane %v2040, 1
        %v2042 = vadd.f32 %v2040, %v2041
        %v2043 = vsel %vm492, %v2033, 0.0
        %v2044 = vrot.slane %v2043, 4
        %v2045 = vadd.f32 %v2043, %v2044
        %v2046 = vrot.slane %v2045, 2
        %v2047 = vadd.f32 %v2045, %v2046
        %v2048 = vrot.slane %v2047, 1
        %v2049 = vadd.f32 %v2047, %v2048
        %v2050 = vmul.f32 %v2042, %v513
        %v2051 = vmul.f32 %v2049, %v513
        %v2054 = vrot.slane %v2051, 4
        %v2055 = vsel %vm492, %v2050, %v2054
        %v2057 = vsub.f32 %v2029, %v2055
        %v2058 = vmul.f32 %v2057, %v2057
        %2060 = vst [vmem:[#allocation1] ss:$2 sm:$0xff] %v2058
        %v2061 = vld.sshfl [vmem:[#allocation1] sm:$0xff pattern:$0x75316420]
        %v2062 = vld.sshfl [vmem:[#allocation1 + $0x8] sm:$0xff pattern:$0x75316420]
        %v2065 = vsel %vm492, %v2061, 0.0
        %v2066 = vrot.slane %v2065, 4
        %v2067 = vadd.f32 %v2065, %v2066
        %v2068 = vrot.slane %v2067, 2
        %v2069 = vadd.f32 %v2067, %v2068
        %v2070 = vrot.slane %v2069, 1
        %v2071 = vadd.f32 %v2069, %v2070
        %v2072 = vsel %vm492, %v2062, 0.0
        %v2073 = vrot.slane %v2072, 4
        %v2074 = vadd.f32 %v2072, %v2073
        %v2075 = vrot.slane %v2074, 2
        %v2076 = vadd.f32 %v2074, %v2075
        %v2077 = vrot.slane %v2076, 1
        %v2078 = vadd.f32 %v2076, %v2077
        %v2079 = vmul.f32 %v2071, %v513
        %v2080 = vmul.f32 %v2078, %v513
        %v2081 = vadd.f32 %v2079, 1e-05
        %v2082 = vadd.f32 %v2080, 1e-05
        %v2083 = vrsqrt.pop %v2081
        %v2084 = vmul.f32 %v2083, %v2081
        %v2085 = vmul.f32 %v2084, %v2083
        %v2086 = vmul.f32 0.5, %v2085
        %v2087 = vsub.f32 1.5, %v2086
        %v2088 = vmul.f32 %v2083, %v2087
        %vm2089 = vweird.f32 %v2081
        %vm2090 = vweird.f32 %v2083
        %vm2091 = vmor %vm2089, %vm2090
        %v2092 = vsel %vm2091, %v2083, %v2088
        %v2093 = vrsqrt.pop %v2082
        %v2094 = vmul.f32 %v2093, %v2082
        %v2095 = vmul.f32 %v2094, %v2093
        %v2096 = vmul.f32 0.5, %v2095
        %v2097 = vsub.f32 1.5, %v2096
        %v2098 = vmul.f32 %v2093, %v2097
        %vm2099 = vweird.f32 %v2082
        %vm2100 = vweird.f32 %v2093
        %vm2101 = vmor %vm2099, %vm2100
        %v2102 = vsel %vm2101, %v2093, %v2098
        %v2105 = vrot.slane %v2102, 4
        %v2106 = vsel %vm492, %v2092, %v2105
        %v2108 = vmul.f32 %v2057, %v2106
        %v2109 = vld [vmem:[%s7] sm:$0xf]
        %2111 = vset.pattern.permute.xlu0 0
        %2112 = vperm.xlu0 %2111, %v2109
        %v2113 = vpop.permute.xlu0 %2112
        %v2115 = vunpack.c.l.s4 839922192
        %v2116 = vunpack.c.0.s8 %v2115
        %v2117 = vperm.slane %v2113, %v2116
        %v2119 = vmul.f32 %v2108, %v2117
        %v2120 = vld [vmem:[%s8] sm:$0xf]
        %2122 = vset.pattern.permute.xlu0 0
        %2123 = vperm.xlu0 %2122, %v2120
        %v2124 = vpop.permute.xlu0 %2123
        %v2126 = vunpack.c.l.s4 839922192
        %v2127 = vunpack.c.0.s8 %v2126
        %v2128 = vperm.slane %v2124, %v2127
        %v2130 = vadd.f32 %v2119, %v2128
        %v2131 = vld [vmem:[%s9] sm:$0xff]
        %v2132 = vld [vmem:[%s9 + $0x8] sm:$0xff]
        %2134 = vst [vmem:[#allocation1] ss:$2 sm:$0xff] %v2130
        %v2135 = vld.sshfl [vmem:[#allocation1] sm:$0xff pattern:$0x75316420]
        %v2136 = vld.sshfl [vmem:[#allocation1 + $0x8] sm:$0xff pattern:$0x75316420]
        %v2138 = vsel %vm601, %v2131, 0
        %v2141 = vsel %vm601, %v2132, 0
        %v2143 = vsel %vm492, %v2135, 0
        %v2145 = vsel %vm492, %v2136, 0
        %2147 = vmatpush.msra.mxu0 0.0
        %2148 = vmatpush.msra.mxu0 0.0
        %2149 = vmatpush.msra.mxu0 0.0
        %2150 = vmatpush.msra.mxu0 0.0
        %2151 = vmatpush.msra.mxu0 0.0
        %2152 = vmatpush.msra.mxu0 0.0
        %2153 = vmatpush.msra.mxu0 0.0
        %2154 = vmatpush.msra.mxu0 0.0
        %2155 = vmatpush.msra.mxu0 0.0
        %2156 = vmatpush.msra.mxu0 0.0
        %2157 = vmatpush.msra.mxu0 0.0
        %2158 = vmatpush.msra.mxu0 0.0
        %2159 = vmatpush.msra.mxu0 0.0
        %2160 = vmatpush.msra.mxu0 0.0
        %2161 = vmatpush.msra.mxu0 0.0
        %2162 = vmatpush.msra.mxu0 %v2143
        %2163 = vmatmul.f32.gmra.mxu0 %v2138
        %v2164 = vpop.f32.mrf.mxu0
        %v2165 = vadd.f32 0.0, %v2164
        %2166 = vmatmul.f32.gmra.mxu0 %v2141
        %v2167 = vpop.f32.mrf.mxu0
        %v2168 = vadd.f32 0.0, %v2167
        %2169 = vdwg.mxu0
        %2170 = vmatpush.msra.mxu0 0.0
        %2171 = vmatpush.msra.mxu0 0.0
        %2172 = vmatpush.msra.mxu0 0.0
        %2173 = vmatpush.msra.mxu0 0.0
        %2174 = vmatpush.msra.mxu0 0.0
        %2175 = vmatpush.msra.mxu0 0.0
        %2176 = vmatpush.msra.mxu0 0.0
        %2177 = vmatpush.msra.mxu0 0.0
        %2178 = vmatpush.msra.mxu0 0.0
        %2179 = vmatpush.msra.mxu0 0.0
        %2180 = vmatpush.msra.mxu0 0.0
        %2181 = vmatpush.msra.mxu0 0.0
        %2182 = vmatpush.msra.mxu0 0.0
        %2183 = vmatpush.msra.mxu0 0.0
        %2184 = vmatpush.msra.mxu0 0.0
        %2185 = vmatpush.msra.mxu0 %v2145
        %2186 = vmatmul.f32.gmra.mxu0 %v2138
        %v2187 = vpop.f32.mrf.mxu0
        %v2188 = vadd.f32 0.0, %v2187
        %2189 = vmatmul.f32.gmra.mxu0 %v2141
        %v2190 = vpop.f32.mrf.mxu0
        %v2191 = vadd.f32 0.0, %v2190
        %2192 = vdwg.mxu0
        %2193 = vst [vmem:[#allocation2] sm:$0xff] 0.0
        %2194 = vst [vmem:[#allocation2 + $0x20] sm:$0xff] 0.0
        %2195 = vst [vmem:[#allocation2 + $0x18] sm:$0xff] 0.0
        %2196 = vst [vmem:[#allocation2 + $0x38] sm:$0xff] 0.0
        %2197 = vst [vmem:[#allocation2 + $0x8] sm:$0xff] %v2165
        %2198 = vst [vmem:[#allocation2 + $0x10] sm:$0xff] %v2188
        %2199 = vst [vmem:[#allocation2 + $0x28] sm:$0xff] %v2168
        %2200 = vst [vmem:[#allocation2 + $0x30] sm:$0xff] %v2191
        %v2201 = vld [vmem:[#allocation2] sm:$0xff]
        %v2202 = vld [vmem:[#allocation2 + $0x8] sm:$0xff]
        %v2203 = vld [vmem:[#allocation2 + $0x10] sm:$0xff]
        %v2204 = vld [vmem:[#allocation2 + $0x20] sm:$0xff]
        %v2205 = vld [vmem:[#allocation2 + $0x28] sm:$0xff]
        %v2206 = vld [vmem:[#allocation2 + $0x30] sm:$0xff]
        %v2207 = vmul.f32 %v2201, %v675
        %v2208 = vmul.f32 %v2202, %v679
        %v2209 = vmul.f32 %v2203, %v677
        %v2210 = vmul.f32 %v2204, %v675
        %v2211 = vmul.f32 %v2205, %v679
        %v2212 = vmul.f32 %v2206, %v677
        %v2213 = vld [vmem:[#allocation6] sm:$0xff]
        %v2214 = vld [vmem:[#allocation6 + $0x8] sm:$0xff]
        %s2215 = scalar_lea.vmem [#allocation6], 16
        %v2216 = vld [vmem:[%s2215] sm:$0xff]
        %v2217 = vld [vmem:[%s2215 + $0x8] sm:$0xff]
        %2224 = vrot.lane.b32.xlu0 %v2201, 16
        %v2225 = vpop.permute.xlu0 %2224
        %2226 = vrot.lane.b32.xlu0 %v2202, 16
        %v2227 = vpop.permute.xlu0 %2226
        %2228 = vrot.lane.b32.xlu0 %v2203, 16
        %v2229 = vpop.permute.xlu0 %2228
        %2230 = vrot.lane.b32.xlu0 %v2204, 16
        %v2231 = vpop.permute.xlu0 %2230
        %2232 = vrot.lane.b32.xlu0 %v2205, 16
        %v2233 = vpop.permute.xlu0 %2232
        %2234 = vrot.lane.b32.xlu0 %v2206, 16
        %v2235 = vpop.permute.xlu0 %2234
        %v2236 = vsel %vm712, %v2225, %v2227
        %v2237 = vsel %vm712, %v2227, %v2229
        %v2238 = vsel %vm712, %v2231, %v2233
        %v2239 = vsel %vm712, %v2233, %v2235
        %v2245 = vsel %vm712, %v2216, 0
        %v2248 = vsel %vm712, %v2217, 0
        %2250 = vmatpush.msra.mxu0 0.0
        %2251 = vmatpush.msra.mxu0 0.0
        %2252 = vmatpush.msra.mxu0 0.0
        %2253 = vmatpush.msra.mxu0 0.0
        %2254 = vmatpush.msra.mxu0 0.0
        %2255 = vmatpush.msra.mxu0 0.0
        %2256 = vmatpush.msra.mxu0 0.0
        %2257 = vmatpush.msra.mxu0 0.0
        %2258 = vmatpush.msra.mxu0 0.0
        %2259 = vmatpush.msra.mxu0 0.0
        %2260 = vmatpush.msra.mxu0 0.0
        %2261 = vmatpush.msra.mxu0 0.0
        %2262 = vmatpush.msra.mxu0 0.0
        %2263 = vmatpush.msra.mxu0 0.0
        %2264 = vmatpush.msra.mxu0 %v2238
        %2265 = vmatpush.msra.mxu0 %v2236
        %2266 = vmatmul.f32.gmra.mxu0 %v2245
        %v2267 = vpop.f32.mrf.mxu0
        %v2268 = vadd.f32 0.0, %v2267
        %2269 = vmatmul.f32.gmra.mxu0 %v2248
        %v2270 = vpop.f32.mrf.mxu0
        %v2271 = vadd.f32 0.0, %v2270
        %2272 = vdwg.mxu0
        %2273 = vmatpush.msra.mxu0 0.0
        %2274 = vmatpush.msra.mxu0 0.0
        %2275 = vmatpush.msra.mxu0 0.0
        %2276 = vmatpush.msra.mxu0 0.0
        %2277 = vmatpush.msra.mxu0 0.0
        %2278 = vmatpush.msra.mxu0 0.0
        %2279 = vmatpush.msra.mxu0 0.0
        %2280 = vmatpush.msra.mxu0 0.0
        %2281 = vmatpush.msra.mxu0 0.0
        %2282 = vmatpush.msra.mxu0 0.0
        %2283 = vmatpush.msra.mxu0 0.0
        %2284 = vmatpush.msra.mxu0 0.0
        %2285 = vmatpush.msra.mxu0 0.0
        %2286 = vmatpush.msra.mxu0 0.0
        %2287 = vmatpush.msra.mxu0 %v2239
        %2288 = vmatpush.msra.mxu0 %v2237
        %2289 = vmatmul.f32.gmra.mxu0 %v2245
        %v2290 = vpop.f32.mrf.mxu0
        %v2291 = vadd.f32 0.0, %v2290
        %2292 = vmatmul.f32.gmra.mxu0 %v2248
        %v2293 = vpop.f32.mrf.mxu0
        %v2294 = vadd.f32 0.0, %v2293
        %2295 = vdwg.mxu0
        %2302 = vrot.lane.b32.xlu0 %v2207, 17
        %v2303 = vpop.permute.xlu0 %2302
        %2304 = vrot.lane.b32.xlu0 %v2208, 17
        %v2305 = vpop.permute.xlu0 %2304
        %2306 = vrot.lane.b32.xlu0 %v2209, 17
        %v2307 = vpop.permute.xlu0 %2306
        %2308 = vrot.lane.b32.xlu0 %v2210, 17
        %v2309 = vpop.permute.xlu0 %2308
        %2310 = vrot.lane.b32.xlu0 %v2211, 17
        %v2311 = vpop.permute.xlu0 %2310
        %2312 = vrot.lane.b32.xlu0 %v2212, 17
        %v2313 = vpop.permute.xlu0 %2312
        %v2314 = vsel %vm794, %v2303, %v2305
        %v2315 = vsel %vm794, %v2305, %v2307
        %v2316 = vsel %vm794, %v2309, %v2311
        %v2317 = vsel %vm794, %v2311, %v2313
        %v2323 = vsel %vm712, %v2213, 0
        %v2326 = vsel %vm712, %v2214, 0
        %2328 = vmatpush.msra.mxu0 0.0
        %2329 = vmatpush.msra.mxu0 0.0
        %2330 = vmatpush.msra.mxu0 0.0
        %2331 = vmatpush.msra.mxu0 0.0
        %2332 = vmatpush.msra.mxu0 0.0
        %2333 = vmatpush.msra.mxu0 0.0
        %2334 = vmatpush.msra.mxu0 0.0
        %2335 = vmatpush.msra.mxu0 0.0
        %2336 = vmatpush.msra.mxu0 0.0
        %2337 = vmatpush.msra.mxu0 0.0
        %2338 = vmatpush.msra.mxu0 0.0
        %2339 = vmatpush.msra.mxu0 0.0
        %2340 = vmatpush.msra.mxu0 0.0
        %2341 = vmatpush.msra.mxu0 0.0
        %2342 = vmatpush.msra.mxu0 %v2316
        %2343 = vmatpush.msra.mxu0 %v2314
        %2344 = vmatmul.f32.gmra.mxu0 %v2323
        %v2345 = vpop.f32.mrf.mxu0
        %v2346 = vadd.f32 %v2268, %v2345
        %2347 = vmatmul.f32.gmra.mxu0 %v2326
        %v2348 = vpop.f32.mrf.mxu0
        %v2349 = vadd.f32 %v2271, %v2348
        %2350 = vdwg.mxu0
        %2351 = vmatpush.msra.mxu0 0.0
        %2352 = vmatpush.msra.mxu0 0.0
        %2353 = vmatpush.msra.mxu0 0.0
        %2354 = vmatpush.msra.mxu0 0.0
        %2355 = vmatpush.msra.mxu0 0.0
        %2356 = vmatpush.msra.mxu0 0.0
        %2357 = vmatpush.msra.mxu0 0.0
        %2358 = vmatpush.msra.mxu0 0.0
        %2359 = vmatpush.msra.mxu0 0.0
        %2360 = vmatpush.msra.mxu0 0.0
        %2361 = vmatpush.msra.mxu0 0.0
        %2362 = vmatpush.msra.mxu0 0.0
        %2363 = vmatpush.msra.mxu0 0.0
        %2364 = vmatpush.msra.mxu0 0.0
        %2365 = vmatpush.msra.mxu0 %v2317
        %2366 = vmatpush.msra.mxu0 %v2315
        %2367 = vmatmul.f32.gmra.mxu0 %v2323
        %v2368 = vpop.f32.mrf.mxu0
        %v2369 = vadd.f32 %v2291, %v2368
        %2370 = vmatmul.f32.gmra.mxu0 %v2326
        %v2371 = vpop.f32.mrf.mxu0
        %v2372 = vadd.f32 %v2294, %v2371
        %2373 = vdwg.mxu0
        %v2374 = vmul.f32 %v2201, %v860
        %v2375 = vmul.f32 %v2202, %v864
        %v2376 = vmul.f32 %v2203, %v862
        %v2377 = vmul.f32 %v2204, %v860
        %v2378 = vmul.f32 %v2205, %v864
        %v2379 = vmul.f32 %v2206, %v862
        %s2380 = scalar_lea.vmem [#allocation6], 32
        %v2381 = vld [vmem:[%s2380] sm:$0xff]
        %v2382 = vld [vmem:[%s2380 + $0x8] sm:$0xff]
        %2389 = vrot.lane.b32.xlu0 %v2374, 15
        %v2390 = vpop.permute.xlu0 %2389
        %2391 = vrot.lane.b32.xlu0 %v2375, 15
        %v2392 = vpop.permute.xlu0 %2391
        %2393 = vrot.lane.b32.xlu0 %v2376, 15
        %v2394 = vpop.permute.xlu0 %2393
        %2395 = vrot.lane.b32.xlu0 %v2377, 15
        %v2396 = vpop.permute.xlu0 %2395
        %2397 = vrot.lane.b32.xlu0 %v2378, 15
        %v2398 = vpop.permute.xlu0 %2397
        %2399 = vrot.lane.b32.xlu0 %v2379, 15
        %v2400 = vpop.permute.xlu0 %2399
        %v2401 = vsel %vm895, %v2390, %v2392
        %v2402 = vsel %vm895, %v2392, %v2394
        %v2403 = vsel %vm895, %v2396, %v2398
        %v2404 = vsel %vm895, %v2398, %v2400
        %v2410 = vsel %vm712, %v2381, 0
        %v2413 = vsel %vm712, %v2382, 0
        %2415 = vmatpush.msra.mxu0 0.0
        %2416 = vmatpush.msra.mxu0 0.0
        %2417 = vmatpush.msra.mxu0 0.0
        %2418 = vmatpush.msra.mxu0 0.0
        %2419 = vmatpush.msra.mxu0 0.0
        %2420 = vmatpush.msra.mxu0 0.0
        %2421 = vmatpush.msra.mxu0 0.0
        %2422 = vmatpush.msra.mxu0 0.0
        %2423 = vmatpush.msra.mxu0 0.0
        %2424 = vmatpush.msra.mxu0 0.0
        %2425 = vmatpush.msra.mxu0 0.0
        %2426 = vmatpush.msra.mxu0 0.0
        %2427 = vmatpush.msra.mxu0 0.0
        %2428 = vmatpush.msra.mxu0 0.0
        %2429 = vmatpush.msra.mxu0 %v2403
        %2430 = vmatpush.msra.mxu0 %v2401
        %2431 = vmatmul.f32.gmra.mxu0 %v2410
        %v2432 = vpop.f32.mrf.mxu0
        %v2433 = vadd.f32 0.0, %v2432
        %2434 = vmatmul.f32.gmra.mxu0 %v2413
        %v2435 = vpop.f32.mrf.mxu0
        %v2436 = vadd.f32 0.0, %v2435
        %2437 = vdwg.mxu0
        %2438 = vmatpush.msra.mxu0 0.0
        %2439 = vmatpush.msra.mxu0 0.0
        %2440 = vmatpush.msra.mxu0 0.0
        %2441 = vmatpush.msra.mxu0 0.0
        %2442 = vmatpush.msra.mxu0 0.0
        %2443 = vmatpush.msra.mxu0 0.0
        %2444 = vmatpush.msra.mxu0 0.0
        %2445 = vmatpush.msra.mxu0 0.0
        %2446 = vmatpush.msra.mxu0 0.0
        %2447 = vmatpush.msra.mxu0 0.0
        %2448 = vmatpush.msra.mxu0 0.0
        %2449 = vmatpush.msra.mxu0 0.0
        %2450 = vmatpush.msra.mxu0 0.0
        %2451 = vmatpush.msra.mxu0 0.0
        %2452 = vmatpush.msra.mxu0 %v2404
        %2453 = vmatpush.msra.mxu0 %v2402
        %2454 = vmatmul.f32.gmra.mxu0 %v2410
        %v2455 = vpop.f32.mrf.mxu0
        %v2456 = vadd.f32 0.0, %v2455
        %2457 = vmatmul.f32.gmra.mxu0 %v2413
        %v2458 = vpop.f32.mrf.mxu0
        %v2459 = vadd.f32 0.0, %v2458
        %2460 = vdwg.mxu0
        %v2461 = vadd.f32 %v2346, %v2433
        %v2462 = vadd.f32 %v2369, %v2456
        %v2463 = vadd.f32 %v2349, %v2436
        %v2464 = vadd.f32 %v2372, %v2459
        %v2465 = vmul.f32 %v2201, %v963
        %v2466 = vmul.f32 %v2202, %v967
        %v2467 = vmul.f32 %v2203, %v965
        %v2468 = vmul.f32 %v2204, %v963
        %v2469 = vmul.f32 %v2205, %v967
        %v2470 = vmul.f32 %v2206, %v965
        %s2471 = scalar_lea.vmem [#allocation6], 48
        %v2472 = vld [vmem:[%s2471] sm:$0xff]
        %v2473 = vld [vmem:[%s2471 + $0x8] sm:$0xff]
        %2480 = vrot.lane.b32.xlu0 %v2465, 1
        %v2481 = vpop.permute.xlu0 %2480
        %2482 = vrot.lane.b32.xlu0 %v2466, 1
        %v2483 = vpop.permute.xlu0 %2482
        %2484 = vrot.lane.b32.xlu0 %v2467, 1
        %v2485 = vpop.permute.xlu0 %2484
        %2486 = vrot.lane.b32.xlu0 %v2468, 1
        %v2487 = vpop.permute.xlu0 %2486
        %2488 = vrot.lane.b32.xlu0 %v2469, 1
        %v2489 = vpop.permute.xlu0 %2488
        %2490 = vrot.lane.b32.xlu0 %v2470, 1
        %v2491 = vpop.permute.xlu0 %2490
        %v2492 = vsel %vm998, %v2481, %v2483
        %v2493 = vsel %vm998, %v2483, %v2485
        %v2494 = vsel %vm998, %v2487, %v2489
        %v2495 = vsel %vm998, %v2489, %v2491
        %v2501 = vsel %vm712, %v2472, 0
        %v2504 = vsel %vm712, %v2473, 0
        %2506 = vmatpush.msra.mxu0 0.0
        %2507 = vmatpush.msra.mxu0 0.0
        %2508 = vmatpush.msra.mxu0 0.0
        %2509 = vmatpush.msra.mxu0 0.0
        %2510 = vmatpush.msra.mxu0 0.0
        %2511 = vmatpush.msra.mxu0 0.0
        %2512 = vmatpush.msra.mxu0 0.0
        %2513 = vmatpush.msra.mxu0 0.0
        %2514 = vmatpush.msra.mxu0 0.0
        %2515 = vmatpush.msra.mxu0 0.0
        %2516 = vmatpush.msra.mxu0 0.0
        %2517 = vmatpush.msra.mxu0 0.0
        %2518 = vmatpush.msra.mxu0 0.0
        %2519 = vmatpush.msra.mxu0 0.0
        %2520 = vmatpush.msra.mxu0 %v2494
        %2521 = vmatpush.msra.mxu0 %v2492
        %2522 = vmatmul.f32.gmra.mxu0 %v2501
        %v2523 = vpop.f32.mrf.mxu0
        %v2524 = vadd.f32 0.0, %v2523
        %2525 = vmatmul.f32.gmra.mxu0 %v2504
        %v2526 = vpop.f32.mrf.mxu0
        %v2527 = vadd.f32 0.0, %v2526
        %2528 = vdwg.mxu0
        %2529 = vmatpush.msra.mxu0 0.0
        %2530 = vmatpush.msra.mxu0 0.0
        %2531 = vmatpush.msra.mxu0 0.0
        %2532 = vmatpush.msra.mxu0 0.0
        %2533 = vmatpush.msra.mxu0 0.0
        %2534 = vmatpush.msra.mxu0 0.0
        %2535 = vmatpush.msra.mxu0 0.0
        %2536 = vmatpush.msra.mxu0 0.0
        %2537 = vmatpush.msra.mxu0 0.0
        %2538 = vmatpush.msra.mxu0 0.0
        %2539 = vmatpush.msra.mxu0 0.0
        %2540 = vmatpush.msra.mxu0 0.0
        %2541 = vmatpush.msra.mxu0 0.0
        %2542 = vmatpush.msra.mxu0 0.0
        %2543 = vmatpush.msra.mxu0 %v2495
        %2544 = vmatpush.msra.mxu0 %v2493
        %2545 = vmatmul.f32.gmra.mxu0 %v2501
        %v2546 = vpop.f32.mrf.mxu0
        %v2547 = vadd.f32 0.0, %v2546
        %2548 = vmatmul.f32.gmra.mxu0 %v2504
        %v2549 = vpop.f32.mrf.mxu0
        %v2550 = vadd.f32 0.0, %v2549
        %2551 = vdwg.mxu0
        %v2552 = vadd.f32 %v2461, %v2524
        %v2553 = vadd.f32 %v2462, %v2547
        %v2554 = vadd.f32 %v2463, %v2527
        %v2555 = vadd.f32 %v2464, %v2550
        %s2556 = scalar_lea.vmem [#allocation6], 64
        %v2557 = vld [vmem:[%s2556] sm:$0xff]
        %v2558 = vld [vmem:[%s2556 + $0x8] sm:$0xff]
        %v2560 = vsel %vm712, %v2557, 0
        %v2563 = vsel %vm712, %v2558, 0
        %2565 = vmatpush.msra.mxu0 0.0
        %2566 = vmatpush.msra.mxu0 0.0
        %2567 = vmatpush.msra.mxu0 0.0
        %2568 = vmatpush.msra.mxu0 0.0
        %2569 = vmatpush.msra.mxu0 0.0
        %2570 = vmatpush.msra.mxu0 0.0
        %2571 = vmatpush.msra.mxu0 0.0
        %2572 = vmatpush.msra.mxu0 0.0
        %2573 = vmatpush.msra.mxu0 0.0
        %2574 = vmatpush.msra.mxu0 0.0
        %2575 = vmatpush.msra.mxu0 0.0
        %2576 = vmatpush.msra.mxu0 0.0
        %2577 = vmatpush.msra.mxu0 0.0
        %2578 = vmatpush.msra.mxu0 0.0
        %2579 = vmatpush.msra.mxu0 %v2205
        %2580 = vmatpush.msra.mxu0 %v2202
        %2581 = vmatmul.f32.gmra.mxu0 %v2560
        %v2582 = vpop.f32.mrf.mxu0
        %v2583 = vadd.f32 0.0, %v2582
        %2584 = vmatmul.f32.gmra.mxu0 %v2563
        %v2585 = vpop.f32.mrf.mxu0
        %v2586 = vadd.f32 0.0, %v2585
        %2587 = vdwg.mxu0
        %2588 = vmatpush.msra.mxu0 0.0
        %2589 = vmatpush.msra.mxu0 0.0
        %2590 = vmatpush.msra.mxu0 0.0
        %2591 = vmatpush.msra.mxu0 0.0
        %2592 = vmatpush.msra.mxu0 0.0
        %2593 = vmatpush.msra.mxu0 0.0
        %2594 = vmatpush.msra.mxu0 0.0
        %2595 = vmatpush.msra.mxu0 0.0
        %2596 = vmatpush.msra.mxu0 0.0
        %2597 = vmatpush.msra.mxu0 0.0
        %2598 = vmatpush.msra.mxu0 0.0
        %2599 = vmatpush.msra.mxu0 0.0
        %2600 = vmatpush.msra.mxu0 0.0
        %2601 = vmatpush.msra.mxu0 0.0
        %2602 = vmatpush.msra.mxu0 %v2206
        %2603 = vmatpush.msra.mxu0 %v2203
        %2604 = vmatmul.f32.gmra.mxu0 %v2560
        %v2605 = vpop.f32.mrf.mxu0
        %v2606 = vadd.f32 0.0, %v2605
        %2607 = vmatmul.f32.gmra.mxu0 %v2563
        %v2608 = vpop.f32.mrf.mxu0
        %v2609 = vadd.f32 0.0, %v2608
        %2610 = vdwg.mxu0
        %v2611 = vadd.f32 %v2552, %v2583
        %v2612 = vadd.f32 %v2553, %v2606
        %v2613 = vadd.f32 %v2554, %v2586
        %v2614 = vadd.f32 %v2555, %v2609
        %v2615 = vld [vmem:[#allocation2 + $0x8] sm:$0xff]
        %v2616 = vld [vmem:[#allocation2 + $0x10] sm:$0xff]
        %v2617 = vld [vmem:[#allocation2 + $0x18] sm:$0xff]
        %v2618 = vld [vmem:[#allocation2 + $0x28] sm:$0xff]
        %v2619 = vld [vmem:[#allocation2 + $0x30] sm:$0xff]
        %v2620 = vld [vmem:[#allocation2 + $0x38] sm:$0xff]
        %v2621 = vmul.f32 %v2615, %v1135
        %v2622 = vmul.f32 %v2616, %v1138
        %v2623 = vmul.f32 %v2617, %v1137
        %v2624 = vmul.f32 %v2618, %v1135
        %v2625 = vmul.f32 %v2619, %v1138
        %v2626 = vmul.f32 %v2620, %v1137
        %s2627 = scalar_lea.vmem [#allocation6], 80
        %v2628 = vld [vmem:[%s2627] sm:$0xff]
        %v2629 = vld [vmem:[%s2627 + $0x8] sm:$0xff]
        %2636 = vrot.lane.b32.xlu0 %v2621, 127
        %v2637 = vpop.permute.xlu0 %2636
        %2638 = vrot.lane.b32.xlu0 %v2622, 127
        %v2639 = vpop.permute.xlu0 %2638
        %2640 = vrot.lane.b32.xlu0 %v2623, 127
        %v2641 = vpop.permute.xlu0 %2640
        %2642 = vrot.lane.b32.xlu0 %v2624, 127
        %v2643 = vpop.permute.xlu0 %2642
        %2644 = vrot.lane.b32.xlu0 %v2625, 127
        %v2645 = vpop.permute.xlu0 %2644
        %2646 = vrot.lane.b32.xlu0 %v2626, 127
        %v2647 = vpop.permute.xlu0 %2646
        %v2648 = vsel %vm966, %v2637, %v2639
        %v2649 = vsel %vm966, %v2639, %v2641
        %v2650 = vsel %vm966, %v2643, %v2645
        %v2651 = vsel %vm966, %v2645, %v2647
        %v2657 = vsel %vm712, %v2628, 0
        %v2660 = vsel %vm712, %v2629, 0
        %2662 = vmatpush.msra.mxu0 0.0
        %2663 = vmatpush.msra.mxu0 0.0
        %2664 = vmatpush.msra.mxu0 0.0
        %2665 = vmatpush.msra.mxu0 0.0
        %2666 = vmatpush.msra.mxu0 0.0
        %2667 = vmatpush.msra.mxu0 0.0
        %2668 = vmatpush.msra.mxu0 0.0
        %2669 = vmatpush.msra.mxu0 0.0
        %2670 = vmatpush.msra.mxu0 0.0
        %2671 = vmatpush.msra.mxu0 0.0
        %2672 = vmatpush.msra.mxu0 0.0
        %2673 = vmatpush.msra.mxu0 0.0
        %2674 = vmatpush.msra.mxu0 0.0
        %2675 = vmatpush.msra.mxu0 0.0
        %2676 = vmatpush.msra.mxu0 %v2650
        %2677 = vmatpush.msra.mxu0 %v2648
        %2678 = vmatmul.f32.gmra.mxu0 %v2657
        %v2679 = vpop.f32.mrf.mxu0
        %v2680 = vadd.f32 0.0, %v2679
        %2681 = vmatmul.f32.gmra.mxu0 %v2660
        %v2682 = vpop.f32.mrf.mxu0
        %v2683 = vadd.f32 0.0, %v2682
        %2684 = vdwg.mxu0
        %2685 = vmatpush.msra.mxu0 0.0
        %2686 = vmatpush.msra.mxu0 0.0
        %2687 = vmatpush.msra.mxu0 0.0
        %2688 = vmatpush.msra.mxu0 0.0
        %2689 = vmatpush.msra.mxu0 0.0
        %2690 = vmatpush.msra.mxu0 0.0
        %2691 = vmatpush.msra.mxu0 0.0
        %2692 = vmatpush.msra.mxu0 0.0
        %2693 = vmatpush.msra.mxu0 0.0
        %2694 = vmatpush.msra.mxu0 0.0
        %2695 = vmatpush.msra.mxu0 0.0
        %2696 = vmatpush.msra.mxu0 0.0
        %2697 = vmatpush.msra.mxu0 0.0
        %2698 = vmatpush.msra.mxu0 0.0
        %2699 = vmatpush.msra.mxu0 %v2651
        %2700 = vmatpush.msra.mxu0 %v2649
        %2701 = vmatmul.f32.gmra.mxu0 %v2657
        %v2702 = vpop.f32.mrf.mxu0
        %v2703 = vadd.f32 0.0, %v2702
        %2704 = vmatmul.f32.gmra.mxu0 %v2660
        %v2705 = vpop.f32.mrf.mxu0
        %v2706 = vadd.f32 0.0, %v2705
        %2707 = vdwg.mxu0
        %v2708 = vadd.f32 %v2611, %v2680
        %v2709 = vadd.f32 %v2612, %v2703
        %v2710 = vadd.f32 %v2613, %v2683
        %v2711 = vadd.f32 %v2614, %v2706
        %v2712 = vmul.f32 %v2615, %v1236
        %v2713 = vmul.f32 %v2616, %v1239
        %v2714 = vmul.f32 %v2617, %v1238
        %v2715 = vmul.f32 %v2618, %v1236
        %v2716 = vmul.f32 %v2619, %v1239
        %v2717 = vmul.f32 %v2620, %v1238
        %s2718 = scalar_lea.vmem [#allocation6], 96
        %v2719 = vld [vmem:[%s2718] sm:$0xff]
        %v2720 = vld [vmem:[%s2718 + $0x8] sm:$0xff]
        %2727 = vrot.lane.b32.xlu0 %v2712, 113
        %v2728 = vpop.permute.xlu0 %2727
        %2729 = vrot.lane.b32.xlu0 %v2713, 113
        %v2730 = vpop.permute.xlu0 %2729
        %2731 = vrot.lane.b32.xlu0 %v2714, 113
        %v2732 = vpop.permute.xlu0 %2731
        %2733 = vrot.lane.b32.xlu0 %v2715, 113
        %v2734 = vpop.permute.xlu0 %2733
        %2735 = vrot.lane.b32.xlu0 %v2716, 113
        %v2736 = vpop.permute.xlu0 %2735
        %2737 = vrot.lane.b32.xlu0 %v2717, 113
        %v2738 = vpop.permute.xlu0 %2737
        %v2739 = vsel %vm863, %v2728, %v2730
        %v2740 = vsel %vm863, %v2730, %v2732
        %v2741 = vsel %vm863, %v2734, %v2736
        %v2742 = vsel %vm863, %v2736, %v2738
        %v2748 = vsel %vm712, %v2719, 0
        %v2751 = vsel %vm712, %v2720, 0
        %2753 = vmatpush.msra.mxu0 0.0
        %2754 = vmatpush.msra.mxu0 0.0
        %2755 = vmatpush.msra.mxu0 0.0
        %2756 = vmatpush.msra.mxu0 0.0
        %2757 = vmatpush.msra.mxu0 0.0
        %2758 = vmatpush.msra.mxu0 0.0
        %2759 = vmatpush.msra.mxu0 0.0
        %2760 = vmatpush.msra.mxu0 0.0
        %2761 = vmatpush.msra.mxu0 0.0
        %2762 = vmatpush.msra.mxu0 0.0
        %2763 = vmatpush.msra.mxu0 0.0
        %2764 = vmatpush.msra.mxu0 0.0
        %2765 = vmatpush.msra.mxu0 0.0
        %2766 = vmatpush.msra.mxu0 0.0
        %2767 = vmatpush.msra.mxu0 %v2741
        %2768 = vmatpush.msra.mxu0 %v2739
        %2769 = vmatmul.f32.gmra.mxu0 %v2748
        %v2770 = vpop.f32.mrf.mxu0
        %v2771 = vadd.f32 0.0, %v2770
        %2772 = vmatmul.f32.gmra.mxu0 %v2751
        %v2773 = vpop.f32.mrf.mxu0
        %v2774 = vadd.f32 0.0, %v2773
        %2775 = vdwg.mxu0
        %2776 = vmatpush.msra.mxu0 0.0
        %2777 = vmatpush.msra.mxu0 0.0
        %2778 = vmatpush.msra.mxu0 0.0
        %2779 = vmatpush.msra.mxu0 0.0
        %2780 = vmatpush.msra.mxu0 0.0
        %2781 = vmatpush.msra.mxu0 0.0
        %2782 = vmatpush.msra.mxu0 0.0
        %2783 = vmatpush.msra.mxu0 0.0
        %2784 = vmatpush.msra.mxu0 0.0
        %2785 = vmatpush.msra.mxu0 0.0
        %2786 = vmatpush.msra.mxu0 0.0
        %2787 = vmatpush.msra.mxu0 0.0
        %2788 = vmatpush.msra.mxu0 0.0
        %2789 = vmatpush.msra.mxu0 0.0
        %2790 = vmatpush.msra.mxu0 %v2742
        %2791 = vmatpush.msra.mxu0 %v2740
        %2792 = vmatmul.f32.gmra.mxu0 %v2748
        %v2793 = vpop.f32.mrf.mxu0
        %v2794 = vadd.f32 0.0, %v2793
        %2795 = vmatmul.f32.gmra.mxu0 %v2751
        %v2796 = vpop.f32.mrf.mxu0
        %v2797 = vadd.f32 0.0, %v2796
        %2798 = vdwg.mxu0
        %v2799 = vadd.f32 %v2708, %v2771
        %v2800 = vadd.f32 %v2709, %v2794
        %v2801 = vadd.f32 %v2710, %v2774
        %v2802 = vadd.f32 %v2711, %v2797
        %s2803 = scalar_lea.vmem [#allocation6], 112
        %v2804 = vld [vmem:[%s2803] sm:$0xff]
        %v2805 = vld [vmem:[%s2803 + $0x8] sm:$0xff]
        %2812 = vrot.lane.b32.xlu0 %v2615, 112
        %v2813 = vpop.permute.xlu0 %2812
        %2814 = vrot.lane.b32.xlu0 %v2616, 112
        %v2815 = vpop.permute.xlu0 %2814
        %2816 = vrot.lane.b32.xlu0 %v2617, 112
        %v2817 = vpop.permute.xlu0 %2816
        %2818 = vrot.lane.b32.xlu0 %v2618, 112
        %v2819 = vpop.permute.xlu0 %2818
        %2820 = vrot.lane.b32.xlu0 %v2619, 112
        %v2821 = vpop.permute.xlu0 %2820
        %2822 = vrot.lane.b32.xlu0 %v2620, 112
        %v2823 = vpop.permute.xlu0 %2822
        %v2824 = vsel %vm1357, %v2813, %v2815
        %v2825 = vsel %vm1357, %v2815, %v2817
        %v2826 = vsel %vm1357, %v2819, %v2821
        %v2827 = vsel %vm1357, %v2821, %v2823
        %v2833 = vsel %vm712, %v2804, 0
        %v2836 = vsel %vm712, %v2805, 0
        %2838 = vmatpush.msra.mxu0 0.0
        %2839 = vmatpush.msra.mxu0 0.0
        %2840 = vmatpush.msra.mxu0 0.0
        %2841 = vmatpush.msra.mxu0 0.0
        %2842 = vmatpush.msra.mxu0 0.0
        %2843 = vmatpush.msra.mxu0 0.0
        %2844 = vmatpush.msra.mxu0 0.0
        %2845 = vmatpush.msra.mxu0 0.0
        %2846 = vmatpush.msra.mxu0 0.0
        %2847 = vmatpush.msra.mxu0 0.0
        %2848 = vmatpush.msra.mxu0 0.0
        %2849 = vmatpush.msra.mxu0 0.0
        %2850 = vmatpush.msra.mxu0 0.0
        %2851 = vmatpush.msra.mxu0 0.0
        %2852 = vmatpush.msra.mxu0 %v2826
        %2853 = vmatpush.msra.mxu0 %v2824
        %2854 = vmatmul.f32.gmra.mxu0 %v2833
        %v2855 = vpop.f32.mrf.mxu0
        %v2856 = vadd.f32 0.0, %v2855
        %2857 = vmatmul.f32.gmra.mxu0 %v2836
        %v2858 = vpop.f32.mrf.mxu0
        %v2859 = vadd.f32 0.0, %v2858
        %2860 = vdwg.mxu0
        %2861 = vmatpush.msra.mxu0 0.0
        %2862 = vmatpush.msra.mxu0 0.0
        %2863 = vmatpush.msra.mxu0 0.0
        %2864 = vmatpush.msra.mxu0 0.0
        %2865 = vmatpush.msra.mxu0 0.0
        %2866 = vmatpush.msra.mxu0 0.0
        %2867 = vmatpush.msra.mxu0 0.0
        %2868 = vmatpush.msra.mxu0 0.0
        %2869 = vmatpush.msra.mxu0 0.0
        %2870 = vmatpush.msra.mxu0 0.0
        %2871 = vmatpush.msra.mxu0 0.0
        %2872 = vmatpush.msra.mxu0 0.0
        %2873 = vmatpush.msra.mxu0 0.0
        %2874 = vmatpush.msra.mxu0 0.0
        %2875 = vmatpush.msra.mxu0 %v2827
        %2876 = vmatpush.msra.mxu0 %v2825
        %2877 = vmatmul.f32.gmra.mxu0 %v2833
        %v2878 = vpop.f32.mrf.mxu0
        %v2879 = vadd.f32 0.0, %v2878
        %2880 = vmatmul.f32.gmra.mxu0 %v2836
        %v2881 = vpop.f32.mrf.mxu0
        %v2882 = vadd.f32 0.0, %v2881
        %2883 = vdwg.mxu0
        %v2884 = vadd.f32 %v2799, %v2856
        %v2885 = vadd.f32 %v2800, %v2879
        %v2886 = vadd.f32 %v2801, %v2859
        %v2887 = vadd.f32 %v2802, %v2882
        %v2888 = vmul.f32 %v2615, %v1425
        %v2889 = vmul.f32 %v2616, %v1428
        %v2890 = vmul.f32 %v2617, %v1427
        %v2891 = vmul.f32 %v2618, %v1425
        %v2892 = vmul.f32 %v2619, %v1428
        %v2893 = vmul.f32 %v2620, %v1427
        %s2894 = scalar_lea.vmem [#allocation6], 128
        %v2895 = vld [vmem:[%s2894] sm:$0xff]
        %v2896 = vld [vmem:[%s2894 + $0x8] sm:$0xff]
        %2903 = vrot.lane.b32.xlu0 %v2888, 111
        %v2904 = vpop.permute.xlu0 %2903
        %2905 = vrot.lane.b32.xlu0 %v2889, 111
        %v2906 = vpop.permute.xlu0 %2905
        %2907 = vrot.lane.b32.xlu0 %v2890, 111
        %v2908 = vpop.permute.xlu0 %2907
        %2909 = vrot.lane.b32.xlu0 %v2891, 111
        %v2910 = vpop.permute.xlu0 %2909
        %2911 = vrot.lane.b32.xlu0 %v2892, 111
        %v2912 = vpop.permute.xlu0 %2911
        %2913 = vrot.lane.b32.xlu0 %v2893, 111
        %v2914 = vpop.permute.xlu0 %2913
        %v2915 = vsel %vm678, %v2904, %v2906
        %v2916 = vsel %vm678, %v2906, %v2908
        %v2917 = vsel %vm678, %v2910, %v2912
        %v2918 = vsel %vm678, %v2912, %v2914
        %v2924 = vsel %vm712, %v2895, 0
        %v2927 = vsel %vm712, %v2896, 0
        %2929 = vmatpush.msra.mxu0 0.0
        %2930 = vmatpush.msra.mxu0 0.0
        %2931 = vmatpush.msra.mxu0 0.0
        %2932 = vmatpush.msra.mxu0 0.0
        %2933 = vmatpush.msra.mxu0 0.0
        %2934 = vmatpush.msra.mxu0 0.0
        %2935 = vmatpush.msra.mxu0 0.0
        %2936 = vmatpush.msra.mxu0 0.0
        %2937 = vmatpush.msra.mxu0 0.0
        %2938 = vmatpush.msra.mxu0 0.0
        %2939 = vmatpush.msra.mxu0 0.0
        %2940 = vmatpush.msra.mxu0 0.0
        %2941 = vmatpush.msra.mxu0 0.0
        %2942 = vmatpush.msra.mxu0 0.0
        %2943 = vmatpush.msra.mxu0 %v2917
        %2944 = vmatpush.msra.mxu0 %v2915
        %2945 = vmatmul.f32.gmra.mxu0 %v2924
        %v2946 = vpop.f32.mrf.mxu0
        %v2947 = vadd.f32 0.0, %v2946
        %2948 = vmatmul.f32.gmra.mxu0 %v2927
        %v2949 = vpop.f32.mrf.mxu0
        %v2950 = vadd.f32 0.0, %v2949
        %2951 = vdwg.mxu0
        %2952 = vmatpush.msra.mxu0 0.0
        %2953 = vmatpush.msra.mxu0 0.0
        %2954 = vmatpush.msra.mxu0 0.0
        %2955 = vmatpush.msra.mxu0 0.0
        %2956 = vmatpush.msra.mxu0 0.0
        %2957 = vmatpush.msra.mxu0 0.0
        %2958 = vmatpush.msra.mxu0 0.0
        %2959 = vmatpush.msra.mxu0 0.0
        %2960 = vmatpush.msra.mxu0 0.0
        %2961 = vmatpush.msra.mxu0 0.0
        %2962 = vmatpush.msra.mxu0 0.0
        %2963 = vmatpush.msra.mxu0 0.0
        %2964 = vmatpush.msra.mxu0 0.0
        %2965 = vmatpush.msra.mxu0 0.0
        %2966 = vmatpush.msra.mxu0 %v2918
        %2967 = vmatpush.msra.mxu0 %v2916
        %2968 = vmatmul.f32.gmra.mxu0 %v2924
        %v2969 = vpop.f32.mrf.mxu0
        %v2970 = vadd.f32 0.0, %v2969
        %2971 = vmatmul.f32.gmra.mxu0 %v2927
        %v2972 = vpop.f32.mrf.mxu0
        %v2973 = vadd.f32 0.0, %v2972
        %2974 = vdwg.mxu0
        %v2975 = vadd.f32 %v2884, %v2947
        %v2976 = vadd.f32 %v2885, %v2970
        %v2977 = vadd.f32 %v2886, %v2950
        %v2978 = vadd.f32 %v2887, %v2973
        %v2979 = vmul.f32 %v2975, 0.5
        %v2980 = vmul.f32 %v2976, 0.5
        %v2981 = vmul.f32 %v2975, 0.044715
        %v2982 = vmul.f32 %v2976, 0.044715
        %v2983 = vmul.f32 %v2981, %v2975
        %v2984 = vmul.f32 %v2982, %v2976
        %v2985 = vmul.f32 %v2983, %v2975
        %v2986 = vmul.f32 %v2984, %v2976
        %v2987 = vadd.f32 %v2975, %v2985
        %v2988 = vadd.f32 %v2976, %v2986
        %v2989 = vmul.f32 %v2987, 0.7978846
        %v2990 = vmul.f32 %v2988, 0.7978846
        %v2991 = vtanh.pop %v2989
        %v2992 = vtanh.pop %v2990
        %v2993 = vadd.f32 %v2991, 1.0
        %v2994 = vadd.f32 %v2992, 1.0
        %v2995 = vmul.f32 %v2979, %v2993
        %v2996 = vmul.f32 %v2980, %v2994
        %v2997 = vmul.f32 %v2995, %v2977
        %v2998 = vmul.f32 %v2996, %v2978
        %v2999 = vld [vmem:[%s11] sm:$0xf]
        %vm3000 = vcmask 64512
        %v3002 = vsel %vm3000, %v2999, 0
        %3004 = vmatpush.msra.mxu0 0.0
        %3005 = vmatpush.msra.mxu0 0.0
        %3006 = vmatpush.msra.mxu0 0.0
        %3007 = vmatpush.msra.mxu0 0.0
        %3008 = vmatpush.msra.mxu0 0.0
        %3009 = vmatpush.msra.mxu0 0.0
        %3010 = vmatpush.msra.mxu0 0.0
        %3011 = vmatpush.msra.mxu0 0.0
        %3012 = vmatpush.msra.mxu0 0.0
        %3013 = vmatpush.msra.mxu0 0.0
        %3014 = vmatpush.msra.mxu0 0.0
        %3015 = vmatpush.msra.mxu0 0.0
        %3016 = vmatpush.msra.mxu0 0.0
        %3017 = vmatpush.msra.mxu0 0.0
        %3018 = vmatpush.msra.mxu0 0.0
        %3019 = vmatpush.msra.mxu0 %v2997
        %3020 = vmatmul.f32.gmra.mxu0 %v3002
        %v3021 = vpop.f32.mrf.mxu0
        %v3022 = vadd.f32 0.0, %v3021
        %3023 = vdwg.mxu0
        %3024 = vmatpush.msra.mxu0 0.0
        %3025 = vmatpush.msra.mxu0 0.0
        %3026 = vmatpush.msra.mxu0 0.0
        %3027 = vmatpush.msra.mxu0 0.0
        %3028 = vmatpush.msra.mxu0 0.0
        %3029 = vmatpush.msra.mxu0 0.0
        %3030 = vmatpush.msra.mxu0 0.0
        %3031 = vmatpush.msra.mxu0 0.0
        %3032 = vmatpush.msra.mxu0 0.0
        %3033 = vmatpush.msra.mxu0 0.0
        %3034 = vmatpush.msra.mxu0 0.0
        %3035 = vmatpush.msra.mxu0 0.0
        %3036 = vmatpush.msra.mxu0 0.0
        %3037 = vmatpush.msra.mxu0 0.0
        %3038 = vmatpush.msra.mxu0 0.0
        %3039 = vmatpush.msra.mxu0 %v2998
        %3040 = vmatmul.f32.gmra.mxu0 %v3002
        %v3041 = vpop.f32.mrf.mxu0
        %v3042 = vadd.f32 0.0, %v3041
        %3043 = vdwg.mxu0
        %v3046 = vrot.slane %v3042, 4
        %v3047 = vsel %vm492, %v3022, %v3046
        %v3049 = vadd.f32 %v2029, %v3047
        %3050 = vst [vmem:[%s440] sm:$0xff] %v3049
        %s3051 = sand.u32 %s293, 1
        %s3052 = scalar_lea.sflag [#allocation5], %s3051
        %s3053 = sand.u32 %s293, 1
        %s3054 = smul.addr %s3053, 8
        %s3055 = scalar_lea.vmem [#allocation8], %s3054
        // Predicated region
        $region77: #{tpu_custom_call.1} parent=67 // pred_check
          %p3056 = pneg %p303
        $region78: #{tpu_custom_call.1} parent=67 // pred_check_branch
          %3058 = sbr.rel (%p3056) target = $region80
        $region79: #{tpu_custom_call.1} parent=67 // pred_region
          %3060 = vsyncadd %s3052, 0
          %s3061 = smul.addr %s28, 2
          %s3062 = smul.addr %s3061, 4
          %s3063 = scalar_lea.hbm %s12, %s3062
          %s3065 = sshll.u32 %s3055, 4
          %s3066 = int_to_ptr.vmem [resolvable:$true] %s3065
          %s3067 = sshll.u32 %s3063, 4
          %s3068 = int_to_ptr.hbm [resolvable:$true] %s3067
          %3070 = dma.vmem_to_hbm [thread:$0]  %s3066, 128, %s3068, %s3052
        $region80: #{tpu_custom_call.1} parent=67 // pred_fallthru
          _
      $region68: #{tpu_custom_call.1} parent=5 // pred_fallthru
        _
      %p3071 = scmp.le.s32.totalorder 2, %s23
      // Predicated region
      $region81: #{tpu_custom_call.1} parent=5 // pred_check
        %p3072 = pneg %p3071
      $region82: #{tpu_custom_call.1} parent=5 // pred_check_branch
        %3074 = sbr.rel (%p3072) target = $region84
      $region83: #{tpu_custom_call.1} parent=5 // pred_region
        %s3075 = ssub.s32 %s23, 2
        // Predicated region
        $region85: #{tpu_custom_call.1} parent=83 // pred_check
          %p3076 = pneg %p309
        $region86: #{tpu_custom_call.1} parent=83 // pred_check_branch
          %3078 = sbr.rel (%p3076) target = $region88
        $region87: #{tpu_custom_call.1} parent=83 // pred_region
          %s3079 = sand.u32 %s294, 1
          %s3080 = scalar_lea.sflag [#allocation5], %s3079
          %s3081 = sand.u32 %s294, 1
          %s3082 = smul.addr %s3081, 8
          %s3083 = scalar_lea.vmem [#allocation8], %s3082
          %3085 = dma.done %s3080, 128
        $region88: #{tpu_custom_call.1} parent=83 // pred_fallthru
          _
      $region84: #{tpu_custom_call.1} parent=5 // pred_fallthru
        _
    $region6: #{tpu_custom_call.1} parent=1 // loop_footer
      %s27 = sadd.s32 1, %s23
    $region7: #{tpu_custom_call.1} parent=1 // loop_footer_branch
      %22 = sbr.rel target = $region3
    $region8: #{tpu_custom_call.1} parent=1 // loop_exit
      _
    %3086 = vsyncpa [#allocation4], 1
    %s3087 = scalar_lea.sflag [#allocation4], 1
    %3088 = vsyncpa %s3087, 1
    %3089 = vsyncpa [#allocation7], 1
    %3090 = vsyncpa [#allocation5], 1
    %s3091 = scalar_lea.sflag [#allocation5], 1
    %3092 = vsyncpa %s3091, 1

</llo_original>
